<compile_context>
chip_gen: v6e
topology: v6e:2x2x1
jax: 0.10.0
libtpu: 0.0.40
codegen_flags: <defaults>
</compile_context>

<pallas_src>
import jax
import jax.numpy as jnp
from jax.experimental import pallas as pl
from jax.experimental.pallas import tpu as pltpu

C_IN = 256        # body / context feature channels
C_H1 = 128        # layer1 out
C_ATT = 1         # layer2 out (attention logit)
C_L3 = 256        # layer3 out
C_L4 = 128        # layer4 out
C_OUT = 26        # layer5 out (classes)
C_OUT_PAD = 128   # lane-dense padded output width
C_FUSE = C_H1 + C_L3   # 384: fused [layer1 | layer3-half] output width

TILE_P = 512      # pixel rows per grid step (adaptively reduced for tiny P)


def _round_up(x, m):
    return ((x + m - 1) // m) * m


def fusion_kernel(body_ref, ctx_ref,
                  wfa_ref, wfb_ref, b1_ref,
                  w2r_ref, b2_ref, b3_ref,
                  w4_ref, b4_ref, w5p_ref, b5p_ref,
                  out_ref):
    body = body_ref[...]                      # (T, 256) bf16
    ctx = ctx_ref[...]                        # (T, 256) bf16

    # Fused layer1 + layer3-half matmul per branch: (T,256)@(256,384), bf16 in,
    # f32 accumulate.  Columns [:128] -> layer1 pre-act, [128:] -> layer3 partial.
    fb = jnp.dot(body, wfa_ref[...], preferred_element_type=jnp.float32)
    fc = jnp.dot(ctx, wfb_ref[...], preferred_element_type=jnp.float32)

    b1 = b1_ref[...]                          # (1, 128) f32
    h1b = jnp.maximum(fb[:, :C_H1] + b1, 0.0)     # layer1(body), (T,128)
    h1c = jnp.maximum(fc[:, :C_H1] + b1, 0.0)     # layer1(ctx)
    pre3b = fb[:, C_H1:]                          # body @ w3a, (T,256)
    pre3c = fc[:, C_H1:]                          # ctx  @ w3b

    # layer2 (128 -> 1) as VPU multiply + lane reduction (keeps MXU free).
    w2r = w2r_ref[...]                        # (1, 128) f32
    b2 = b2_ref[...]                          # (1, 1) f32
    ab = jnp.maximum(jnp.sum(h1b * w2r, axis=-1, keepdims=True) + b2, 0.0)
    ac = jnp.maximum(jnp.sum(h1c * w2r, axis=-1, keepdims=True) + b2, 0.0)

    # softmax over the 2 concatenated attention channels (per pixel)
    m = jnp.maximum(ab, ac)
    eb = jnp.exp(ab - m)
    ec = jnp.exp(ac - m)
    inv = pl.reciprocal(eb + ec, approx=True)
    lamda_f = eb * inv                        # (T, 1)
    lamda_c = ec * inv                        # (T, 1)

    # layer3: per-pixel scaling commutes with the matmul ->
    # relu(lf * (body@w3a) + lc * (ctx@w3b) + b3)
    h3 = jnp.maximum(lamda_f * pre3b + lamda_c * pre3c + b3_ref[...], 0.0)

    # layer4
    h4 = jnp.maximum(
        jnp.dot(h3.astype(jnp.bfloat16), w4_ref[...],
                preferred_element_type=jnp.float32) + b4_ref[...], 0.0)

    # layer5 (output lanes padded 26 -> 128 for lane-dense stores)
    h5 = jnp.maximum(
        jnp.dot(h4.astype(jnp.bfloat16), w5p_ref[...],
                preferred_element_type=jnp.float32) + b5p_ref[...], 0.0)

    # final per-pixel softmax over the 26 real class lanes (padded lanes masked)
    lane = jax.lax.broadcasted_iota(jnp.int32, (1, C_OUT_PAD), 1)
    h5m = jnp.where(lane < C_OUT, h5, -1e30)
    mx = jnp.max(h5m, axis=-1, keepdims=True)
    e = jnp.exp(h5m - mx)
    out_ref[...] = e * pl.reciprocal(jnp.sum(e, axis=-1, keepdims=True),
                                     approx=True)


def fusion_stream_forward(body_nchw, ctx_nchw, params, tile_p=TILE_P):
    """body_nchw, ctx_nchw: (B, 256, H, W) float32. Returns (B, 26, H, W) f32."""
    B, C, H, W = body_nchw.shape
    assert C == C_IN and ctx_nchw.shape == body_nchw.shape

    P = B * H * W
    tile_p = min(tile_p, _round_up(P, 256))   # don't over-tile tiny inputs
    Ppad = _round_up(P, tile_p)
    pad = Ppad - P

    # NCHW -> (P, C) pixel-major bf16 matrix (transpose + cast fuse in XLA; the
    # pad rows are appended in the same materialization).
    body = jnp.transpose(body_nchw, (0, 2, 3, 1)).reshape(P, C).astype(jnp.bfloat16)
    ctx = jnp.transpose(ctx_nchw, (0, 2, 3, 1)).reshape(P, C).astype(jnp.bfloat16)
    if pad:
        body = jnp.pad(body, ((0, pad), (0, 0)))
        ctx = jnp.pad(ctx, ((0, pad), (0, 0)))

    (w1, b1, w2, b2, w3a, w3b, b3, w4, b4, w5, b5) = params

    # Fused / reshaped / padded weights (bf16 for MXU operands, f32 for
    # biases and the VPU attention row).
    wfa = jnp.concatenate([w1, w3a], axis=1).astype(jnp.bfloat16)   # (256, 384)
    wfb = jnp.concatenate([w1, w3b], axis=1).astype(jnp.bfloat16)   # (256, 384)
    w2r = jnp.reshape(w2, (1, C_H1)).astype(jnp.float32)            # (1, 128)
    w4b = w4.astype(jnp.bfloat16)                                   # (256, 128)
    w5p = jnp.zeros((C_L4, C_OUT_PAD), jnp.float32).at[:, :C_OUT].set(w5)
    w5p = w5p.astype(jnp.bfloat16)                                  # (128, 128)
    b5p = jnp.zeros((1, C_OUT_PAD), jnp.float32).at[:, :C_OUT].set(b5)

    grid = (Ppad // tile_p,)

    def full_spec(shape):
        return pl.BlockSpec(shape, lambda i: (0, 0))

    out = pl.pallas_call(
        fusion_kernel,
        out_shape=jax.ShapeDtypeStruct((Ppad, C_OUT_PAD), jnp.float32),
        grid_spec=pltpu.PrefetchScalarGridSpec(
            num_scalar_prefetch=0,
            grid=grid,
            in_specs=[
                pl.BlockSpec((tile_p, C_IN), lambda i: (i, 0)),   # body
                pl.BlockSpec((tile_p, C_IN), lambda i: (i, 0)),   # ctx
                full_spec((C_IN, C_FUSE)),     # wfa  = [w1 | w3a]
                full_spec((C_IN, C_FUSE)),     # wfb  = [w1 | w3b]
                full_spec((1, C_H1)),          # b1
                full_spec((1, C_H1)),          # w2 row (f32, VPU)
                full_spec((1, C_ATT)),         # b2
                full_spec((1, C_L3)),          # b3
                full_spec((C_L3, C_L4)),       # w4
                full_spec((1, C_L4)),          # b4
                full_spec((C_L4, C_OUT_PAD)),  # w5 (lane-padded)
                full_spec((1, C_OUT_PAD)),     # b5 (lane-padded)
            ],
            out_specs=pl.BlockSpec((tile_p, C_OUT_PAD), lambda i: (i, 0)),
        ),
        compiler_params=pltpu.CompilerParams(
            dimension_semantics=("parallel",)),
    )(body, ctx, wfa, wfb, b1, w2r, b2, b3, w4b, b4, w5p, b5p)

    out = out[:P, :C_OUT]                               # drop pad rows / lanes
    out = out.reshape(B, H, W, C_OUT)
    return jnp.transpose(out, (0, 3, 1, 2))             # back to NCHW


def reference_forward(body_nchw, ctx_nchw, params):
    """Pure-JAX f32 reference (same math as the PyTorch module, eval mode)."""
    (w1, b1, w2, b2, w3a, w3b, b3, w4, b4, w5, b5) = params
    B, C, H, W = body_nchw.shape
    body = jnp.transpose(body_nchw, (0, 2, 3, 1)).reshape(-1, C)
    ctx = jnp.transpose(ctx_nchw, (0, 2, 3, 1)).reshape(-1, C)

    def attn(x):
        h = jnp.maximum(x @ w1 + b1, 0.0)
        return jnp.maximum(h @ w2 + b2, 0.0)

    ba, ca = attn(body), attn(ctx)
    logits2 = jnp.concatenate([ba, ca], axis=-1)
    sm2 = jax.nn.softmax(logits2, axis=-1)
    lf, lc = sm2[:, :1], sm2[:, 1:]
    h3 = jnp.maximum((lf * body) @ w3a + (lc * ctx) @ w3b + b3, 0.0)
    h4 = jnp.maximum(h3 @ w4 + b4, 0.0)
    h5 = jnp.maximum(h4 @ w5 + b5, 0.0)
    y = jax.nn.softmax(h5, axis=-1)
    return jnp.transpose(y.reshape(B, H, W, C_OUT), (0, 3, 1, 2))


def init_params(key):
    """Deterministic parameter init (shapes match the PyTorch 1x1 convs)."""
    ks = jax.random.split(key, 11)

    def w(k, shape, fan_in):
        bound = 1.0 / jnp.sqrt(fan_in)
        return jax.random.uniform(k, shape, jnp.float32, -bound, bound)

    w1 = w(ks[0], (C_IN, C_H1), C_IN)
    b1 = w(ks[1], (1, C_H1), C_IN)
    w2 = w(ks[2], (C_H1, C_ATT), C_H1)
    b2 = w(ks[3], (1, C_ATT), C_H1)
    # layer3 has 512 input channels; store as two 256-channel halves
    w3a = w(ks[4], (C_IN, C_L3), 2 * C_IN)
    w3b = w(ks[5], (C_IN, C_L3), 2 * C_IN)
    b3 = w(ks[6], (1, C_L3), 2 * C_IN)
    w4 = w(ks[7], (C_L3, C_L4), C_L3)
    b4 = w(ks[8], (1, C_L4), C_L3)
    w5 = w(ks[9], (C_L4, C_OUT), C_L4)
    b5 = w(ks[10], (1, C_OUT), C_L4)
    return (w1, b1, w2, b2, w3a, w3b, b3, w4, b4, w5, b5)


if __name__ == "__main__":
    key = jax.random.PRNGKey(0)
    k_body, k_ctx, k_param = jax.random.split(key, 3)

    B, H, W = 2, 8, 8   # small spatial size; channel counts fixed by module
    body = jax.random.normal(k_body, (B, C_IN, H, W), jnp.float32)
    ctx = jax.random.normal(k_ctx, (B, C_IN, H, W), jnp.float32)
    params = init_params(k_param)

    y = jax.block_until_ready(fusion_stream_forward(body, ctx, params))
    y_ref = jax.block_until_ready(reference_forward(body, ctx, params))

    assert y.shape == (B, C_OUT, H, W)
    # bf16 matmuls + approx reciprocal: compare with relaxed tolerance vs f32 ref
    assert jnp.allclose(y, y_ref, atol=2e-2, rtol=2e-2)
    # per-pixel softmax must sum to ~1 over the 26 channels
    assert jnp.allclose(jnp.sum(y, axis=1), jnp.ones((B, H, W)), atol=5e-3)

    print("KERNEL_OK")
</pallas_src>

<mosaic_0001>
module attributes {stable_mosaic.version = 11 : i64} {
  func.func @fusion_kernel(%arg0: i32, %arg1: memref<256x256xbf16, #tpu.memory_space<vmem>>, %arg2: memref<256x256xbf16, #tpu.memory_space<vmem>>, %arg3: memref<256x384xbf16, #tpu.memory_space<vmem>>, %arg4: memref<256x384xbf16, #tpu.memory_space<vmem>>, %arg5: memref<1x128xf32, #tpu.memory_space<vmem>>, %arg6: memref<1x128xf32, #tpu.memory_space<vmem>>, %arg7: memref<1x1xf32, #tpu.memory_space<vmem>>, %arg8: memref<1x256xf32, #tpu.memory_space<vmem>>, %arg9: memref<256x128xbf16, #tpu.memory_space<vmem>>, %arg10: memref<1x128xf32, #tpu.memory_space<vmem>>, %arg11: memref<128x128xbf16, #tpu.memory_space<vmem>>, %arg12: memref<1x128xf32, #tpu.memory_space<vmem>>, %arg13: memref<256x128xf32, #tpu.memory_space<vmem>>) attributes {dimension_semantics = [#tpu.dimension_semantics<parallel>], iteration_bounds = array<i64: 1>, scalar_prefetch = 0 : i64, scratch_operands = 0 : i64, tpu.core_type = #tpu.core_type<tc>, window_params = [{transform_indices = @transform_0, window_bounds = array<i64: 256, 256>}, {transform_indices = @transform_1, window_bounds = array<i64: 256, 256>}, {pipeline_mode = #tpu.pipeline_mode<synchronous>, transform_indices = @transform_2, window_bounds = array<i64: 256, 384>}, {pipeline_mode = #tpu.pipeline_mode<synchronous>, transform_indices = @transform_3, window_bounds = array<i64: 256, 384>}, {pipeline_mode = #tpu.pipeline_mode<synchronous>, transform_indices = @transform_4, window_bounds = array<i64: 1, 128>}, {pipeline_mode = #tpu.pipeline_mode<synchronous>, transform_indices = @transform_5, window_bounds = array<i64: 1, 128>}, {pipeline_mode = #tpu.pipeline_mode<synchronous>, transform_indices = @transform_6, window_bounds = array<i64: 1, 1>}, {pipeline_mode = #tpu.pipeline_mode<synchronous>, transform_indices = @transform_7, window_bounds = array<i64: 1, 256>}, {pipeline_mode = #tpu.pipeline_mode<synchronous>, transform_indices = @transform_8, window_bounds = array<i64: 256, 128>}, {pipeline_mode = #tpu.pipeline_mode<synchronous>, transform_indices = @transform_9, window_bounds = array<i64: 1, 128>}, {pipeline_mode = #tpu.pipeline_mode<synchronous>, transform_indices = @transform_10, window_bounds = array<i64: 128, 128>}, {pipeline_mode = #tpu.pipeline_mode<synchronous>, transform_indices = @transform_11, window_bounds = array<i64: 1, 128>}, {transform_indices = @transform_12, window_bounds = array<i64: 256, 128>}]} {
    %c0 = arith.constant 0 : index
    %c0_0 = arith.constant 0 : index
    %0 = vector.load %arg1[%c0, %c0_0] : memref<256x256xbf16, #tpu.memory_space<vmem>>, vector<256x256xbf16>
    %c0_1 = arith.constant 0 : index
    %c0_2 = arith.constant 0 : index
    %1 = vector.load %arg2[%c0_1, %c0_2] : memref<256x256xbf16, #tpu.memory_space<vmem>>, vector<256x256xbf16>
    %c0_3 = arith.constant 0 : index
    %c0_4 = arith.constant 0 : index
    %2 = vector.load %arg3[%c0_3, %c0_4] : memref<256x384xbf16, #tpu.memory_space<vmem>>, vector<256x384xbf16>
    %cst = arith.constant dense<0.000000e+00> : vector<256x384xf32>
    %3 = tpu.matmul %0, %2, %cst {dimension_numbers = #tpu.dot_dimension_numbers<[1], [0], [0], [1], [0, 0, 1, 1], [], []>} : vector<256x256xbf16>, vector<256x384xbf16>, vector<256x384xf32> -> vector<256x384xf32>
    %c0_5 = arith.constant 0 : index
    %c0_6 = arith.constant 0 : index
    %4 = vector.load %arg4[%c0_5, %c0_6] : memref<256x384xbf16, #tpu.memory_space<vmem>>, vector<256x384xbf16>
    %cst_7 = arith.constant dense<0.000000e+00> : vector<256x384xf32>
    %5 = tpu.matmul %1, %4, %cst_7 {dimension_numbers = #tpu.dot_dimension_numbers<[1], [0], [0], [1], [0, 0, 1, 1], [], []>} : vector<256x256xbf16>, vector<256x384xbf16>, vector<256x384xf32> -> vector<256x384xf32>
    %c0_8 = arith.constant 0 : index
    %c0_9 = arith.constant 0 : index
    %6 = vector.load %arg5[%c0_8, %c0_9] : memref<1x128xf32, #tpu.memory_space<vmem>>, vector<1x128xf32>
    %7 = vector.extract_strided_slice %3 {offsets = [0, 0], sizes = [256, 128], strides = [1, 1]} : vector<256x384xf32> to vector<256x128xf32>
    %8 = vector.broadcast %6 : vector<1x128xf32> to vector<256x128xf32>
    %9 = arith.addf %7, %8 : vector<256x128xf32>
    %cst_10 = arith.constant 0.000000e+00 : f32
    %10 = vector.broadcast %cst_10 : f32 to vector<256x128xf32>
    %11 = arith.maximumf %9, %10 : vector<256x128xf32>
    %12 = vector.extract_strided_slice %5 {offsets = [0, 0], sizes = [256, 128], strides = [1, 1]} : vector<256x384xf32> to vector<256x128xf32>
    %13 = vector.broadcast %6 : vector<1x128xf32> to vector<256x128xf32>
    %14 = arith.addf %12, %13 : vector<256x128xf32>
    %cst_11 = arith.constant 0.000000e+00 : f32
    %15 = vector.broadcast %cst_11 : f32 to vector<256x128xf32>
    %16 = arith.maximumf %14, %15 : vector<256x128xf32>
    %17 = vector.extract_strided_slice %3 {offsets = [0, 128], sizes = [256, 256], strides = [1, 1]} : vector<256x384xf32> to vector<256x256xf32>
    %18 = vector.extract_strided_slice %5 {offsets = [0, 128], sizes = [256, 256], strides = [1, 1]} : vector<256x384xf32> to vector<256x256xf32>
    %c0_12 = arith.constant 0 : index
    %c0_13 = arith.constant 0 : index
    %19 = vector.load %arg6[%c0_12, %c0_13] : memref<1x128xf32, #tpu.memory_space<vmem>>, vector<1x128xf32>
    %c0_14 = arith.constant 0 : index
    %c0_15 = arith.constant 0 : index
    %20 = vector.load %arg7[%c0_14, %c0_15] : memref<1x1xf32, #tpu.memory_space<vmem>>, vector<1x1xf32>
    %21 = vector.broadcast %19 : vector<1x128xf32> to vector<256x128xf32>
    %22 = arith.mulf %11, %21 : vector<256x128xf32>
    %cst_16 = arith.constant dense<0.000000e+00> : vector<256xf32>
    %23 = vector.multi_reduction <add>, %22, %cst_16 [1] : vector<256x128xf32> to vector<256xf32>
    %24 = vector.shape_cast %23 : vector<256xf32> to vector<256x1xf32>
    %25 = vector.broadcast %20 : vector<1x1xf32> to vector<256x1xf32>
    %26 = arith.addf %24, %25 : vector<256x1xf32>
    %cst_17 = arith.constant 0.000000e+00 : f32
    %27 = vector.broadcast %cst_17 : f32 to vector<256x1xf32>
    %28 = arith.maximumf %26, %27 : vector<256x1xf32>
    %29 = vector.broadcast %19 : vector<1x128xf32> to vector<256x128xf32>
    %30 = arith.mulf %16, %29 : vector<256x128xf32>
    %cst_18 = arith.constant dense<0.000000e+00> : vector<256xf32>
    %31 = vector.multi_reduction <add>, %30, %cst_18 [1] : vector<256x128xf32> to vector<256xf32>
    %32 = vector.shape_cast %31 : vector<256xf32> to vector<256x1xf32>
    %33 = vector.broadcast %20 : vector<1x1xf32> to vector<256x1xf32>
    %34 = arith.addf %32, %33 : vector<256x1xf32>
    %cst_19 = arith.constant 0.000000e+00 : f32
    %35 = vector.broadcast %cst_19 : f32 to vector<256x1xf32>
    %36 = arith.maximumf %34, %35 : vector<256x1xf32>
    %37 = arith.maximumf %28, %36 : vector<256x1xf32>
    %38 = arith.subf %28, %37 : vector<256x1xf32>
    %39 = math.exp %38 : vector<256x1xf32>
    %40 = arith.subf %36, %37 : vector<256x1xf32>
    %41 = math.exp %40 : vector<256x1xf32>
    %42 = arith.addf %39, %41 : vector<256x1xf32>
    %43 = tpu.reciprocal %42 {approx = true} : vector<256x1xf32> -> vector<256x1xf32>
    %44 = arith.mulf %39, %43 : vector<256x1xf32>
    %45 = arith.mulf %41, %43 : vector<256x1xf32>
    %46 = vector.broadcast %44 : vector<256x1xf32> to vector<256x256xf32>
    %47 = arith.mulf %46, %17 : vector<256x256xf32>
    %48 = vector.broadcast %45 : vector<256x1xf32> to vector<256x256xf32>
    %49 = arith.mulf %48, %18 : vector<256x256xf32>
    %50 = arith.addf %47, %49 : vector<256x256xf32>
    %c0_20 = arith.constant 0 : index
    %c0_21 = arith.constant 0 : index
    %51 = vector.load %arg8[%c0_20, %c0_21] : memref<1x256xf32, #tpu.memory_space<vmem>>, vector<1x256xf32>
    %52 = vector.broadcast %51 : vector<1x256xf32> to vector<256x256xf32>
    %53 = arith.addf %50, %52 : vector<256x256xf32>
    %cst_22 = arith.constant 0.000000e+00 : f32
    %54 = vector.broadcast %cst_22 : f32 to vector<256x256xf32>
    %55 = arith.maximumf %53, %54 : vector<256x256xf32>
    %56 = arith.truncf %55 : vector<256x256xf32> to vector<256x256xbf16>
    %c0_23 = arith.constant 0 : index
    %c0_24 = arith.constant 0 : index
    %57 = vector.load %arg9[%c0_23, %c0_24] : memref<256x128xbf16, #tpu.memory_space<vmem>>, vector<256x128xbf16>
    %cst_25 = arith.constant dense<0.000000e+00> : vector<256x128xf32>
    %58 = tpu.matmul %56, %57, %cst_25 {dimension_numbers = #tpu.dot_dimension_numbers<[1], [0], [0], [1], [0, 0, 1, 1], [], []>} : vector<256x256xbf16>, vector<256x128xbf16>, vector<256x128xf32> -> vector<256x128xf32>
    %c0_26 = arith.constant 0 : index
    %c0_27 = arith.constant 0 : index
    %59 = vector.load %arg10[%c0_26, %c0_27] : memref<1x128xf32, #tpu.memory_space<vmem>>, vector<1x128xf32>
    %60 = vector.broadcast %59 : vector<1x128xf32> to vector<256x128xf32>
    %61 = arith.addf %58, %60 : vector<256x128xf32>
    %cst_28 = arith.constant 0.000000e+00 : f32
    %62 = vector.broadcast %cst_28 : f32 to vector<256x128xf32>
    %63 = arith.maximumf %61, %62 : vector<256x128xf32>
    %64 = arith.truncf %63 : vector<256x128xf32> to vector<256x128xbf16>
    %c0_29 = arith.constant 0 : index
    %c0_30 = arith.constant 0 : index
    %65 = vector.load %arg11[%c0_29, %c0_30] : memref<128x128xbf16, #tpu.memory_space<vmem>>, vector<128x128xbf16>
    %cst_31 = arith.constant dense<0.000000e+00> : vector<256x128xf32>
    %66 = tpu.matmul %64, %65, %cst_31 {dimension_numbers = #tpu.dot_dimension_numbers<[1], [0], [0], [1], [0, 0, 1, 1], [], []>} : vector<256x128xbf16>, vector<128x128xbf16>, vector<256x128xf32> -> vector<256x128xf32>
    %c0_32 = arith.constant 0 : index
    %c0_33 = arith.constant 0 : index
    %67 = vector.load %arg12[%c0_32, %c0_33] : memref<1x128xf32, #tpu.memory_space<vmem>>, vector<1x128xf32>
    %68 = vector.broadcast %67 : vector<1x128xf32> to vector<256x128xf32>
    %69 = arith.addf %66, %68 : vector<256x128xf32>
    %cst_34 = arith.constant 0.000000e+00 : f32
    %70 = vector.broadcast %cst_34 : f32 to vector<256x128xf32>
    %71 = arith.maximumf %69, %70 : vector<256x128xf32>
    %72 = tpu.iota {dimensions = array<i32: 1>} : vector<1x128xi32>
    %c26_i32 = arith.constant 26 : i32
    %73 = vector.broadcast %c26_i32 : i32 to vector<1x128xi32>
    %74 = arith.cmpi slt, %72, %73 : vector<1x128xi32>
    %cst_35 = arith.constant -1.000000e+30 : f32
    %75 = vector.shape_cast %74 : vector<1x128xi1> to vector<1x128xi1>
    %76 = vector.broadcast %75 : vector<1x128xi1> to vector<256x128xi1>
    %77 = vector.broadcast %cst_35 : f32 to vector<256x128xf32>
    %78 = arith.select %76, %71, %77 : vector<256x128xi1>, vector<256x128xf32>
    %cst_36 = arith.constant dense<0xFF800000> : vector<256xf32>
    %79 = vector.multi_reduction <maximumf>, %78, %cst_36 [1] : vector<256x128xf32> to vector<256xf32>
    %80 = vector.shape_cast %79 : vector<256xf32> to vector<256x1xf32>
    %81 = vector.broadcast %80 : vector<256x1xf32> to vector<256x128xf32>
    %82 = arith.subf %78, %81 : vector<256x128xf32>
    %83 = math.exp %82 : vector<256x128xf32>
    %cst_37 = arith.constant dense<0.000000e+00> : vector<256xf32>
    %84 = vector.multi_reduction <add>, %83, %cst_37 [1] : vector<256x128xf32> to vector<256xf32>
    %85 = vector.shape_cast %84 : vector<256xf32> to vector<256x1xf32>
    %86 = tpu.reciprocal %85 {approx = true} : vector<256x1xf32> -> vector<256x1xf32>
    %87 = vector.broadcast %86 : vector<256x1xf32> to vector<256x128xf32>
    %88 = arith.mulf %83, %87 : vector<256x128xf32>
    %c0_38 = arith.constant 0 : index
    %c0_39 = arith.constant 0 : index
    %89 = vector.load %arg13[%c0_38, %c0_39] : memref<256x128xf32, #tpu.memory_space<vmem>>, vector<256x128xf32>
    tpu.vector_store %arg13[%c0_38, %c0_39], %88 {strides = array<i32>} : memref<256x128xf32, #tpu.memory_space<vmem>>, vector<256x128xf32>,
    return
  }
  func.func @transform_0(%arg0: i32) -> (i32, i32) {
    %c0_i32 = arith.constant 0 : i32
    %c0_i32_0 = arith.constant 0 : i32
    return %arg0, %c0_i32 : i32, i32
  }
  func.func @transform_1(%arg0: i32) -> (i32, i32) {
    %c0_i32 = arith.constant 0 : i32
    %c0_i32_0 = arith.constant 0 : i32
    return %arg0, %c0_i32 : i32, i32
  }
  func.func @transform_2(%arg0: i32) -> (i32, i32) {
    %c0_i32 = arith.constant 0 : i32
    %c0_i32_0 = arith.constant 0 : i32
    %c0_i32_1 = arith.constant 0 : i32
    return %c0_i32, %c0_i32_0 : i32, i32
  }
  func.func @transform_3(%arg0: i32) -> (i32, i32) {
    %c0_i32 = arith.constant 0 : i32
    %c0_i32_0 = arith.constant 0 : i32
    %c0_i32_1 = arith.constant 0 : i32
    return %c0_i32, %c0_i32_0 : i32, i32
  }
  func.func @transform_4(%arg0: i32) -> (i32, i32) {
    %c0_i32 = arith.constant 0 : i32
    %c0_i32_0 = arith.constant 0 : i32
    %c0_i32_1 = arith.constant 0 : i32
    return %c0_i32, %c0_i32_0 : i32, i32
  }
  func.func @transform_5(%arg0: i32) -> (i32, i32) {
    %c0_i32 = arith.constant 0 : i32
    %c0_i32_0 = arith.constant 0 : i32
    %c0_i32_1 = arith.constant 0 : i32
    return %c0_i32, %c0_i32_0 : i32, i32
  }
  func.func @transform_6(%arg0: i32) -> (i32, i32) {
    %c0_i32 = arith.constant 0 : i32
    %c0_i32_0 = arith.constant 0 : i32
    %c0_i32_1 = arith.constant 0 : i32
    return %c0_i32, %c0_i32_0 : i32, i32
  }
  func.func @transform_7(%arg0: i32) -> (i32, i32) {
    %c0_i32 = arith.constant 0 : i32
    %c0_i32_0 = arith.constant 0 : i32
    %c0_i32_1 = arith.constant 0 : i32
    return %c0_i32, %c0_i32_0 : i32, i32
  }
  func.func @transform_8(%arg0: i32) -> (i32, i32) {
    %c0_i32 = arith.constant 0 : i32
    %c0_i32_0 = arith.constant 0 : i32
    %c0_i32_1 = arith.constant 0 : i32
    return %c0_i32, %c0_i32_0 : i32, i32
  }
  func.func @transform_9(%arg0: i32) -> (i32, i32) {
    %c0_i32 = arith.constant 0 : i32
    %c0_i32_0 = arith.constant 0 : i32
    %c0_i32_1 = arith.constant 0 : i32
    return %c0_i32, %c0_i32_0 : i32, i32
  }
  func.func @transform_10(%arg0: i32) -> (i32, i32) {
    %c0_i32 = arith.constant 0 : i32
    %c0_i32_0 = arith.constant 0 : i32
    %c0_i32_1 = arith.constant 0 : i32
    return %c0_i32, %c0_i32_0 : i32, i32
  }
  func.func @transform_11(%arg0: i32) -> (i32, i32) {
    %c0_i32 = arith.constant 0 : i32
    %c0_i32_0 = arith.constant 0 : i32
    %c0_i32_1 = arith.constant 0 : i32
    return %c0_i32, %c0_i32_0 : i32, i32
  }
  func.func @transform_12(%arg0: i32) -> (i32, i32) {
    %c0_i32 = arith.constant 0 : i32
    %c0_i32_0 = arith.constant 0 : i32
    return %arg0, %c0_i32 : i32, i32
  }
}

</mosaic_0001>

<llo_original>
// kernel: tpu_custom_call.1
$region0: #{tpu_custom_call.1}
  #allocation0 [shape = 'u32[]', space=smem, size = 0x4, offset = 0x4, fixed_abs, tag = 'smem constant byte address 0x4 - core index']
  #allocation1 [shape = 'u32[144,128]{1,0:T(1,128)}', space=vmem, size = 0x12000, scoped, tag = 'internal scratch']
  #allocation2 [shape = 'f32[1,1]{1,0:T(1,128)S(1)}', space=vmem, size = 0x200, scoped, tag = 'scoped memory for tpu_custom_call.1']
  %s0 = inlined_call_operand.hbm [shape: bf16[256,256], index: 0, kind: input, shape index: {}]
  %s1 = inlined_call_operand.hbm [shape: bf16[256,256], index: 1, kind: input, shape index: {}]
  %s2 = inlined_call_operand.hbm [shape: bf16[256,384], index: 2, kind: input, shape index: {}]
  %s3 = inlined_call_operand.hbm [shape: bf16[256,384], index: 3, kind: input, shape index: {}]
  %s4 = inlined_call_operand.vmem [shape: f32[1,128], index: 4, kind: input, shape index: {}]
  %s5 = inlined_call_operand.vmem [shape: f32[1,128], index: 5, kind: input, shape index: {}]
  %s6 = inlined_call_operand.<no memory space> [shape: f32[1,1], index: 6, kind: input, shape index: {}]
  %s7 = inlined_call_operand.vmem [shape: f32[1,256], index: 7, kind: input, shape index: {}]
  %s8 = inlined_call_operand.hbm [shape: bf16[256,128], index: 8, kind: input, shape index: {}]
  %s9 = inlined_call_operand.vmem [shape: f32[1,128], index: 9, kind: input, shape index: {}]
  %s10 = inlined_call_operand.hbm [shape: bf16[128,128], index: 10, kind: input, shape index: {}]
  %s11 = inlined_call_operand.vmem [shape: f32[1,128], index: 11, kind: input, shape index: {}]
  %s12 = inlined_call_operand.hbm [shape: f32[256,128], index: 12, kind: output, shape index: {}]
  %s13 = sld [smem:[#allocation0]]
  $region82: #{tpu_custom_call.1} parent=0
    _
  %s15 = ssub.s32 1, %s13
  %s16 = scalar_select 0, %s15, %s13
  %v17 = vstv %s6
  %18 = vst [vmem:[#allocation2] sm:$0x1] %v17
  $region1: #{tpu_custom_call.1} parent=0
    #allocation3 [shape = 'u8[131072]{0}', space=vmem, size = 0x20000, scoped, tag = 'input window, operand 0, single buffered']
    #allocation4 [shape = 's32[1]{0}', space=sflag, size = 0x4, scoped, tag = 'scoped memory for tpu_custom_call.1']
    #allocation5 [shape = 's32[1]{0}', space=sflag, size = 0x4, scoped, tag = 'scoped memory for tpu_custom_call.1']
    #allocation6 [shape = 'u8[131072]{0}', space=vmem, size = 0x20000, scoped, tag = 'input window, operand 1, single buffered']
    #allocation7 [shape = 's32[1]{0}', space=sflag, size = 0x4, scoped, tag = 'scoped memory for tpu_custom_call.1']
    #allocation8 [shape = 'u8[196608]{0}', space=vmem, size = 0x30000, scoped, tag = 'input window, operand 2, single buffered']
    #allocation9 [shape = 'u8[196608]{0}', space=vmem, size = 0x30000, scoped, tag = 'input window, operand 3, single buffered']
    #allocation10 [shape = 's32[1]{0}', space=sflag, size = 0x4, scoped, tag = 'scoped memory for tpu_custom_call.1']
    #allocation11 [shape = 'u8[65536]{0}', space=vmem, size = 0x10000, scoped, tag = 'input window, operand 8, single buffered']
    #allocation12 [shape = 'u8[32768]{0}', space=vmem, size = 0x8000, scoped, tag = 'input window, operand 10, single buffered']
    #allocation13 [shape = 's32[1]{0}', space=sflag, size = 0x4, scoped, tag = 'scoped memory for tpu_custom_call.1']
    #allocation14 [shape = 'u8[131072]{0}', space=vmem, size = 0x20000, scoped, tag = 'output window, operand 0, single buffered']
    %19 = vsyncpa [#allocation4], 0
    %20 = vsyncpa [#allocation7], 0
    %21 = vsyncpa [#allocation10], 0
    %22 = vsyncpa [#allocation13], 0
    %23 = vsyncpa [#allocation5], 0
    // Predicated region
    $region2: #{tpu_custom_call.1} parent=1 // pred_check
      _
    $region3: #{tpu_custom_call.1} parent=1 // pred_check_branch
      %25 = sbr.rel (0) target = $region5
    $region4: #{tpu_custom_call.1} parent=1 // pred_region
      %s27 = ssub.s32 4096, 4096
      %28 = vsyncadd [#allocation4], %s27
      %s29 = sshll.u32 [#allocation3], 4
      %s30 = int_to_ptr.vmem [resolvable:$true] %s29
      %35 = dma.hbm_to_vmem [thread:$0]  %s0, 4096, %s30, [#allocation4], 128, 128, 8
    $region5: #{tpu_custom_call.1} parent=1 // pred_fallthru
      _
    // Predicated region
    $region6: #{tpu_custom_call.1} parent=1 // pred_check
      _
    $region7: #{tpu_custom_call.1} parent=1 // pred_check_branch
      %37 = sbr.rel (0) target = $region9
    $region8: #{tpu_custom_call.1} parent=1 // pred_region
      %s39 = ssub.s32 4096, 4096
      %40 = vsyncadd [#allocation7], %s39
      %s41 = sshll.u32 [#allocation6], 4
      %s42 = int_to_ptr.vmem [resolvable:$true] %s41
      %47 = dma.hbm_to_vmem [thread:$0]  %s1, 4096, %s42, [#allocation7], 128, 128, 8
    $region9: #{tpu_custom_call.1} parent=1 // pred_fallthru
      _
    // Predicated region
    $region10: #{tpu_custom_call.1} parent=1 // pred_check
      _
    $region11: #{tpu_custom_call.1} parent=1 // pred_check_branch
      %49 = sbr.rel (0) target = $region13
    $region12: #{tpu_custom_call.1} parent=1 // pred_region
      %s51 = ssub.s32 6144, 6144
      %52 = vsyncadd [#allocation7], %s51
      %s53 = sshll.u32 [#allocation8], 4
      %s54 = int_to_ptr.vmem [resolvable:$true] %s53
      %59 = dma.hbm_to_vmem [thread:$0]  %s2, 6144, %s54, [#allocation7], 192, 192, 12
    $region13: #{tpu_custom_call.1} parent=1 // pred_fallthru
      _
    // Predicated region
    $region14: #{tpu_custom_call.1} parent=1 // pred_check
      _
    $region15: #{tpu_custom_call.1} parent=1 // pred_check_branch
      %61 = sbr.rel (0) target = $region17
    $region16: #{tpu_custom_call.1} parent=1 // pred_region
      %s63 = ssub.s32 6144, 6144
      %64 = vsyncadd [#allocation10], %s63
      %s65 = sshll.u32 [#allocation9], 4
      %s66 = int_to_ptr.vmem [resolvable:$true] %s65
      %71 = dma.hbm_to_vmem [thread:$0]  %s3, 6144, %s66, [#allocation10], 192, 192, 12
    $region17: #{tpu_custom_call.1} parent=1 // pred_fallthru
      _
    // Predicated region
    $region18: #{tpu_custom_call.1} parent=1 // pred_check
      _
    $region19: #{tpu_custom_call.1} parent=1 // pred_check_branch
      %73 = sbr.rel (0) target = $region21
    $region20: #{tpu_custom_call.1} parent=1 // pred_region
      _
    $region21: #{tpu_custom_call.1} parent=1 // pred_fallthru
      _
    // Predicated region
    $region22: #{tpu_custom_call.1} parent=1 // pred_check
      _
    $region23: #{tpu_custom_call.1} parent=1 // pred_check_branch
      %75 = sbr.rel (0) target = $region25
    $region24: #{tpu_custom_call.1} parent=1 // pred_region
      _
    $region25: #{tpu_custom_call.1} parent=1 // pred_fallthru
      _
    // Predicated region
    $region26: #{tpu_custom_call.1} parent=1 // pred_check
      _
    $region27: #{tpu_custom_call.1} parent=1 // pred_check_branch
      %77 = sbr.rel (0) target = $region29
    $region28: #{tpu_custom_call.1} parent=1 // pred_region
      _
    $region29: #{tpu_custom_call.1} parent=1 // pred_fallthru
      _
    // Predicated region
    $region30: #{tpu_custom_call.1} parent=1 // pred_check
      _
    $region31: #{tpu_custom_call.1} parent=1 // pred_check_branch
      %79 = sbr.rel (0) target = $region33
    $region32: #{tpu_custom_call.1} parent=1 // pred_region
      _
    $region33: #{tpu_custom_call.1} parent=1 // pred_fallthru
      _
    // Predicated region
    $region34: #{tpu_custom_call.1} parent=1 // pred_check
      _
    $region35: #{tpu_custom_call.1} parent=1 // pred_check_branch
      %81 = sbr.rel (0) target = $region37
    $region36: #{tpu_custom_call.1} parent=1 // pred_region
      %s83 = ssub.s32 2048, 2048
      %84 = vsyncadd [#allocation10], %s83
      %s85 = sshll.u32 [#allocation11], 4
      %s86 = int_to_ptr.vmem [resolvable:$true] %s85
      %91 = dma.hbm_to_vmem [thread:$0]  %s8, 2048, %s86, [#allocation10], 64, 64, 4
    $region37: #{tpu_custom_call.1} parent=1 // pred_fallthru
      _
    // Predicated region
    $region38: #{tpu_custom_call.1} parent=1 // pred_check
      _
    $region39: #{tpu_custom_call.1} parent=1 // pred_check_branch
      %93 = sbr.rel (0) target = $region41
    $region40: #{tpu_custom_call.1} parent=1 // pred_region
      _
    $region41: #{tpu_custom_call.1} parent=1 // pred_fallthru
      _
    // Predicated region
    $region42: #{tpu_custom_call.1} parent=1 // pred_check
      _
    $region43: #{tpu_custom_call.1} parent=1 // pred_check_branch
      %95 = sbr.rel (0) target = $region45
    $region44: #{tpu_custom_call.1} parent=1 // pred_region
      %s97 = ssub.s32 1024, 1024
      %98 = vsyncadd [#allocation13], %s97
      %s99 = sshll.u32 [#allocation12], 4
      %s100 = int_to_ptr.vmem [resolvable:$true] %s99
      %105 = dma.hbm_to_vmem [thread:$0]  %s10, 1024, %s100, [#allocation13], 64, 64, 4
    $region45: #{tpu_custom_call.1} parent=1 // pred_fallthru
      _
    // Predicated region
    $region46: #{tpu_custom_call.1} parent=1 // pred_check
      _
    $region47: #{tpu_custom_call.1} parent=1 // pred_check_branch
      %107 = sbr.rel (0) target = $region49
    $region48: #{tpu_custom_call.1} parent=1 // pred_region
      _
    $region49: #{tpu_custom_call.1} parent=1 // pred_fallthru
      _
    // Predicated region
    $region50: #{tpu_custom_call.1} parent=1 // pred_check
      _
    $region51: #{tpu_custom_call.1} parent=1 // pred_check_branch
      %109 = sbr.rel (0) target = $region53
    $region52: #{tpu_custom_call.1} parent=1 // pred_region
      %110 = dma.done [#allocation4], 4096
    $region53: #{tpu_custom_call.1} parent=1 // pred_fallthru
      _
    // Predicated region
    $region54: #{tpu_custom_call.1} parent=1 // pred_check
      _
    $region55: #{tpu_custom_call.1} parent=1 // pred_check_branch
      %112 = sbr.rel (0) target = $region57
    $region56: #{tpu_custom_call.1} parent=1 // pred_region
      %113 = dma.done [#allocation7], 4096
    $region57: #{tpu_custom_call.1} parent=1 // pred_fallthru
      _
    // Predicated region
    $region58: #{tpu_custom_call.1} parent=1 // pred_check
      _
    $region59: #{tpu_custom_call.1} parent=1 // pred_check_branch
      %115 = sbr.rel (0) target = $region61
    $region60: #{tpu_custom_call.1} parent=1 // pred_region
      %116 = dma.done [#allocation7], 6144
    $region61: #{tpu_custom_call.1} parent=1 // pred_fallthru
      _
    // Predicated region
    $region62: #{tpu_custom_call.1} parent=1 // pred_check
      _
    $region63: #{tpu_custom_call.1} parent=1 // pred_check_branch
      %118 = sbr.rel (0) target = $region65
    $region64: #{tpu_custom_call.1} parent=1 // pred_region
      %119 = dma.done [#allocation10], 6144
    $region65: #{tpu_custom_call.1} parent=1 // pred_fallthru
      _
    // Predicated region
    $region66: #{tpu_custom_call.1} parent=1 // pred_check
      _
    $region67: #{tpu_custom_call.1} parent=1 // pred_check_branch
      %121 = sbr.rel (0) target = $region69
    $region68: #{tpu_custom_call.1} parent=1 // pred_region
      %122 = dma.done [#allocation10], 2048
    $region69: #{tpu_custom_call.1} parent=1 // pred_fallthru
      _
    // Predicated region
    $region70: #{tpu_custom_call.1} parent=1 // pred_check
      _
    $region71: #{tpu_custom_call.1} parent=1 // pred_check_branch
      %124 = sbr.rel (0) target = $region73
    $region72: #{tpu_custom_call.1} parent=1 // pred_region
      %125 = dma.done [#allocation13], 1024
    $region73: #{tpu_custom_call.1} parent=1 // pred_fallthru
      _
    %v127 = vld [vmem:[#allocation3] sm:$0xff]
    %v128 = vld [vmem:[#allocation3 + $0x8] sm:$0xff]
    %v129 = vld [vmem:[#allocation3 + $0x10] sm:$0xff]
    %v130 = vld [vmem:[#allocation3 + $0x18] sm:$0xff]
    %v131 = vld [vmem:[#allocation3 + $0x20] sm:$0xff]
    %v132 = vld [vmem:[#allocation3 + $0x28] sm:$0xff]
    %v133 = vld [vmem:[#allocation3 + $0x30] sm:$0xff]
    %v134 = vld [vmem:[#allocation3 + $0x38] sm:$0xff]
    %v135 = vld [vmem:[#allocation3 + $0x40] sm:$0xff]
    %v136 = vld [vmem:[#allocation3 + $0x48] sm:$0xff]
    %v137 = vld [vmem:[#allocation3 + $0x50] sm:$0xff]
    %v138 = vld [vmem:[#allocation3 + $0x58] sm:$0xff]
    %v139 = vld [vmem:[#allocation3 + $0x60] sm:$0xff]
    %v140 = vld [vmem:[#allocation3 + $0x68] sm:$0xff]
    %v141 = vld [vmem:[#allocation3 + $0x70] sm:$0xff]
    %v142 = vld [vmem:[#allocation3 + $0x78] sm:$0xff]
    %v143 = vld [vmem:[#allocation3 + $0x80] sm:$0xff]
    %v144 = vld [vmem:[#allocation3 + $0x88] sm:$0xff]
    %v145 = vld [vmem:[#allocation3 + $0x90] sm:$0xff]
    %v146 = vld [vmem:[#allocation3 + $0x98] sm:$0xff]
    %v147 = vld [vmem:[#allocation3 + $0xa0] sm:$0xff]
    %v148 = vld [vmem:[#allocation3 + $0xa8] sm:$0xff]
    %v149 = vld [vmem:[#allocation3 + $0xb0] sm:$0xff]
    %v150 = vld [vmem:[#allocation3 + $0xb8] sm:$0xff]
    %v151 = vld [vmem:[#allocation3 + $0xc0] sm:$0xff]
    %v152 = vld [vmem:[#allocation3 + $0xc8] sm:$0xff]
    %v153 = vld [vmem:[#allocation3 + $0xd0] sm:$0xff]
    %v154 = vld [vmem:[#allocation3 + $0xd8] sm:$0xff]
    %v155 = vld [vmem:[#allocation3 + $0xe0] sm:$0xff]
    %v156 = vld [vmem:[#allocation3 + $0xe8] sm:$0xff]
    %v157 = vld [vmem:[#allocation3 + $0xf0] sm:$0xff]
    %v158 = vld [vmem:[#allocation3 + $0xf8] sm:$0xff]
    %v159 = vld [vmem:[#allocation6] sm:$0xff]
    %v160 = vld [vmem:[#allocation6 + $0x8] sm:$0xff]
    %v161 = vld [vmem:[#allocation6 + $0x10] sm:$0xff]
    %v162 = vld [vmem:[#allocation6 + $0x18] sm:$0xff]
    %v163 = vld [vmem:[#allocation6 + $0x20] sm:$0xff]
    %v164 = vld [vmem:[#allocation6 + $0x28] sm:$0xff]
    %v165 = vld [vmem:[#allocation6 + $0x30] sm:$0xff]
    %v166 = vld [vmem:[#allocation6 + $0x38] sm:$0xff]
    %v167 = vld [vmem:[#allocation6 + $0x40] sm:$0xff]
    %v168 = vld [vmem:[#allocation6 + $0x48] sm:$0xff]
    %v169 = vld [vmem:[#allocation6 + $0x50] sm:$0xff]
    %v170 = vld [vmem:[#allocation6 + $0x58] sm:$0xff]
    %v171 = vld [vmem:[#allocation6 + $0x60] sm:$0xff]
    %v172 = vld [vmem:[#allocation6 + $0x68] sm:$0xff]
    %v173 = vld [vmem:[#allocation6 + $0x70] sm:$0xff]
    %v174 = vld [vmem:[#allocation6 + $0x78] sm:$0xff]
    %v175 = vld [vmem:[#allocation6 + $0x80] sm:$0xff]
    %v176 = vld [vmem:[#allocation6 + $0x88] sm:$0xff]
    %v177 = vld [vmem:[#allocation6 + $0x90] sm:$0xff]
    %v178 = vld [vmem:[#allocation6 + $0x98] sm:$0xff]
    %v179 = vld [vmem:[#allocation6 + $0xa0] sm:$0xff]
    %v180 = vld [vmem:[#allocation6 + $0xa8] sm:$0xff]
    %v181 = vld [vmem:[#allocation6 + $0xb0] sm:$0xff]
    %v182 = vld [vmem:[#allocation6 + $0xb8] sm:$0xff]
    %v183 = vld [vmem:[#allocation6 + $0xc0] sm:$0xff]
    %v184 = vld [vmem:[#allocation6 + $0xc8] sm:$0xff]
    %v185 = vld [vmem:[#allocation6 + $0xd0] sm:$0xff]
    %v186 = vld [vmem:[#allocation6 + $0xd8] sm:$0xff]
    %v187 = vld [vmem:[#allocation6 + $0xe0] sm:$0xff]
    %v188 = vld [vmem:[#allocation6 + $0xe8] sm:$0xff]
    %v189 = vld [vmem:[#allocation6 + $0xf0] sm:$0xff]
    %v190 = vld [vmem:[#allocation6 + $0xf8] sm:$0xff]
    %v191 = vld [vmem:[#allocation8] sm:$0xff]
    %v192 = vld [vmem:[#allocation8 + $0x8] sm:$0xf]
    %v193 = vld [vmem:[#allocation8 + $0xc] sm:$0xff]
    %v194 = vld [vmem:[#allocation8 + $0x14] sm:$0xf]
    %v195 = vld [vmem:[#allocation8 + $0x18] sm:$0xff]
    %v196 = vld [vmem:[#allocation8 + $0x20] sm:$0xf]
    %v197 = vld [vmem:[#allocation8 + $0x24] sm:$0xff]
    %v198 = vld [vmem:[#allocation8 + $0x2c] sm:$0xf]
    %v199 = vld [vmem:[#allocation8 + $0x30] sm:$0xff]
    %v200 = vld [vmem:[#allocation8 + $0x38] sm:$0xf]
    %v201 = vld [vmem:[#allocation8 + $0x3c] sm:$0xff]
    %v202 = vld [vmem:[#allocation8 + $0x44] sm:$0xf]
    %v203 = vld [vmem:[#allocation8 + $0x48] sm:$0xff]
    %v204 = vld [vmem:[#allocation8 + $0x50] sm:$0xf]
    %v205 = vld [vmem:[#allocation8 + $0x54] sm:$0xff]
    %v206 = vld [vmem:[#allocation8 + $0x5c] sm:$0xf]
    %v207 = vld [vmem:[#allocation8 + $0x60] sm:$0xff]
    %v208 = vld [vmem:[#allocation8 + $0x68] sm:$0xf]
    %v209 = vld [vmem:[#allocation8 + $0x6c] sm:$0xff]
    %v210 = vld [vmem:[#allocation8 + $0x74] sm:$0xf]
    %v211 = vld [vmem:[#allocation8 + $0x78] sm:$0xff]
    %v212 = vld [vmem:[#allocation8 + $0x80] sm:$0xf]
    %v213 = vld [vmem:[#allocation8 + $0x84] sm:$0xff]
    %v214 = vld [vmem:[#allocation8 + $0x8c] sm:$0xf]
    %v215 = vld [vmem:[#allocation8 + $0x90] sm:$0xff]
    %v216 = vld [vmem:[#allocation8 + $0x98] sm:$0xf]
    %v217 = vld [vmem:[#allocation8 + $0x9c] sm:$0xff]
    %v218 = vld [vmem:[#allocation8 + $0xa4] sm:$0xf]
    %v219 = vld [vmem:[#allocation8 + $0xa8] sm:$0xff]
    %v220 = vld [vmem:[#allocation8 + $0xb0] sm:$0xf]
    %v221 = vld [vmem:[#allocation8 + $0xb4] sm:$0xff]
    %v222 = vld [vmem:[#allocation8 + $0xbc] sm:$0xf]
    %v223 = vld [vmem:[#allocation8 + $0xc0] sm:$0xff]
    %v224 = vld [vmem:[#allocation8 + $0xc8] sm:$0xf]
    %v225 = vld [vmem:[#allocation8 + $0xcc] sm:$0xff]
    %v226 = vld [vmem:[#allocation8 + $0xd4] sm:$0xf]
    %v227 = vld [vmem:[#allocation8 + $0xd8] sm:$0xff]
    %v228 = vld [vmem:[#allocation8 + $0xe0] sm:$0xf]
    %v229 = vld [vmem:[#allocation8 + $0xe4] sm:$0xff]
    %v230 = vld [vmem:[#allocation8 + $0xec] sm:$0xf]
    %v231 = vld [vmem:[#allocation8 + $0xf0] sm:$0xff]
    %v232 = vld [vmem:[#allocation8 + $0xf8] sm:$0xf]
    %v233 = vld [vmem:[#allocation8 + $0xfc] sm:$0xff]
    %v234 = vld [vmem:[#allocation8 + $0x104] sm:$0xf]
    %v235 = vld [vmem:[#allocation8 + $0x108] sm:$0xff]
    %v236 = vld [vmem:[#allocation8 + $0x110] sm:$0xf]
    %v237 = vld [vmem:[#allocation8 + $0x114] sm:$0xff]
    %v238 = vld [vmem:[#allocation8 + $0x11c] sm:$0xf]
    %v239 = vld [vmem:[#allocation8 + $0x120] sm:$0xff]
    %v240 = vld [vmem:[#allocation8 + $0x128] sm:$0xf]
    %v241 = vld [vmem:[#allocation8 + $0x12c] sm:$0xff]
    %v242 = vld [vmem:[#allocation8 + $0x134] sm:$0xf]
    %v243 = vld [vmem:[#allocation8 + $0x138] sm:$0xff]
    %v244 = vld [vmem:[#allocation8 + $0x140] sm:$0xf]
    %v245 = vld [vmem:[#allocation8 + $0x144] sm:$0xff]
    %v246 = vld [vmem:[#allocation8 + $0x14c] sm:$0xf]
    %v247 = vld [vmem:[#allocation8 + $0x150] sm:$0xff]
    %v248 = vld [vmem:[#allocation8 + $0x158] sm:$0xf]
    %v249 = vld [vmem:[#allocation8 + $0x15c] sm:$0xff]
    %v250 = vld [vmem:[#allocation8 + $0x164] sm:$0xf]
    %v251 = vld [vmem:[#allocation8 + $0x168] sm:$0xff]
    %v252 = vld [vmem:[#allocation8 + $0x170] sm:$0xf]
    %v253 = vld [vmem:[#allocation8 + $0x174] sm:$0xff]
    %v254 = vld [vmem:[#allocation8 + $0x17c] sm:$0xf]
    %v287 = vunpack.c.l.b16 %v127
    %v288 = vunpack.c.h.b16 %v127
    %v289 = vunpack.c.l.b16 %v128
    %v290 = vunpack.c.h.b16 %v128
    %v291 = vunpack.c.l.b16 %v129
    %v292 = vunpack.c.h.b16 %v129
    %v293 = vunpack.c.l.b16 %v130
    %v294 = vunpack.c.h.b16 %v130
    %v295 = vunpack.c.l.b16 %v131
    %v296 = vunpack.c.h.b16 %v131
    %v297 = vunpack.c.l.b16 %v132
    %v298 = vunpack.c.h.b16 %v132
    %v299 = vunpack.c.l.b16 %v133
    %v300 = vunpack.c.h.b16 %v133
    %v301 = vunpack.c.l.b16 %v134
    %v302 = vunpack.c.h.b16 %v134
    %v303 = vunpack.c.l.b16 %v135
    %v304 = vunpack.c.h.b16 %v135
    %v305 = vunpack.c.l.b16 %v136
    %v306 = vunpack.c.h.b16 %v136
    %v307 = vunpack.c.l.b16 %v137
    %v308 = vunpack.c.h.b16 %v137
    %v309 = vunpack.c.l.b16 %v138
    %v310 = vunpack.c.h.b16 %v138
    %v311 = vunpack.c.l.b16 %v139
    %v312 = vunpack.c.h.b16 %v139
    %v313 = vunpack.c.l.b16 %v140
    %v314 = vunpack.c.h.b16 %v140
    %v315 = vunpack.c.l.b16 %v141
    %v316 = vunpack.c.h.b16 %v141
    %v317 = vunpack.c.l.b16 %v142
    %v318 = vunpack.c.h.b16 %v142
    %v319 = vunpack.c.l.b16 %v143
    %v320 = vunpack.c.h.b16 %v143
    %v321 = vunpack.c.l.b16 %v144
    %v322 = vunpack.c.h.b16 %v144
    %v323 = vunpack.c.l.b16 %v145
    %v324 = vunpack.c.h.b16 %v145
    %v325 = vunpack.c.l.b16 %v146
    %v326 = vunpack.c.h.b16 %v146
    %v327 = vunpack.c.l.b16 %v147
    %v328 = vunpack.c.h.b16 %v147
    %v329 = vunpack.c.l.b16 %v148
    %v330 = vunpack.c.h.b16 %v148
    %v331 = vunpack.c.l.b16 %v149
    %v332 = vunpack.c.h.b16 %v149
    %v333 = vunpack.c.l.b16 %v150
    %v334 = vunpack.c.h.b16 %v150
    %v335 = vunpack.c.l.b16 %v151
    %v336 = vunpack.c.h.b16 %v151
    %v337 = vunpack.c.l.b16 %v152
    %v338 = vunpack.c.h.b16 %v152
    %v339 = vunpack.c.l.b16 %v153
    %v340 = vunpack.c.h.b16 %v153
    %v341 = vunpack.c.l.b16 %v154
    %v342 = vunpack.c.h.b16 %v154
    %v343 = vunpack.c.l.b16 %v155
    %v344 = vunpack.c.h.b16 %v155
    %v345 = vunpack.c.l.b16 %v156
    %v346 = vunpack.c.h.b16 %v156
    %v347 = vunpack.c.l.b16 %v157
    %v348 = vunpack.c.h.b16 %v157
    %v349 = vunpack.c.l.b16 %v158
    %v350 = vunpack.c.h.b16 %v158
    %v351 = vpack.c.b16 %v289, %v287
    %v352 = vpack.c.b16 %v290, %v288
    %v353 = vpack.c.b16 %v293, %v291
    %v354 = vpack.c.b16 %v294, %v292
    %v355 = vpack.c.b16 %v297, %v295
    %v356 = vpack.c.b16 %v298, %v296
    %v357 = vpack.c.b16 %v301, %v299
    %v358 = vpack.c.b16 %v302, %v300
    %v359 = vpack.c.b16 %v305, %v303
    %v360 = vpack.c.b16 %v306, %v304
    %v361 = vpack.c.b16 %v309, %v307
    %v362 = vpack.c.b16 %v310, %v308
    %v363 = vpack.c.b16 %v313, %v311
    %v364 = vpack.c.b16 %v314, %v312
    %v365 = vpack.c.b16 %v317, %v315
    %v366 = vpack.c.b16 %v318, %v316
    %v367 = vpack.c.b16 %v321, %v319
    %v368 = vpack.c.b16 %v322, %v320
    %v369 = vpack.c.b16 %v325, %v323
    %v370 = vpack.c.b16 %v326, %v324
    %v371 = vpack.c.b16 %v329, %v327
    %v372 = vpack.c.b16 %v330, %v328
    %v373 = vpack.c.b16 %v333, %v331
    %v374 = vpack.c.b16 %v334, %v332
    %v375 = vpack.c.b16 %v337, %v335
    %v376 = vpack.c.b16 %v338, %v336
    %v377 = vpack.c.b16 %v341, %v339
    %v378 = vpack.c.b16 %v342, %v340
    %v379 = vpack.c.b16 %v345, %v343
    %v380 = vpack.c.b16 %v346, %v344
    %v381 = vpack.c.b16 %v349, %v347
    %v382 = vpack.c.b16 %v350, %v348
    %v479 = vunpack.c.l.b16 %v191
    %v480 = vunpack.c.h.b16 %v191
    %v481 = vunpack.c.l.b16 %v192
    %v482 = vunpack.c.l.b16 %v193
    %v483 = vunpack.c.h.b16 %v193
    %v484 = vunpack.c.l.b16 %v194
    %v485 = vunpack.c.l.b16 %v195
    %v486 = vunpack.c.h.b16 %v195
    %v487 = vunpack.c.l.b16 %v196
    %v488 = vunpack.c.l.b16 %v197
    %v489 = vunpack.c.h.b16 %v197
    %v490 = vunpack.c.l.b16 %v198
    %v491 = vunpack.c.l.b16 %v199
    %v492 = vunpack.c.h.b16 %v199
    %v493 = vunpack.c.l.b16 %v200
    %v494 = vunpack.c.l.b16 %v201
    %v495 = vunpack.c.h.b16 %v201
    %v496 = vunpack.c.l.b16 %v202
    %v497 = vunpack.c.l.b16 %v203
    %v498 = vunpack.c.h.b16 %v203
    %v499 = vunpack.c.l.b16 %v204
    %v500 = vunpack.c.l.b16 %v205
    %v501 = vunpack.c.h.b16 %v205
    %v502 = vunpack.c.l.b16 %v206
    %v503 = vunpack.c.l.b16 %v207
    %v504 = vunpack.c.h.b16 %v207
    %v505 = vunpack.c.l.b16 %v208
    %v506 = vunpack.c.l.b16 %v209
    %v507 = vunpack.c.h.b16 %v209
    %v508 = vunpack.c.l.b16 %v210
    %v509 = vunpack.c.l.b16 %v211
    %v510 = vunpack.c.h.b16 %v211
    %v511 = vunpack.c.l.b16 %v212
    %v512 = vunpack.c.l.b16 %v213
    %v513 = vunpack.c.h.b16 %v213
    %v514 = vunpack.c.l.b16 %v214
    %v515 = vunpack.c.l.b16 %v215
    %v516 = vunpack.c.h.b16 %v215
    %v517 = vunpack.c.l.b16 %v216
    %v518 = vunpack.c.l.b16 %v217
    %v519 = vunpack.c.h.b16 %v217
    %v520 = vunpack.c.l.b16 %v218
    %v521 = vunpack.c.l.b16 %v219
    %v522 = vunpack.c.h.b16 %v219
    %v523 = vunpack.c.l.b16 %v220
    %v524 = vunpack.c.l.b16 %v221
    %v525 = vunpack.c.h.b16 %v221
    %v526 = vunpack.c.l.b16 %v222
    %v527 = vunpack.c.l.b16 %v223
    %v528 = vunpack.c.h.b16 %v223
    %v529 = vunpack.c.l.b16 %v224
    %v530 = vunpack.c.l.b16 %v225
    %v531 = vunpack.c.h.b16 %v225
    %v532 = vunpack.c.l.b16 %v226
    %v533 = vunpack.c.l.b16 %v227
    %v534 = vunpack.c.h.b16 %v227
    %v535 = vunpack.c.l.b16 %v228
    %v536 = vunpack.c.l.b16 %v229
    %v537 = vunpack.c.h.b16 %v229
    %v538 = vunpack.c.l.b16 %v230
    %v539 = vunpack.c.l.b16 %v231
    %v540 = vunpack.c.h.b16 %v231
    %v541 = vunpack.c.l.b16 %v232
    %v542 = vunpack.c.l.b16 %v233
    %v543 = vunpack.c.h.b16 %v233
    %v544 = vunpack.c.l.b16 %v234
    %v545 = vunpack.c.l.b16 %v235
    %v546 = vunpack.c.h.b16 %v235
    %v547 = vunpack.c.l.b16 %v236
    %v548 = vunpack.c.l.b16 %v237
    %v549 = vunpack.c.h.b16 %v237
    %v550 = vunpack.c.l.b16 %v238
    %v551 = vunpack.c.l.b16 %v239
    %v552 = vunpack.c.h.b16 %v239
    %v553 = vunpack.c.l.b16 %v240
    %v554 = vunpack.c.l.b16 %v241
    %v555 = vunpack.c.h.b16 %v241
    %v556 = vunpack.c.l.b16 %v242
    %v557 = vunpack.c.l.b16 %v243
    %v558 = vunpack.c.h.b16 %v243
    %v559 = vunpack.c.l.b16 %v244
    %v560 = vunpack.c.l.b16 %v245
    %v561 = vunpack.c.h.b16 %v245
    %v562 = vunpack.c.l.b16 %v246
    %v563 = vunpack.c.l.b16 %v247
    %v564 = vunpack.c.h.b16 %v247
    %v565 = vunpack.c.l.b16 %v248
    %v566 = vunpack.c.l.b16 %v249
    %v567 = vunpack.c.h.b16 %v249
    %v568 = vunpack.c.l.b16 %v250
    %v569 = vunpack.c.l.b16 %v251
    %v570 = vunpack.c.h.b16 %v251
    %v571 = vunpack.c.l.b16 %v252
    %v572 = vunpack.c.l.b16 %v253
    %v573 = vunpack.c.h.b16 %v253
    %v574 = vunpack.c.l.b16 %v254
    %v575 = vpack.c.b16 %v482, %v479
    %v576 = vpack.c.b16 %v483, %v480
    %v577 = vpack.c.b16 %v484, %v481
    %v578 = vpack.c.b16 %v488, %v485
    %v579 = vpack.c.b16 %v489, %v486
    %v580 = vpack.c.b16 %v490, %v487
    %v581 = vpack.c.b16 %v494, %v491
    %v582 = vpack.c.b16 %v495, %v492
    %v583 = vpack.c.b16 %v496, %v493
    %v584 = vpack.c.b16 %v500, %v497
    %v585 = vpack.c.b16 %v501, %v498
    %v586 = vpack.c.b16 %v502, %v499
    %v587 = vpack.c.b16 %v506, %v503
    %v588 = vpack.c.b16 %v507, %v504
    %v589 = vpack.c.b16 %v508, %v505
    %v590 = vpack.c.b16 %v512, %v509
    %v591 = vpack.c.b16 %v513, %v510
    %v592 = vpack.c.b16 %v514, %v511
    %v593 = vpack.c.b16 %v518, %v515
    %v594 = vpack.c.b16 %v519, %v516
    %v595 = vpack.c.b16 %v520, %v517
    %v596 = vpack.c.b16 %v524, %v521
    %v597 = vpack.c.b16 %v525, %v522
    %v598 = vpack.c.b16 %v526, %v523
    %v599 = vpack.c.b16 %v530, %v527
    %v600 = vpack.c.b16 %v531, %v528
    %v601 = vpack.c.b16 %v532, %v529
    %v602 = vpack.c.b16 %v536, %v533
    %v603 = vpack.c.b16 %v537, %v534
    %v604 = vpack.c.b16 %v538, %v535
    %v605 = vpack.c.b16 %v542, %v539
    %v606 = vpack.c.b16 %v543, %v540
    %v607 = vpack.c.b16 %v544, %v541
    %v608 = vpack.c.b16 %v548, %v545
    %v609 = vpack.c.b16 %v549, %v546
    %v610 = vpack.c.b16 %v550, %v547
    %v611 = vpack.c.b16 %v554, %v551
    %v612 = vpack.c.b16 %v555, %v552
    %v613 = vpack.c.b16 %v556, %v553
    %v614 = vpack.c.b16 %v560, %v557
    %v615 = vpack.c.b16 %v561, %v558
    %v616 = vpack.c.b16 %v562, %v559
    %v617 = vpack.c.b16 %v566, %v563
    %v618 = vpack.c.b16 %v567, %v564
    %v619 = vpack.c.b16 %v568, %v565
    %v620 = vpack.c.b16 %v572, %v569
    %v621 = vpack.c.b16 %v573, %v570
    %v622 = vpack.c.b16 %v574, %v571
    %671 = vmatprep.subr.bf16.mxu0 %v597
    %672 = vmatpush1.bf16.msra.mxu0 %v596
    %673 = vmatprep.subr.bf16.mxu0 %v594
    %674 = vmatpush1.bf16.msra.mxu0 %v593
    %675 = vmatprep.subr.bf16.mxu0 %v591
    %676 = vmatpush1.bf16.msra.mxu0 %v590
    %677 = vmatprep.subr.bf16.mxu0 %v588
    %678 = vmatpush1.bf16.msra.mxu0 %v587
    %679 = vmatprep.subr.bf16.mxu0 %v585
    %680 = vmatpush1.bf16.msra.mxu0 %v584
    %681 = vmatprep.subr.bf16.mxu0 %v582
    %682 = vmatpush1.bf16.msra.mxu0 %v581
    %683 = vmatprep.subr.bf16.mxu0 %v579
    %684 = vmatpush1.bf16.msra.mxu0 %v578
    %685 = vmatprep.subr.bf16.mxu0 %v576
    %686 = vmatpush1.bf16.msra.mxu0 %v575
    %687 = vmatprep.subr.bf16.mxu0 %v621
    %688 = vmatpush2.bf16.msra.mxu0 %v620
    %689 = vmatprep.subr.bf16.mxu0 %v618
    %690 = vmatpush2.bf16.msra.mxu0 %v617
    %691 = vmatprep.subr.bf16.mxu0 %v615
    %692 = vmatpush2.bf16.msra.mxu0 %v614
    %693 = vmatprep.subr.bf16.mxu0 %v612
    %694 = vmatpush2.bf16.msra.mxu0 %v611
    %695 = vmatprep.subr.bf16.mxu0 %v609
    %696 = vmatpush2.bf16.msra.mxu0 %v608
    %697 = vmatprep.subr.bf16.mxu0 %v606
    %698 = vmatpush2.bf16.msra.mxu0 %v605
    %699 = vmatprep.subr.bf16.mxu0 %v603
    %700 = vmatpush2.bf16.msra.mxu0 %v602
    %701 = vmatprep.subr.bf16.mxu0 %v600
    %702 = vmatpush2.bf16.msra.mxu0 %v599
    %703 = vmatprep.mubr.bf16.mxu0 %v352
    %704 = vmatmul.mubr.bf16.gmra.mxu0 %v351
    %v705 = vpop.f32.mrf.mxu0
    %v706 = vadd.f32 0.0, %v705
    %v707 = vpop.f32.mrf.mxu0
    %v708 = vadd.f32 0.0, %v707
    %v709 = vpop.f32.mrf.mxu0
    %v710 = vadd.f32 0.0, %v709
    %v711 = vpop.f32.mrf.mxu0
    %v712 = vadd.f32 0.0, %v711
    %713 = vmatprep.mubr.bf16.mxu0 %v354
    %714 = vmatmul.mubr.bf16.gmra.mxu0 %v353
    %v715 = vpop.f32.mrf.mxu0
    %v716 = vadd.f32 0.0, %v715
    %v717 = vpop.f32.mrf.mxu0
    %v718 = vadd.f32 0.0, %v717
    %v719 = vpop.f32.mrf.mxu0
    %v720 = vadd.f32 0.0, %v719
    %v721 = vpop.f32.mrf.mxu0
    %v722 = vadd.f32 0.0, %v721
    %723 = vmatprep.mubr.bf16.mxu0 %v356
    %724 = vmatmul.mubr.bf16.gmra.mxu0 %v355
    %v725 = vpop.f32.mrf.mxu0
    %v726 = vadd.f32 0.0, %v725
    %v727 = vpop.f32.mrf.mxu0
    %v728 = vadd.f32 0.0, %v727
    %v729 = vpop.f32.mrf.mxu0
    %v730 = vadd.f32 0.0, %v729
    %v731 = vpop.f32.mrf.mxu0
    %v732 = vadd.f32 0.0, %v731
    %733 = vmatprep.mubr.bf16.mxu0 %v358
    %734 = vmatmul.mubr.bf16.gmra.mxu0 %v357
    %v735 = vpop.f32.mrf.mxu0
    %v736 = vadd.f32 0.0, %v735
    %v737 = vpop.f32.mrf.mxu0
    %v738 = vadd.f32 0.0, %v737
    %v739 = vpop.f32.mrf.mxu0
    %v740 = vadd.f32 0.0, %v739
    %v741 = vpop.f32.mrf.mxu0
    %v742 = vadd.f32 0.0, %v741
    %743 = vmatprep.mubr.bf16.mxu0 %v360
    %744 = vmatmul.mubr.bf16.gmra.mxu0 %v359
    %v745 = vpop.f32.mrf.mxu0
    %v746 = vadd.f32 0.0, %v745
    %v747 = vpop.f32.mrf.mxu0
    %v748 = vadd.f32 0.0, %v747
    %v749 = vpop.f32.mrf.mxu0
    %v750 = vadd.f32 0.0, %v749
    %v751 = vpop.f32.mrf.mxu0
    %v752 = vadd.f32 0.0, %v751
    %753 = vmatprep.mubr.bf16.mxu0 %v362
    %754 = vmatmul.mubr.bf16.gmra.mxu0 %v361
    %v755 = vpop.f32.mrf.mxu0
    %v756 = vadd.f32 0.0, %v755
    %v757 = vpop.f32.mrf.mxu0
    %v758 = vadd.f32 0.0, %v757
    %v759 = vpop.f32.mrf.mxu0
    %v760 = vadd.f32 0.0, %v759
    %v761 = vpop.f32.mrf.mxu0
    %v762 = vadd.f32 0.0, %v761
    %763 = vmatprep.mubr.bf16.mxu0 %v364
    %764 = vmatmul.mubr.bf16.gmra.mxu0 %v363
    %v765 = vpop.f32.mrf.mxu0
    %v766 = vadd.f32 0.0, %v765
    %v767 = vpop.f32.mrf.mxu0
    %v768 = vadd.f32 0.0, %v767
    %v769 = vpop.f32.mrf.mxu0
    %v770 = vadd.f32 0.0, %v769
    %v771 = vpop.f32.mrf.mxu0
    %v772 = vadd.f32 0.0, %v771
    %773 = vmatprep.mubr.bf16.mxu0 %v366
    %774 = vmatmul.mubr.bf16.gmra.mxu0 %v365
    %v775 = vpop.f32.mrf.mxu0
    %v776 = vadd.f32 0.0, %v775
    %v777 = vpop.f32.mrf.mxu0
    %v778 = vadd.f32 0.0, %v777
    %v779 = vpop.f32.mrf.mxu0
    %v780 = vadd.f32 0.0, %v779
    %v781 = vpop.f32.mrf.mxu0
    %v782 = vadd.f32 0.0, %v781
    %783 = vmatprep.mubr.bf16.mxu0 %v368
    %784 = vmatmul.mubr.bf16.gmra.mxu0 %v367
    %v785 = vpop.f32.mrf.mxu0
    %v786 = vadd.f32 0.0, %v785
    %v787 = vpop.f32.mrf.mxu0
    %v788 = vadd.f32 0.0, %v787
    %v789 = vpop.f32.mrf.mxu0
    %v790 = vadd.f32 0.0, %v789
    %v791 = vpop.f32.mrf.mxu0
    %v792 = vadd.f32 0.0, %v791
    %793 = vmatprep.mubr.bf16.mxu0 %v370
    %794 = vmatmul.mubr.bf16.gmra.mxu0 %v369
    %v795 = vpop.f32.mrf.mxu0
    %v796 = vadd.f32 0.0, %v795
    %v797 = vpop.f32.mrf.mxu0
    %v798 = vadd.f32 0.0, %v797
    %v799 = vpop.f32.mrf.mxu0
    %v800 = vadd.f32 0.0, %v799
    %v801 = vpop.f32.mrf.mxu0
    %v802 = vadd.f32 0.0, %v801
    %803 = vmatprep.mubr.bf16.mxu0 %v372
    %804 = vmatmul.mubr.bf16.gmra.mxu0 %v371
    %v805 = vpop.f32.mrf.mxu0
    %v806 = vadd.f32 0.0, %v805
    %v807 = vpop.f32.mrf.mxu0
    %v808 = vadd.f32 0.0, %v807
    %v809 = vpop.f32.mrf.mxu0
    %v810 = vadd.f32 0.0, %v809
    %v811 = vpop.f32.mrf.mxu0
    %v812 = vadd.f32 0.0, %v811
    %813 = vmatprep.mubr.bf16.mxu0 %v374
    %814 = vmatmul.mubr.bf16.gmra.mxu0 %v373
    %v815 = vpop.f32.mrf.mxu0
    %v816 = vadd.f32 0.0, %v815
    %v817 = vpop.f32.mrf.mxu0
    %v818 = vadd.f32 0.0, %v817
    %v819 = vpop.f32.mrf.mxu0
    %v820 = vadd.f32 0.0, %v819
    %v821 = vpop.f32.mrf.mxu0
    %v822 = vadd.f32 0.0, %v821
    %823 = vmatprep.mubr.bf16.mxu0 %v376
    %824 = vmatmul.mubr.bf16.gmra.mxu0 %v375
    %v825 = vpop.f32.mrf.mxu0
    %v826 = vadd.f32 0.0, %v825
    %v827 = vpop.f32.mrf.mxu0
    %v828 = vadd.f32 0.0, %v827
    %v829 = vpop.f32.mrf.mxu0
    %v830 = vadd.f32 0.0, %v829
    %v831 = vpop.f32.mrf.mxu0
    %v832 = vadd.f32 0.0, %v831
    %833 = vmatprep.mubr.bf16.mxu0 %v378
    %834 = vmatmul.mubr.bf16.gmra.mxu0 %v377
    %v835 = vpop.f32.mrf.mxu0
    %v836 = vadd.f32 0.0, %v835
    %v837 = vpop.f32.mrf.mxu0
    %v838 = vadd.f32 0.0, %v837
    %v839 = vpop.f32.mrf.mxu0
    %v840 = vadd.f32 0.0, %v839
    %v841 = vpop.f32.mrf.mxu0
    %v842 = vadd.f32 0.0, %v841
    %843 = vmatprep.mubr.bf16.mxu0 %v380
    %844 = vmatmul.mubr.bf16.gmra.mxu0 %v379
    %v845 = vpop.f32.mrf.mxu0
    %v846 = vadd.f32 0.0, %v845
    %v847 = vpop.f32.mrf.mxu0
    %v848 = vadd.f32 0.0, %v847
    %v849 = vpop.f32.mrf.mxu0
    %v850 = vadd.f32 0.0, %v849
    %v851 = vpop.f32.mrf.mxu0
    %v852 = vadd.f32 0.0, %v851
    %853 = vmatprep.mubr.bf16.mxu0 %v382
    %854 = vmatmul.mubr.bf16.gmra.mxu0 %v381
    %v855 = vpop.f32.mrf.mxu0
    %v856 = vadd.f32 0.0, %v855
    %v857 = vpop.f32.mrf.mxu0
    %v858 = vadd.f32 0.0, %v857
    %v859 = vpop.f32.mrf.mxu0
    %v860 = vadd.f32 0.0, %v859
    %v861 = vpop.f32.mrf.mxu0
    %v862 = vadd.f32 0.0, %v861
    %863 = vdwg.mxu0
    %864 = vmatprep.subr.bf16.mxu0 0
    %865 = vmatpush1.bf16.msra.mxu0 %v598
    %866 = vmatprep.subr.bf16.mxu0 0
    %867 = vmatpush1.bf16.msra.mxu0 %v595
    %868 = vmatprep.subr.bf16.mxu0 0
    %869 = vmatpush1.bf16.msra.mxu0 %v592
    %870 = vmatprep.subr.bf16.mxu0 0
    %871 = vmatpush1.bf16.msra.mxu0 %v589
    %872 = vmatprep.subr.bf16.mxu0 0
    %873 = vmatpush1.bf16.msra.mxu0 %v586
    %874 = vmatprep.subr.bf16.mxu0 0
    %875 = vmatpush1.bf16.msra.mxu0 %v583
    %876 = vmatprep.subr.bf16.mxu0 0
    %877 = vmatpush1.bf16.msra.mxu0 %v580
    %878 = vmatprep.subr.bf16.mxu0 0
    %879 = vmatpush1.bf16.msra.mxu0 %v577
    %880 = vmatprep.subr.bf16.mxu0 0
    %881 = vmatpush2.bf16.msra.mxu0 %v622
    %882 = vmatprep.subr.bf16.mxu0 0
    %883 = vmatpush2.bf16.msra.mxu0 %v619
    %884 = vmatprep.subr.bf16.mxu0 0
    %885 = vmatpush2.bf16.msra.mxu0 %v616
    %886 = vmatprep.subr.bf16.mxu0 0
    %887 = vmatpush2.bf16.msra.mxu0 %v613
    %888 = vmatprep.subr.bf16.mxu0 0
    %889 = vmatpush2.bf16.msra.mxu0 %v610
    %890 = vmatprep.subr.bf16.mxu0 0
    %891 = vmatpush2.bf16.msra.mxu0 %v607
    %892 = vmatprep.subr.bf16.mxu0 0
    %893 = vmatpush2.bf16.msra.mxu0 %v604
    %894 = vmatprep.subr.bf16.mxu0 0
    %895 = vmatpush2.bf16.msra.mxu0 %v601
    %896 = vmatprep.mubr.bf16.mxu0 %v352
    %897 = vmatmul.mubr.bf16.gmra.mxu0 %v351
    %v898 = vpop.f32.mrf.mxu0
    %v899 = vadd.f32 0.0, %v898
    %v900 = vpop.f32.mrf.mxu0
    %v901 = vpop.f32.mrf.mxu0
    %v902 = vadd.f32 0.0, %v901
    %v903 = vpop.f32.mrf.mxu0
    %904 = vmatprep.mubr.bf16.mxu0 %v354
    %905 = vmatmul.mubr.bf16.gmra.mxu0 %v353
    %v906 = vpop.f32.mrf.mxu0
    %v907 = vadd.f32 0.0, %v906
    %v908 = vpop.f32.mrf.mxu0
    %v909 = vpop.f32.mrf.mxu0
    %v910 = vadd.f32 0.0, %v909
    %v911 = vpop.f32.mrf.mxu0
    %912 = vmatprep.mubr.bf16.mxu0 %v356
    %913 = vmatmul.mubr.bf16.gmra.mxu0 %v355
    %v914 = vpop.f32.mrf.mxu0
    %v915 = vadd.f32 0.0, %v914
    %v916 = vpop.f32.mrf.mxu0
    %v917 = vpop.f32.mrf.mxu0
    %v918 = vadd.f32 0.0, %v917
    %v919 = vpop.f32.mrf.mxu0
    %920 = vmatprep.mubr.bf16.mxu0 %v358
    %921 = vmatmul.mubr.bf16.gmra.mxu0 %v357
    %v922 = vpop.f32.mrf.mxu0
    %v923 = vadd.f32 0.0, %v922
    %v924 = vpop.f32.mrf.mxu0
    %v925 = vpop.f32.mrf.mxu0
    %v926 = vadd.f32 0.0, %v925
    %v927 = vpop.f32.mrf.mxu0
    %928 = vmatprep.mubr.bf16.mxu0 %v360
    %929 = vmatmul.mubr.bf16.gmra.mxu0 %v359
    %v930 = vpop.f32.mrf.mxu0
    %v931 = vadd.f32 0.0, %v930
    %v932 = vpop.f32.mrf.mxu0
    %v933 = vpop.f32.mrf.mxu0
    %v934 = vadd.f32 0.0, %v933
    %v935 = vpop.f32.mrf.mxu0
    %936 = vmatprep.mubr.bf16.mxu0 %v362
    %937 = vmatmul.mubr.bf16.gmra.mxu0 %v361
    %v938 = vpop.f32.mrf.mxu0
    %v939 = vadd.f32 0.0, %v938
    %v940 = vpop.f32.mrf.mxu0
    %v941 = vpop.f32.mrf.mxu0
    %v942 = vadd.f32 0.0, %v941
    %v943 = vpop.f32.mrf.mxu0
    %944 = vmatprep.mubr.bf16.mxu0 %v364
    %945 = vmatmul.mubr.bf16.gmra.mxu0 %v363
    %v946 = vpop.f32.mrf.mxu0
    %v947 = vadd.f32 0.0, %v946
    %v948 = vpop.f32.mrf.mxu0
    %v949 = vpop.f32.mrf.mxu0
    %v950 = vadd.f32 0.0, %v949
    %v951 = vpop.f32.mrf.mxu0
    %952 = vmatprep.mubr.bf16.mxu0 %v366
    %953 = vmatmul.mubr.bf16.gmra.mxu0 %v365
    %v954 = vpop.f32.mrf.mxu0
    %v955 = vadd.f32 0.0, %v954
    %v956 = vpop.f32.mrf.mxu0
    %v957 = vpop.f32.mrf.mxu0
    %v958 = vadd.f32 0.0, %v957
    %v959 = vpop.f32.mrf.mxu0
    %960 = vmatprep.mubr.bf16.mxu0 %v368
    %961 = vmatmul.mubr.bf16.gmra.mxu0 %v367
    %v962 = vpop.f32.mrf.mxu0
    %v963 = vadd.f32 0.0, %v962
    %v964 = vpop.f32.mrf.mxu0
    %v965 = vpop.f32.mrf.mxu0
    %v966 = vadd.f32 0.0, %v965
    %v967 = vpop.f32.mrf.mxu0
    %968 = vmatprep.mubr.bf16.mxu0 %v370
    %969 = vmatmul.mubr.bf16.gmra.mxu0 %v369
    %v970 = vpop.f32.mrf.mxu0
    %v971 = vadd.f32 0.0, %v970
    %v972 = vpop.f32.mrf.mxu0
    %v973 = vpop.f32.mrf.mxu0
    %v974 = vadd.f32 0.0, %v973
    %v975 = vpop.f32.mrf.mxu0
    %976 = vmatprep.mubr.bf16.mxu0 %v372
    %977 = vmatmul.mubr.bf16.gmra.mxu0 %v371
    %v978 = vpop.f32.mrf.mxu0
    %v979 = vadd.f32 0.0, %v978
    %v980 = vpop.f32.mrf.mxu0
    %v981 = vpop.f32.mrf.mxu0
    %v982 = vadd.f32 0.0, %v981
    %v983 = vpop.f32.mrf.mxu0
    %984 = vmatprep.mubr.bf16.mxu0 %v374
    %985 = vmatmul.mubr.bf16.gmra.mxu0 %v373
    %v986 = vpop.f32.mrf.mxu0
    %v987 = vadd.f32 0.0, %v986
    %v988 = vpop.f32.mrf.mxu0
    %v989 = vpop.f32.mrf.mxu0
    %v990 = vadd.f32 0.0, %v989
    %v991 = vpop.f32.mrf.mxu0
    %992 = vmatprep.mubr.bf16.mxu0 %v376
    %993 = vmatmul.mubr.bf16.gmra.mxu0 %v375
    %v994 = vpop.f32.mrf.mxu0
    %v995 = vadd.f32 0.0, %v994
    %v996 = vpop.f32.mrf.mxu0
    %v997 = vpop.f32.mrf.mxu0
    %v998 = vadd.f32 0.0, %v997
    %v999 = vpop.f32.mrf.mxu0
    %1000 = vmatprep.mubr.bf16.mxu0 %v378
    %1001 = vmatmul.mubr.bf16.gmra.mxu0 %v377
    %v1002 = vpop.f32.mrf.mxu0
    %v1003 = vadd.f32 0.0, %v1002
    %v1004 = vpop.f32.mrf.mxu0
    %v1005 = vpop.f32.mrf.mxu0
    %v1006 = vadd.f32 0.0, %v1005
    %v1007 = vpop.f32.mrf.mxu0
    %1008 = vmatprep.mubr.bf16.mxu0 %v380
    %1009 = vmatmul.mubr.bf16.gmra.mxu0 %v379
    %v1010 = vpop.f32.mrf.mxu0
    %v1011 = vadd.f32 0.0, %v1010
    %v1012 = vpop.f32.mrf.mxu0
    %v1013 = vpop.f32.mrf.mxu0
    %v1014 = vadd.f32 0.0, %v1013
    %v1015 = vpop.f32.mrf.mxu0
    %1016 = vmatprep.mubr.bf16.mxu0 %v382
    %1017 = vmatmul.mubr.bf16.gmra.mxu0 %v381
    %v1018 = vpop.f32.mrf.mxu0
    %v1019 = vadd.f32 0.0, %v1018
    %v1020 = vpop.f32.mrf.mxu0
    %v1021 = vpop.f32.mrf.mxu0
    %v1022 = vadd.f32 0.0, %v1021
    %v1023 = vpop.f32.mrf.mxu0
    %1024 = vdwg.mxu0
    %v1025 = vld [vmem:[#allocation9] sm:$0xff]
    %v1026 = vld [vmem:[#allocation9 + $0x8] sm:$0xf]
    %v1027 = vld [vmem:[#allocation9 + $0xc] sm:$0xff]
    %v1028 = vld [vmem:[#allocation9 + $0x14] sm:$0xf]
    %v1029 = vld [vmem:[#allocation9 + $0x18] sm:$0xff]
    %v1030 = vld [vmem:[#allocation9 + $0x20] sm:$0xf]
    %v1031 = vld [vmem:[#allocation9 + $0x24] sm:$0xff]
    %v1032 = vld [vmem:[#allocation9 + $0x2c] sm:$0xf]
    %v1033 = vld [vmem:[#allocation9 + $0x30] sm:$0xff]
    %v1034 = vld [vmem:[#allocation9 + $0x38] sm:$0xf]
    %v1035 = vld [vmem:[#allocation9 + $0x3c] sm:$0xff]
    %v1036 = vld [vmem:[#allocation9 + $0x44] sm:$0xf]
    %v1037 = vld [vmem:[#allocation9 + $0x48] sm:$0xff]
    %v1038 = vld [vmem:[#allocation9 + $0x50] sm:$0xf]
    %v1039 = vld [vmem:[#allocation9 + $0x54] sm:$0xff]
    %v1040 = vld [vmem:[#allocation9 + $0x5c] sm:$0xf]
    %v1041 = vld [vmem:[#allocation9 + $0x60] sm:$0xff]
    %v1042 = vld [vmem:[#allocation9 + $0x68] sm:$0xf]
    %v1043 = vld [vmem:[#allocation9 + $0x6c] sm:$0xff]
    %v1044 = vld [vmem:[#allocation9 + $0x74] sm:$0xf]
    %v1045 = vld [vmem:[#allocation9 + $0x78] sm:$0xff]
    %v1046 = vld [vmem:[#allocation9 + $0x80] sm:$0xf]
    %v1047 = vld [vmem:[#allocation9 + $0x84] sm:$0xff]
    %v1048 = vld [vmem:[#allocation9 + $0x8c] sm:$0xf]
    %v1049 = vld [vmem:[#allocation9 + $0x90] sm:$0xff]
    %v1050 = vld [vmem:[#allocation9 + $0x98] sm:$0xf]
    %v1051 = vld [vmem:[#allocation9 + $0x9c] sm:$0xff]
    %v1052 = vld [vmem:[#allocation9 + $0xa4] sm:$0xf]
    %v1053 = vld [vmem:[#allocation9 + $0xa8] sm:$0xff]
    %v1054 = vld [vmem:[#allocation9 + $0xb0] sm:$0xf]
    %v1055 = vld [vmem:[#allocation9 + $0xb4] sm:$0xff]
    %v1056 = vld [vmem:[#allocation9 + $0xbc] sm:$0xf]
    %v1057 = vld [vmem:[#allocation9 + $0xc0] sm:$0xff]
    %v1058 = vld [vmem:[#allocation9 + $0xc8] sm:$0xf]
    %v1059 = vld [vmem:[#allocation9 + $0xcc] sm:$0xff]
    %v1060 = vld [vmem:[#allocation9 + $0xd4] sm:$0xf]
    %v1061 = vld [vmem:[#allocation9 + $0xd8] sm:$0xff]
    %v1062 = vld [vmem:[#allocation9 + $0xe0] sm:$0xf]
    %v1063 = vld [vmem:[#allocation9 + $0xe4] sm:$0xff]
    %v1064 = vld [vmem:[#allocation9 + $0xec] sm:$0xf]
    %v1065 = vld [vmem:[#allocation9 + $0xf0] sm:$0xff]
    %v1066 = vld [vmem:[#allocation9 + $0xf8] sm:$0xf]
    %v1067 = vld [vmem:[#allocation9 + $0xfc] sm:$0xff]
    %v1068 = vld [vmem:[#allocation9 + $0x104] sm:$0xf]
    %v1069 = vld [vmem:[#allocation9 + $0x108] sm:$0xff]
    %v1070 = vld [vmem:[#allocation9 + $0x110] sm:$0xf]
    %v1071 = vld [vmem:[#allocation9 + $0x114] sm:$0xff]
    %v1072 = vld [vmem:[#allocation9 + $0x11c] sm:$0xf]
    %v1073 = vld [vmem:[#allocation9 + $0x120] sm:$0xff]
    %v1074 = vld [vmem:[#allocation9 + $0x128] sm:$0xf]
    %v1075 = vld [vmem:[#allocation9 + $0x12c] sm:$0xff]
    %v1076 = vld [vmem:[#allocation9 + $0x134] sm:$0xf]
    %v1077 = vld [vmem:[#allocation9 + $0x138] sm:$0xff]
    %v1078 = vld [vmem:[#allocation9 + $0x140] sm:$0xf]
    %v1079 = vld [vmem:[#allocation9 + $0x144] sm:$0xff]
    %v1080 = vld [vmem:[#allocation9 + $0x14c] sm:$0xf]
    %v1081 = vld [vmem:[#allocation9 + $0x150] sm:$0xff]
    %v1082 = vld [vmem:[#allocation9 + $0x158] sm:$0xf]
    %v1083 = vld [vmem:[#allocation9 + $0x15c] sm:$0xff]
    %v1084 = vld [vmem:[#allocation9 + $0x164] sm:$0xf]
    %v1085 = vld [vmem:[#allocation9 + $0x168] sm:$0xff]
    %v1086 = vld [vmem:[#allocation9 + $0x170] sm:$0xf]
    %v1087 = vld [vmem:[#allocation9 + $0x174] sm:$0xff]
    %v1088 = vld [vmem:[#allocation9 + $0x17c] sm:$0xf]
    %v1121 = vunpack.c.l.b16 %v159
    %v1122 = vunpack.c.h.b16 %v159
    %v1123 = vunpack.c.l.b16 %v160
    %v1124 = vunpack.c.h.b16 %v160
    %v1125 = vunpack.c.l.b16 %v161
    %v1126 = vunpack.c.h.b16 %v161
    %v1127 = vunpack.c.l.b16 %v162
    %v1128 = vunpack.c.h.b16 %v162
    %v1129 = vunpack.c.l.b16 %v163
    %v1130 = vunpack.c.h.b16 %v163
    %v1131 = vunpack.c.l.b16 %v164
    %v1132 = vunpack.c.h.b16 %v164
    %v1133 = vunpack.c.l.b16 %v165
    %v1134 = vunpack.c.h.b16 %v165
    %v1135 = vunpack.c.l.b16 %v166
    %v1136 = vunpack.c.h.b16 %v166
    %v1137 = vunpack.c.l.b16 %v167
    %v1138 = vunpack.c.h.b16 %v167
    %v1139 = vunpack.c.l.b16 %v168
    %v1140 = vunpack.c.h.b16 %v168
    %v1141 = vunpack.c.l.b16 %v169
    %v1142 = vunpack.c.h.b16 %v169
    %v1143 = vunpack.c.l.b16 %v170
    %v1144 = vunpack.c.h.b16 %v170
    %v1145 = vunpack.c.l.b16 %v171
    %v1146 = vunpack.c.h.b16 %v171
    %v1147 = vunpack.c.l.b16 %v172
    %v1148 = vunpack.c.h.b16 %v172
    %v1149 = vunpack.c.l.b16 %v173
    %v1150 = vunpack.c.h.b16 %v173
    %v1151 = vunpack.c.l.b16 %v174
    %v1152 = vunpack.c.h.b16 %v174
    %v1153 = vunpack.c.l.b16 %v175
    %v1154 = vunpack.c.h.b16 %v175
    %v1155 = vunpack.c.l.b16 %v176
    %v1156 = vunpack.c.h.b16 %v176
    %v1157 = vunpack.c.l.b16 %v177
    %v1158 = vunpack.c.h.b16 %v177
    %v1159 = vunpack.c.l.b16 %v178
    %v1160 = vunpack.c.h.b16 %v178
    %v1161 = vunpack.c.l.b16 %v179
    %v1162 = vunpack.c.h.b16 %v179
    %v1163 = vunpack.c.l.b16 %v180
    %v1164 = vunpack.c.h.b16 %v180
    %v1165 = vunpack.c.l.b16 %v181
    %v1166 = vunpack.c.h.b16 %v181
    %v1167 = vunpack.c.l.b16 %v182
    %v1168 = vunpack.c.h.b16 %v182
    %v1169 = vunpack.c.l.b16 %v183
    %v1170 = vunpack.c.h.b16 %v183
    %v1171 = vunpack.c.l.b16 %v184
    %v1172 = vunpack.c.h.b16 %v184
    %v1173 = vunpack.c.l.b16 %v185
    %v1174 = vunpack.c.h.b16 %v185
    %v1175 = vunpack.c.l.b16 %v186
    %v1176 = vunpack.c.h.b16 %v186
    %v1177 = vunpack.c.l.b16 %v187
    %v1178 = vunpack.c.h.b16 %v187
    %v1179 = vunpack.c.l.b16 %v188
    %v1180 = vunpack.c.h.b16 %v188
    %v1181 = vunpack.c.l.b16 %v189
    %v1182 = vunpack.c.h.b16 %v189
    %v1183 = vunpack.c.l.b16 %v190
    %v1184 = vunpack.c.h.b16 %v190
    %v1185 = vpack.c.b16 %v1123, %v1121
    %v1186 = vpack.c.b16 %v1124, %v1122
    %v1187 = vpack.c.b16 %v1127, %v1125
    %v1188 = vpack.c.b16 %v1128, %v1126
    %v1189 = vpack.c.b16 %v1131, %v1129
    %v1190 = vpack.c.b16 %v1132, %v1130
    %v1191 = vpack.c.b16 %v1135, %v1133
    %v1192 = vpack.c.b16 %v1136, %v1134
    %v1193 = vpack.c.b16 %v1139, %v1137
    %v1194 = vpack.c.b16 %v1140, %v1138
    %v1195 = vpack.c.b16 %v1143, %v1141
    %v1196 = vpack.c.b16 %v1144, %v1142
    %v1197 = vpack.c.b16 %v1147, %v1145
    %v1198 = vpack.c.b16 %v1148, %v1146
    %v1199 = vpack.c.b16 %v1151, %v1149
    %v1200 = vpack.c.b16 %v1152, %v1150
    %v1201 = vpack.c.b16 %v1155, %v1153
    %v1202 = vpack.c.b16 %v1156, %v1154
    %v1203 = vpack.c.b16 %v1159, %v1157
    %v1204 = vpack.c.b16 %v1160, %v1158
    %v1205 = vpack.c.b16 %v1163, %v1161
    %v1206 = vpack.c.b16 %v1164, %v1162
    %v1207 = vpack.c.b16 %v1167, %v1165
    %v1208 = vpack.c.b16 %v1168, %v1166
    %v1209 = vpack.c.b16 %v1171, %v1169
    %v1210 = vpack.c.b16 %v1172, %v1170
    %v1211 = vpack.c.b16 %v1175, %v1173
    %v1212 = vpack.c.b16 %v1176, %v1174
    %v1213 = vpack.c.b16 %v1179, %v1177
    %v1214 = vpack.c.b16 %v1180, %v1178
    %v1215 = vpack.c.b16 %v1183, %v1181
    %v1216 = vpack.c.b16 %v1184, %v1182
    %v1313 = vunpack.c.l.b16 %v1025
    %v1314 = vunpack.c.h.b16 %v1025
    %v1315 = vunpack.c.l.b16 %v1026
    %v1316 = vunpack.c.l.b16 %v1027
    %v1317 = vunpack.c.h.b16 %v1027
    %v1318 = vunpack.c.l.b16 %v1028
    %v1319 = vunpack.c.l.b16 %v1029
    %v1320 = vunpack.c.h.b16 %v1029
    %v1321 = vunpack.c.l.b16 %v1030
    %v1322 = vunpack.c.l.b16 %v1031
    %v1323 = vunpack.c.h.b16 %v1031
    %v1324 = vunpack.c.l.b16 %v1032
    %v1325 = vunpack.c.l.b16 %v1033
    %v1326 = vunpack.c.h.b16 %v1033
    %v1327 = vunpack.c.l.b16 %v1034
    %v1328 = vunpack.c.l.b16 %v1035
    %v1329 = vunpack.c.h.b16 %v1035
    %v1330 = vunpack.c.l.b16 %v1036
    %v1331 = vunpack.c.l.b16 %v1037
    %v1332 = vunpack.c.h.b16 %v1037
    %v1333 = vunpack.c.l.b16 %v1038
    %v1334 = vunpack.c.l.b16 %v1039
    %v1335 = vunpack.c.h.b16 %v1039
    %v1336 = vunpack.c.l.b16 %v1040
    %v1337 = vunpack.c.l.b16 %v1041
    %v1338 = vunpack.c.h.b16 %v1041
    %v1339 = vunpack.c.l.b16 %v1042
    %v1340 = vunpack.c.l.b16 %v1043
    %v1341 = vunpack.c.h.b16 %v1043
    %v1342 = vunpack.c.l.b16 %v1044
    %v1343 = vunpack.c.l.b16 %v1045
    %v1344 = vunpack.c.h.b16 %v1045
    %v1345 = vunpack.c.l.b16 %v1046
    %v1346 = vunpack.c.l.b16 %v1047
    %v1347 = vunpack.c.h.b16 %v1047
    %v1348 = vunpack.c.l.b16 %v1048
    %v1349 = vunpack.c.l.b16 %v1049
    %v1350 = vunpack.c.h.b16 %v1049
    %v1351 = vunpack.c.l.b16 %v1050
    %v1352 = vunpack.c.l.b16 %v1051
    %v1353 = vunpack.c.h.b16 %v1051
    %v1354 = vunpack.c.l.b16 %v1052
    %v1355 = vunpack.c.l.b16 %v1053
    %v1356 = vunpack.c.h.b16 %v1053
    %v1357 = vunpack.c.l.b16 %v1054
    %v1358 = vunpack.c.l.b16 %v1055
    %v1359 = vunpack.c.h.b16 %v1055
    %v1360 = vunpack.c.l.b16 %v1056
    %v1361 = vunpack.c.l.b16 %v1057
    %v1362 = vunpack.c.h.b16 %v1057
    %v1363 = vunpack.c.l.b16 %v1058
    %v1364 = vunpack.c.l.b16 %v1059
    %v1365 = vunpack.c.h.b16 %v1059
    %v1366 = vunpack.c.l.b16 %v1060
    %v1367 = vunpack.c.l.b16 %v1061
    %v1368 = vunpack.c.h.b16 %v1061
    %v1369 = vunpack.c.l.b16 %v1062
    %v1370 = vunpack.c.l.b16 %v1063
    %v1371 = vunpack.c.h.b16 %v1063
    %v1372 = vunpack.c.l.b16 %v1064
    %v1373 = vunpack.c.l.b16 %v1065
    %v1374 = vunpack.c.h.b16 %v1065
    %v1375 = vunpack.c.l.b16 %v1066
    %v1376 = vunpack.c.l.b16 %v1067
    %v1377 = vunpack.c.h.b16 %v1067
    %v1378 = vunpack.c.l.b16 %v1068
    %v1379 = vunpack.c.l.b16 %v1069
    %v1380 = vunpack.c.h.b16 %v1069
    %v1381 = vunpack.c.l.b16 %v1070
    %v1382 = vunpack.c.l.b16 %v1071
    %v1383 = vunpack.c.h.b16 %v1071
    %v1384 = vunpack.c.l.b16 %v1072
    %v1385 = vunpack.c.l.b16 %v1073
    %v1386 = vunpack.c.h.b16 %v1073
    %v1387 = vunpack.c.l.b16 %v1074
    %v1388 = vunpack.c.l.b16 %v1075
    %v1389 = vunpack.c.h.b16 %v1075
    %v1390 = vunpack.c.l.b16 %v1076
    %v1391 = vunpack.c.l.b16 %v1077
    %v1392 = vunpack.c.h.b16 %v1077
    %v1393 = vunpack.c.l.b16 %v1078
    %v1394 = vunpack.c.l.b16 %v1079
    %v1395 = vunpack.c.h.b16 %v1079
    %v1396 = vunpack.c.l.b16 %v1080
    %v1397 = vunpack.c.l.b16 %v1081
    %v1398 = vunpack.c.h.b16 %v1081
    %v1399 = vunpack.c.l.b16 %v1082
    %v1400 = vunpack.c.l.b16 %v1083
    %v1401 = vunpack.c.h.b16 %v1083
    %v1402 = vunpack.c.l.b16 %v1084
    %v1403 = vunpack.c.l.b16 %v1085
    %v1404 = vunpack.c.h.b16 %v1085
    %v1405 = vunpack.c.l.b16 %v1086
    %v1406 = vunpack.c.l.b16 %v1087
    %v1407 = vunpack.c.h.b16 %v1087
    %v1408 = vunpack.c.l.b16 %v1088
    %v1409 = vpack.c.b16 %v1316, %v1313
    %v1410 = vpack.c.b16 %v1317, %v1314
    %v1411 = vpack.c.b16 %v1318, %v1315
    %v1412 = vpack.c.b16 %v1322, %v1319
    %v1413 = vpack.c.b16 %v1323, %v1320
    %v1414 = vpack.c.b16 %v1324, %v1321
    %v1415 = vpack.c.b16 %v1328, %v1325
    %v1416 = vpack.c.b16 %v1329, %v1326
    %v1417 = vpack.c.b16 %v1330, %v1327
    %v1418 = vpack.c.b16 %v1334, %v1331
    %v1419 = vpack.c.b16 %v1335, %v1332
    %v1420 = vpack.c.b16 %v1336, %v1333
    %v1421 = vpack.c.b16 %v1340, %v1337
    %v1422 = vpack.c.b16 %v1341, %v1338
    %v1423 = vpack.c.b16 %v1342, %v1339
    %v1424 = vpack.c.b16 %v1346, %v1343
    %v1425 = vpack.c.b16 %v1347, %v1344
    %v1426 = vpack.c.b16 %v1348, %v1345
    %v1427 = vpack.c.b16 %v1352, %v1349
    %v1428 = vpack.c.b16 %v1353, %v1350
    %v1429 = vpack.c.b16 %v1354, %v1351
    %v1430 = vpack.c.b16 %v1358, %v1355
    %v1431 = vpack.c.b16 %v1359, %v1356
    %v1432 = vpack.c.b16 %v1360, %v1357
    %v1433 = vpack.c.b16 %v1364, %v1361
    %v1434 = vpack.c.b16 %v1365, %v1362
    %v1435 = vpack.c.b16 %v1366, %v1363
    %v1436 = vpack.c.b16 %v1370, %v1367
    %v1437 = vpack.c.b16 %v1371, %v1368
    %v1438 = vpack.c.b16 %v1372, %v1369
    %v1439 = vpack.c.b16 %v1376, %v1373
    %v1440 = vpack.c.b16 %v1377, %v1374
    %v1441 = vpack.c.b16 %v1378, %v1375
    %v1442 = vpack.c.b16 %v1382, %v1379
    %v1443 = vpack.c.b16 %v1383, %v1380
    %v1444 = vpack.c.b16 %v1384, %v1381
    %v1445 = vpack.c.b16 %v1388, %v1385
    %v1446 = vpack.c.b16 %v1389, %v1386
    %v1447 = vpack.c.b16 %v1390, %v1387
    %v1448 = vpack.c.b16 %v1394, %v1391
    %v1449 = vpack.c.b16 %v1395, %v1392
    %v1450 = vpack.c.b16 %v1396, %v1393
    %v1451 = vpack.c.b16 %v1400, %v1397
    %v1452 = vpack.c.b16 %v1401, %v1398
    %v1453 = vpack.c.b16 %v1402, %v1399
    %v1454 = vpack.c.b16 %v1406, %v1403
    %v1455 = vpack.c.b16 %v1407, %v1404
    %v1456 = vpack.c.b16 %v1408, %v1405
    %1505 = vmatprep.subr.bf16.mxu0 %v1431
    %1506 = vmatpush1.bf16.msra.mxu0 %v1430
    %1507 = vmatprep.subr.bf16.mxu0 %v1428
    %1508 = vmatpush1.bf16.msra.mxu0 %v1427
    %1509 = vmatprep.subr.bf16.mxu0 %v1425
    %1510 = vmatpush1.bf16.msra.mxu0 %v1424
    %1511 = vmatprep.subr.bf16.mxu0 %v1422
    %1512 = vmatpush1.bf16.msra.mxu0 %v1421
    %1513 = vmatprep.subr.bf16.mxu0 %v1419
    %1514 = vmatpush1.bf16.msra.mxu0 %v1418
    %1515 = vmatprep.subr.bf16.mxu0 %v1416
    %1516 = vmatpush1.bf16.msra.mxu0 %v1415
    %1517 = vmatprep.subr.bf16.mxu0 %v1413
    %1518 = vmatpush1.bf16.msra.mxu0 %v1412
    %1519 = vmatprep.subr.bf16.mxu0 %v1410
    %1520 = vmatpush1.bf16.msra.mxu0 %v1409
    %1521 = vmatprep.subr.bf16.mxu0 %v1455
    %1522 = vmatpush2.bf16.msra.mxu0 %v1454
    %1523 = vmatprep.subr.bf16.mxu0 %v1452
    %1524 = vmatpush2.bf16.msra.mxu0 %v1451
    %1525 = vmatprep.subr.bf16.mxu0 %v1449
    %1526 = vmatpush2.bf16.msra.mxu0 %v1448
    %1527 = vmatprep.subr.bf16.mxu0 %v1446
    %1528 = vmatpush2.bf16.msra.mxu0 %v1445
    %1529 = vmatprep.subr.bf16.mxu0 %v1443
    %1530 = vmatpush2.bf16.msra.mxu0 %v1442
    %1531 = vmatprep.subr.bf16.mxu0 %v1440
    %1532 = vmatpush2.bf16.msra.mxu0 %v1439
    %1533 = vmatprep.subr.bf16.mxu0 %v1437
    %1534 = vmatpush2.bf16.msra.mxu0 %v1436
    %1535 = vmatprep.subr.bf16.mxu0 %v1434
    %1536 = vmatpush2.bf16.msra.mxu0 %v1433
    %1537 = vmatprep.mubr.bf16.mxu0 %v1186
    %1538 = vmatmul.mubr.bf16.gmra.mxu0 %v1185
    %v1539 = vpop.f32.mrf.mxu0
    %v1540 = vadd.f32 0.0, %v1539
    %v1541 = vpop.f32.mrf.mxu0
    %v1542 = vadd.f32 0.0, %v1541
    %v1543 = vpop.f32.mrf.mxu0
    %v1544 = vadd.f32 0.0, %v1543
    %v1545 = vpop.f32.mrf.mxu0
    %v1546 = vadd.f32 0.0, %v1545
    %1547 = vmatprep.mubr.bf16.mxu0 %v1188
    %1548 = vmatmul.mubr.bf16.gmra.mxu0 %v1187
    %v1549 = vpop.f32.mrf.mxu0
    %v1550 = vadd.f32 0.0, %v1549
    %v1551 = vpop.f32.mrf.mxu0
    %v1552 = vadd.f32 0.0, %v1551
    %v1553 = vpop.f32.mrf.mxu0
    %v1554 = vadd.f32 0.0, %v1553
    %v1555 = vpop.f32.mrf.mxu0
    %v1556 = vadd.f32 0.0, %v1555
    %1557 = vmatprep.mubr.bf16.mxu0 %v1190
    %1558 = vmatmul.mubr.bf16.gmra.mxu0 %v1189
    %v1559 = vpop.f32.mrf.mxu0
    %v1560 = vadd.f32 0.0, %v1559
    %v1561 = vpop.f32.mrf.mxu0
    %v1562 = vadd.f32 0.0, %v1561
    %v1563 = vpop.f32.mrf.mxu0
    %v1564 = vadd.f32 0.0, %v1563
    %v1565 = vpop.f32.mrf.mxu0
    %v1566 = vadd.f32 0.0, %v1565
    %1567 = vmatprep.mubr.bf16.mxu0 %v1192
    %1568 = vmatmul.mubr.bf16.gmra.mxu0 %v1191
    %v1569 = vpop.f32.mrf.mxu0
    %v1570 = vadd.f32 0.0, %v1569
    %v1571 = vpop.f32.mrf.mxu0
    %v1572 = vadd.f32 0.0, %v1571
    %v1573 = vpop.f32.mrf.mxu0
    %v1574 = vadd.f32 0.0, %v1573
    %v1575 = vpop.f32.mrf.mxu0
    %v1576 = vadd.f32 0.0, %v1575
    %1577 = vmatprep.mubr.bf16.mxu0 %v1194
    %1578 = vmatmul.mubr.bf16.gmra.mxu0 %v1193
    %v1579 = vpop.f32.mrf.mxu0
    %v1580 = vadd.f32 0.0, %v1579
    %v1581 = vpop.f32.mrf.mxu0
    %v1582 = vadd.f32 0.0, %v1581
    %v1583 = vpop.f32.mrf.mxu0
    %v1584 = vadd.f32 0.0, %v1583
    %v1585 = vpop.f32.mrf.mxu0
    %v1586 = vadd.f32 0.0, %v1585
    %1587 = vmatprep.mubr.bf16.mxu0 %v1196
    %1588 = vmatmul.mubr.bf16.gmra.mxu0 %v1195
    %v1589 = vpop.f32.mrf.mxu0
    %v1590 = vadd.f32 0.0, %v1589
    %v1591 = vpop.f32.mrf.mxu0
    %v1592 = vadd.f32 0.0, %v1591
    %v1593 = vpop.f32.mrf.mxu0
    %v1594 = vadd.f32 0.0, %v1593
    %v1595 = vpop.f32.mrf.mxu0
    %v1596 = vadd.f32 0.0, %v1595
    %1597 = vmatprep.mubr.bf16.mxu0 %v1198
    %1598 = vmatmul.mubr.bf16.gmra.mxu0 %v1197
    %v1599 = vpop.f32.mrf.mxu0
    %v1600 = vadd.f32 0.0, %v1599
    %v1601 = vpop.f32.mrf.mxu0
    %v1602 = vadd.f32 0.0, %v1601
    %v1603 = vpop.f32.mrf.mxu0
    %v1604 = vadd.f32 0.0, %v1603
    %v1605 = vpop.f32.mrf.mxu0
    %v1606 = vadd.f32 0.0, %v1605
    %1607 = vmatprep.mubr.bf16.mxu0 %v1200
    %1608 = vmatmul.mubr.bf16.gmra.mxu0 %v1199
    %v1609 = vpop.f32.mrf.mxu0
    %v1610 = vadd.f32 0.0, %v1609
    %v1611 = vpop.f32.mrf.mxu0
    %v1612 = vadd.f32 0.0, %v1611
    %v1613 = vpop.f32.mrf.mxu0
    %v1614 = vadd.f32 0.0, %v1613
    %v1615 = vpop.f32.mrf.mxu0
    %v1616 = vadd.f32 0.0, %v1615
    %1617 = vmatprep.mubr.bf16.mxu0 %v1202
    %1618 = vmatmul.mubr.bf16.gmra.mxu0 %v1201
    %v1619 = vpop.f32.mrf.mxu0
    %v1620 = vadd.f32 0.0, %v1619
    %v1621 = vpop.f32.mrf.mxu0
    %v1622 = vadd.f32 0.0, %v1621
    %v1623 = vpop.f32.mrf.mxu0
    %v1624 = vadd.f32 0.0, %v1623
    %v1625 = vpop.f32.mrf.mxu0
    %v1626 = vadd.f32 0.0, %v1625
    %1627 = vmatprep.mubr.bf16.mxu0 %v1204
    %1628 = vmatmul.mubr.bf16.gmra.mxu0 %v1203
    %v1629 = vpop.f32.mrf.mxu0
    %v1630 = vadd.f32 0.0, %v1629
    %v1631 = vpop.f32.mrf.mxu0
    %v1632 = vadd.f32 0.0, %v1631
    %v1633 = vpop.f32.mrf.mxu0
    %v1634 = vadd.f32 0.0, %v1633
    %v1635 = vpop.f32.mrf.mxu0
    %v1636 = vadd.f32 0.0, %v1635
    %1637 = vmatprep.mubr.bf16.mxu0 %v1206
    %1638 = vmatmul.mubr.bf16.gmra.mxu0 %v1205
    %v1639 = vpop.f32.mrf.mxu0
    %v1640 = vadd.f32 0.0, %v1639
    %v1641 = vpop.f32.mrf.mxu0
    %v1642 = vadd.f32 0.0, %v1641
    %v1643 = vpop.f32.mrf.mxu0
    %v1644 = vadd.f32 0.0, %v1643
    %v1645 = vpop.f32.mrf.mxu0
    %v1646 = vadd.f32 0.0, %v1645
    %1647 = vmatprep.mubr.bf16.mxu0 %v1208
    %1648 = vmatmul.mubr.bf16.gmra.mxu0 %v1207
    %v1649 = vpop.f32.mrf.mxu0
    %v1650 = vadd.f32 0.0, %v1649
    %v1651 = vpop.f32.mrf.mxu0
    %v1652 = vadd.f32 0.0, %v1651
    %v1653 = vpop.f32.mrf.mxu0
    %v1654 = vadd.f32 0.0, %v1653
    %v1655 = vpop.f32.mrf.mxu0
    %v1656 = vadd.f32 0.0, %v1655
    %1657 = vmatprep.mubr.bf16.mxu0 %v1210
    %1658 = vmatmul.mubr.bf16.gmra.mxu0 %v1209
    %v1659 = vpop.f32.mrf.mxu0
    %v1660 = vadd.f32 0.0, %v1659
    %v1661 = vpop.f32.mrf.mxu0
    %v1662 = vadd.f32 0.0, %v1661
    %v1663 = vpop.f32.mrf.mxu0
    %v1664 = vadd.f32 0.0, %v1663
    %v1665 = vpop.f32.mrf.mxu0
    %v1666 = vadd.f32 0.0, %v1665
    %1667 = vmatprep.mubr.bf16.mxu0 %v1212
    %1668 = vmatmul.mubr.bf16.gmra.mxu0 %v1211
    %v1669 = vpop.f32.mrf.mxu0
    %v1670 = vadd.f32 0.0, %v1669
    %v1671 = vpop.f32.mrf.mxu0
    %v1672 = vadd.f32 0.0, %v1671
    %v1673 = vpop.f32.mrf.mxu0
    %v1674 = vadd.f32 0.0, %v1673
    %v1675 = vpop.f32.mrf.mxu0
    %v1676 = vadd.f32 0.0, %v1675
    %1677 = vmatprep.mubr.bf16.mxu0 %v1214
    %1678 = vmatmul.mubr.bf16.gmra.mxu0 %v1213
    %v1679 = vpop.f32.mrf.mxu0
    %v1680 = vadd.f32 0.0, %v1679
    %v1681 = vpop.f32.mrf.mxu0
    %v1682 = vadd.f32 0.0, %v1681
    %v1683 = vpop.f32.mrf.mxu0
    %v1684 = vadd.f32 0.0, %v1683
    %v1685 = vpop.f32.mrf.mxu0
    %v1686 = vadd.f32 0.0, %v1685
    %1687 = vmatprep.mubr.bf16.mxu0 %v1216
    %1688 = vmatmul.mubr.bf16.gmra.mxu0 %v1215
    %v1689 = vpop.f32.mrf.mxu0
    %v1690 = vadd.f32 0.0, %v1689
    %v1691 = vpop.f32.mrf.mxu0
    %v1692 = vadd.f32 0.0, %v1691
    %v1693 = vpop.f32.mrf.mxu0
    %v1694 = vadd.f32 0.0, %v1693
    %v1695 = vpop.f32.mrf.mxu0
    %v1696 = vadd.f32 0.0, %v1695
    %1697 = vdwg.mxu0
    %1698 = vmatprep.subr.bf16.mxu0 0
    %1699 = vmatpush1.bf16.msra.mxu0 %v1432
    %1700 = vmatprep.subr.bf16.mxu0 0
    %1701 = vmatpush1.bf16.msra.mxu0 %v1429
    %1702 = vmatprep.subr.bf16.mxu0 0
    %1703 = vmatpush1.bf16.msra.mxu0 %v1426
    %1704 = vmatprep.subr.bf16.mxu0 0
    %1705 = vmatpush1.bf16.msra.mxu0 %v1423
    %1706 = vmatprep.subr.bf16.mxu0 0
    %1707 = vmatpush1.bf16.msra.mxu0 %v1420
    %1708 = vmatprep.subr.bf16.mxu0 0
    %1709 = vmatpush1.bf16.msra.mxu0 %v1417
    %1710 = vmatprep.subr.bf16.mxu0 0
    %1711 = vmatpush1.bf16.msra.mxu0 %v1414
    %1712 = vmatprep.subr.bf16.mxu0 0
    %1713 = vmatpush1.bf16.msra.mxu0 %v1411
    %1714 = vmatprep.subr.bf16.mxu0 0
    %1715 = vmatpush2.bf16.msra.mxu0 %v1456
    %1716 = vmatprep.subr.bf16.mxu0 0
    %1717 = vmatpush2.bf16.msra.mxu0 %v1453
    %1718 = vmatprep.subr.bf16.mxu0 0
    %1719 = vmatpush2.bf16.msra.mxu0 %v1450
    %1720 = vmatprep.subr.bf16.mxu0 0
    %1721 = vmatpush2.bf16.msra.mxu0 %v1447
    %1722 = vmatprep.subr.bf16.mxu0 0
    %1723 = vmatpush2.bf16.msra.mxu0 %v1444
    %1724 = vmatprep.subr.bf16.mxu0 0
    %1725 = vmatpush2.bf16.msra.mxu0 %v1441
    %1726 = vmatprep.subr.bf16.mxu0 0
    %1727 = vmatpush2.bf16.msra.mxu0 %v1438
    %1728 = vmatprep.subr.bf16.mxu0 0
    %1729 = vmatpush2.bf16.msra.mxu0 %v1435
    %1730 = vmatprep.mubr.bf16.mxu0 %v1186
    %1731 = vmatmul.mubr.bf16.gmra.mxu0 %v1185
    %v1732 = vpop.f32.mrf.mxu0
    %v1733 = vadd.f32 0.0, %v1732
    %v1734 = vpop.f32.mrf.mxu0
    %v1735 = vpop.f32.mrf.mxu0
    %v1736 = vadd.f32 0.0, %v1735
    %v1737 = vpop.f32.mrf.mxu0
    %1738 = vmatprep.mubr.bf16.mxu0 %v1188
    %1739 = vmatmul.mubr.bf16.gmra.mxu0 %v1187
    %v1740 = vpop.f32.mrf.mxu0
    %v1741 = vadd.f32 0.0, %v1740
    %v1742 = vpop.f32.mrf.mxu0
    %v1743 = vpop.f32.mrf.mxu0
    %v1744 = vadd.f32 0.0, %v1743
    %v1745 = vpop.f32.mrf.mxu0
    %1746 = vmatprep.mubr.bf16.mxu0 %v1190
    %1747 = vmatmul.mubr.bf16.gmra.mxu0 %v1189
    %v1748 = vpop.f32.mrf.mxu0
    %v1749 = vadd.f32 0.0, %v1748
    %v1750 = vpop.f32.mrf.mxu0
    %v1751 = vpop.f32.mrf.mxu0
    %v1752 = vadd.f32 0.0, %v1751
    %v1753 = vpop.f32.mrf.mxu0
    %1754 = vmatprep.mubr.bf16.mxu0 %v1192
    %1755 = vmatmul.mubr.bf16.gmra.mxu0 %v1191
    %v1756 = vpop.f32.mrf.mxu0
    %v1757 = vadd.f32 0.0, %v1756
    %v1758 = vpop.f32.mrf.mxu0
    %v1759 = vpop.f32.mrf.mxu0
    %v1760 = vadd.f32 0.0, %v1759
    %v1761 = vpop.f32.mrf.mxu0
    %1762 = vmatprep.mubr.bf16.mxu0 %v1194
    %1763 = vmatmul.mubr.bf16.gmra.mxu0 %v1193
    %v1764 = vpop.f32.mrf.mxu0
    %v1765 = vadd.f32 0.0, %v1764
    %v1766 = vpop.f32.mrf.mxu0
    %v1767 = vpop.f32.mrf.mxu0
    %v1768 = vadd.f32 0.0, %v1767
    %v1769 = vpop.f32.mrf.mxu0
    %1770 = vmatprep.mubr.bf16.mxu0 %v1196
    %1771 = vmatmul.mubr.bf16.gmra.mxu0 %v1195
    %v1772 = vpop.f32.mrf.mxu0
    %v1773 = vadd.f32 0.0, %v1772
    %v1774 = vpop.f32.mrf.mxu0
    %v1775 = vpop.f32.mrf.mxu0
    %v1776 = vadd.f32 0.0, %v1775
    %v1777 = vpop.f32.mrf.mxu0
    %1778 = vmatprep.mubr.bf16.mxu0 %v1198
    %1779 = vmatmul.mubr.bf16.gmra.mxu0 %v1197
    %v1780 = vpop.f32.mrf.mxu0
    %v1781 = vadd.f32 0.0, %v1780
    %v1782 = vpop.f32.mrf.mxu0
    %v1783 = vpop.f32.mrf.mxu0
    %v1784 = vadd.f32 0.0, %v1783
    %v1785 = vpop.f32.mrf.mxu0
    %1786 = vmatprep.mubr.bf16.mxu0 %v1200
    %1787 = vmatmul.mubr.bf16.gmra.mxu0 %v1199
    %v1788 = vpop.f32.mrf.mxu0
    %v1789 = vadd.f32 0.0, %v1788
    %v1790 = vpop.f32.mrf.mxu0
    %v1791 = vpop.f32.mrf.mxu0
    %v1792 = vadd.f32 0.0, %v1791
    %v1793 = vpop.f32.mrf.mxu0
    %1794 = vmatprep.mubr.bf16.mxu0 %v1202
    %1795 = vmatmul.mubr.bf16.gmra.mxu0 %v1201
    %v1796 = vpop.f32.mrf.mxu0
    %v1797 = vadd.f32 0.0, %v1796
    %v1798 = vpop.f32.mrf.mxu0
    %v1799 = vpop.f32.mrf.mxu0
    %v1800 = vadd.f32 0.0, %v1799
    %v1801 = vpop.f32.mrf.mxu0
    %1802 = vmatprep.mubr.bf16.mxu0 %v1204
    %1803 = vmatmul.mubr.bf16.gmra.mxu0 %v1203
    %v1804 = vpop.f32.mrf.mxu0
    %v1805 = vadd.f32 0.0, %v1804
    %v1806 = vpop.f32.mrf.mxu0
    %v1807 = vpop.f32.mrf.mxu0
    %v1808 = vadd.f32 0.0, %v1807
    %v1809 = vpop.f32.mrf.mxu0
    %1810 = vmatprep.mubr.bf16.mxu0 %v1206
    %1811 = vmatmul.mubr.bf16.gmra.mxu0 %v1205
    %v1812 = vpop.f32.mrf.mxu0
    %v1813 = vadd.f32 0.0, %v1812
    %v1814 = vpop.f32.mrf.mxu0
    %v1815 = vpop.f32.mrf.mxu0
    %v1816 = vadd.f32 0.0, %v1815
    %v1817 = vpop.f32.mrf.mxu0
    %1818 = vmatprep.mubr.bf16.mxu0 %v1208
    %1819 = vmatmul.mubr.bf16.gmra.mxu0 %v1207
    %v1820 = vpop.f32.mrf.mxu0
    %v1821 = vadd.f32 0.0, %v1820
    %v1822 = vpop.f32.mrf.mxu0
    %v1823 = vpop.f32.mrf.mxu0
    %v1824 = vadd.f32 0.0, %v1823
    %v1825 = vpop.f32.mrf.mxu0
    %1826 = vmatprep.mubr.bf16.mxu0 %v1210
    %1827 = vmatmul.mubr.bf16.gmra.mxu0 %v1209
    %v1828 = vpop.f32.mrf.mxu0
    %v1829 = vadd.f32 0.0, %v1828
    %v1830 = vpop.f32.mrf.mxu0
    %v1831 = vpop.f32.mrf.mxu0
    %v1832 = vadd.f32 0.0, %v1831
    %v1833 = vpop.f32.mrf.mxu0
    %1834 = vmatprep.mubr.bf16.mxu0 %v1212
    %1835 = vmatmul.mubr.bf16.gmra.mxu0 %v1211
    %v1836 = vpop.f32.mrf.mxu0
    %v1837 = vadd.f32 0.0, %v1836
    %v1838 = vpop.f32.mrf.mxu0
    %v1839 = vpop.f32.mrf.mxu0
    %v1840 = vadd.f32 0.0, %v1839
    %v1841 = vpop.f32.mrf.mxu0
    %1842 = vmatprep.mubr.bf16.mxu0 %v1214
    %1843 = vmatmul.mubr.bf16.gmra.mxu0 %v1213
    %v1844 = vpop.f32.mrf.mxu0
    %v1845 = vadd.f32 0.0, %v1844
    %v1846 = vpop.f32.mrf.mxu0
    %v1847 = vpop.f32.mrf.mxu0
    %v1848 = vadd.f32 0.0, %v1847
    %v1849 = vpop.f32.mrf.mxu0
    %1850 = vmatprep.mubr.bf16.mxu0 %v1216
    %1851 = vmatmul.mubr.bf16.gmra.mxu0 %v1215
    %v1852 = vpop.f32.mrf.mxu0
    %v1853 = vadd.f32 0.0, %v1852
    %v1854 = vpop.f32.mrf.mxu0
    %v1855 = vpop.f32.mrf.mxu0
    %v1856 = vadd.f32 0.0, %v1855
    %v1857 = vpop.f32.mrf.mxu0
    %1858 = vdwg.mxu0
    %v1859 = vld [vmem:[%s4] sm:$0x1]
    %v1861 = vlaneseq
    %v1862 = vshrl.u32 %v1861, 7
    %v1863 = vsub.s32 0, %v1862
    %v1864 = vrot.slane %v1859, %v1863
    %v1866 = vadd.f32 %v706, %v1864
    %v1867 = vadd.f32 %v710, %v1864
    %v1868 = vadd.f32 %v716, %v1864
    %v1869 = vadd.f32 %v720, %v1864
    %v1870 = vadd.f32 %v726, %v1864
    %v1871 = vadd.f32 %v730, %v1864
    %v1872 = vadd.f32 %v736, %v1864
    %v1873 = vadd.f32 %v740, %v1864
    %v1874 = vadd.f32 %v746, %v1864
    %v1875 = vadd.f32 %v750, %v1864
    %v1876 = vadd.f32 %v756, %v1864
    %v1877 = vadd.f32 %v760, %v1864
    %v1878 = vadd.f32 %v766, %v1864
    %v1879 = vadd.f32 %v770, %v1864
    %v1880 = vadd.f32 %v776, %v1864
    %v1881 = vadd.f32 %v780, %v1864
    %v1882 = vadd.f32 %v786, %v1864
    %v1883 = vadd.f32 %v790, %v1864
    %v1884 = vadd.f32 %v796, %v1864
    %v1885 = vadd.f32 %v800, %v1864
    %v1886 = vadd.f32 %v806, %v1864
    %v1887 = vadd.f32 %v810, %v1864
    %v1888 = vadd.f32 %v816, %v1864
    %v1889 = vadd.f32 %v820, %v1864
    %v1890 = vadd.f32 %v826, %v1864
    %v1891 = vadd.f32 %v830, %v1864
    %v1892 = vadd.f32 %v836, %v1864
    %v1893 = vadd.f32 %v840, %v1864
    %v1894 = vadd.f32 %v846, %v1864
    %v1895 = vadd.f32 %v850, %v1864
    %v1896 = vadd.f32 %v856, %v1864
    %v1897 = vadd.f32 %v860, %v1864
    %v1898 = vmax.f32 %v1866, 0.0
    %v1899 = vmax.f32 %v1867, 0.0
    %v1900 = vmax.f32 %v1868, 0.0
    %v1901 = vmax.f32 %v1869, 0.0
    %v1902 = vmax.f32 %v1870, 0.0
    %v1903 = vmax.f32 %v1871, 0.0
    %v1904 = vmax.f32 %v1872, 0.0
    %v1905 = vmax.f32 %v1873, 0.0
    %v1906 = vmax.f32 %v1874, 0.0
    %v1907 = vmax.f32 %v1875, 0.0
    %v1908 = vmax.f32 %v1876, 0.0
    %v1909 = vmax.f32 %v1877, 0.0
    %v1910 = vmax.f32 %v1878, 0.0
    %v1911 = vmax.f32 %v1879, 0.0
    %v1912 = vmax.f32 %v1880, 0.0
    %v1913 = vmax.f32 %v1881, 0.0
    %v1914 = vmax.f32 %v1882, 0.0
    %v1915 = vmax.f32 %v1883, 0.0
    %v1916 = vmax.f32 %v1884, 0.0
    %v1917 = vmax.f32 %v1885, 0.0
    %v1918 = vmax.f32 %v1886, 0.0
    %v1919 = vmax.f32 %v1887, 0.0
    %v1920 = vmax.f32 %v1888, 0.0
    %v1921 = vmax.f32 %v1889, 0.0
    %v1922 = vmax.f32 %v1890, 0.0
    %v1923 = vmax.f32 %v1891, 0.0
    %v1924 = vmax.f32 %v1892, 0.0
    %v1925 = vmax.f32 %v1893, 0.0
    %v1926 = vmax.f32 %v1894, 0.0
    %v1927 = vmax.f32 %v1895, 0.0
    %v1928 = vmax.f32 %v1896, 0.0
    %v1929 = vmax.f32 %v1897, 0.0
    %v1930 = vadd.f32 %v1540, %v1864
    %v1931 = vadd.f32 %v1544, %v1864
    %v1932 = vadd.f32 %v1550, %v1864
    %v1933 = vadd.f32 %v1554, %v1864
    %v1934 = vadd.f32 %v1560, %v1864
    %v1935 = vadd.f32 %v1564, %v1864
    %v1936 = vadd.f32 %v1570, %v1864
    %v1937 = vadd.f32 %v1574, %v1864
    %v1938 = vadd.f32 %v1580, %v1864
    %v1939 = vadd.f32 %v1584, %v1864
    %v1940 = vadd.f32 %v1590, %v1864
    %v1941 = vadd.f32 %v1594, %v1864
    %v1942 = vadd.f32 %v1600, %v1864
    %v1943 = vadd.f32 %v1604, %v1864
    %v1944 = vadd.f32 %v1610, %v1864
    %v1945 = vadd.f32 %v1614, %v1864
    %v1946 = vadd.f32 %v1620, %v1864
    %v1947 = vadd.f32 %v1624, %v1864
    %v1948 = vadd.f32 %v1630, %v1864
    %v1949 = vadd.f32 %v1634, %v1864
    %v1950 = vadd.f32 %v1640, %v1864
    %v1951 = vadd.f32 %v1644, %v1864
    %v1952 = vadd.f32 %v1650, %v1864
    %v1953 = vadd.f32 %v1654, %v1864
    %v1954 = vadd.f32 %v1660, %v1864
    %v1955 = vadd.f32 %v1664, %v1864
    %v1956 = vadd.f32 %v1670, %v1864
    %v1957 = vadd.f32 %v1674, %v1864
    %v1958 = vadd.f32 %v1680, %v1864
    %v1959 = vadd.f32 %v1684, %v1864
    %v1960 = vadd.f32 %v1690, %v1864
    %v1961 = vadd.f32 %v1694, %v1864
    %v1962 = vmax.f32 %v1930, 0.0
    %v1963 = vmax.f32 %v1931, 0.0
    %v1964 = vmax.f32 %v1932, 0.0
    %v1965 = vmax.f32 %v1933, 0.0
    %v1966 = vmax.f32 %v1934, 0.0
    %v1967 = vmax.f32 %v1935, 0.0
    %v1968 = vmax.f32 %v1936, 0.0
    %v1969 = vmax.f32 %v1937, 0.0
    %v1970 = vmax.f32 %v1938, 0.0
    %v1971 = vmax.f32 %v1939, 0.0
    %v1972 = vmax.f32 %v1940, 0.0
    %v1973 = vmax.f32 %v1941, 0.0
    %v1974 = vmax.f32 %v1942, 0.0
    %v1975 = vmax.f32 %v1943, 0.0
    %v1976 = vmax.f32 %v1944, 0.0
    %v1977 = vmax.f32 %v1945, 0.0
    %v1978 = vmax.f32 %v1946, 0.0
    %v1979 = vmax.f32 %v1947, 0.0
    %v1980 = vmax.f32 %v1948, 0.0
    %v1981 = vmax.f32 %v1949, 0.0
    %v1982 = vmax.f32 %v1950, 0.0
    %v1983 = vmax.f32 %v1951, 0.0
    %v1984 = vmax.f32 %v1952, 0.0
    %v1985 = vmax.f32 %v1953, 0.0
    %v1986 = vmax.f32 %v1954, 0.0
    %v1987 = vmax.f32 %v1955, 0.0
    %v1988 = vmax.f32 %v1956, 0.0
    %v1989 = vmax.f32 %v1957, 0.0
    %v1990 = vmax.f32 %v1958, 0.0
    %v1991 = vmax.f32 %v1959, 0.0
    %v1992 = vmax.f32 %v1960, 0.0
    %v1993 = vmax.f32 %v1961, 0.0
    %v1994 = vld [vmem:[%s5] sm:$0x1]
    %v1995 = vld [vmem:[#allocation2] sm:$0x1]
    %v1997 = vlaneseq
    %v1998 = vshrl.u32 %v1997, 7
    %v1999 = vsub.s32 0, %v1998
    %v2000 = vrot.slane %v1994, %v1999
    %v2002 = vmul.f32 %v1898, %v2000
    %v2003 = vmul.f32 %v1899, %v2000
    %v2004 = vmul.f32 %v1900, %v2000
    %v2005 = vmul.f32 %v1901, %v2000
    %v2006 = vmul.f32 %v1902, %v2000
    %v2007 = vmul.f32 %v1903, %v2000
    %v2008 = vmul.f32 %v1904, %v2000
    %v2009 = vmul.f32 %v1905, %v2000
    %v2010 = vmul.f32 %v1906, %v2000
    %v2011 = vmul.f32 %v1907, %v2000
    %v2012 = vmul.f32 %v1908, %v2000
    %v2013 = vmul.f32 %v1909, %v2000
    %v2014 = vmul.f32 %v1910, %v2000
    %v2015 = vmul.f32 %v1911, %v2000
    %v2016 = vmul.f32 %v1912, %v2000
    %v2017 = vmul.f32 %v1913, %v2000
    %v2018 = vmul.f32 %v1914, %v2000
    %v2019 = vmul.f32 %v1915, %v2000
    %v2020 = vmul.f32 %v1916, %v2000
    %v2021 = vmul.f32 %v1917, %v2000
    %v2022 = vmul.f32 %v1918, %v2000
    %v2023 = vmul.f32 %v1919, %v2000
    %v2024 = vmul.f32 %v1920, %v2000
    %v2025 = vmul.f32 %v1921, %v2000
    %v2026 = vmul.f32 %v1922, %v2000
    %v2027 = vmul.f32 %v1923, %v2000
    %v2028 = vmul.f32 %v1924, %v2000
    %v2029 = vmul.f32 %v1925, %v2000
    %v2030 = vmul.f32 %v1926, %v2000
    %v2031 = vmul.f32 %v1927, %v2000
    %v2032 = vmul.f32 %v1928, %v2000
    %v2033 = vmul.f32 %v1929, %v2000
    %2034 = vadd.xlane.f32.xlu0 %v2002
    %v2035 = vpop.xlane.xlu0 %2034
    %2036 = vadd.xlane.f32.xlu0 %v2003
    %v2037 = vpop.xlane.xlu0 %2036
    %2038 = vadd.xlane.f32.xlu0 %v2004
    %v2039 = vpop.xlane.xlu0 %2038
    %2040 = vadd.xlane.f32.xlu0 %v2005
    %v2041 = vpop.xlane.xlu0 %2040
    %2042 = vadd.xlane.f32.xlu0 %v2006
    %v2043 = vpop.xlane.xlu0 %2042
    %2044 = vadd.xlane.f32.xlu0 %v2007
    %v2045 = vpop.xlane.xlu0 %2044
    %2046 = vadd.xlane.f32.xlu0 %v2008
    %v2047 = vpop.xlane.xlu0 %2046
    %2048 = vadd.xlane.f32.xlu0 %v2009
    %v2049 = vpop.xlane.xlu0 %2048
    %2050 = vadd.xlane.f32.xlu0 %v2010
    %v2051 = vpop.xlane.xlu0 %2050
    %2052 = vadd.xlane.f32.xlu0 %v2011
    %v2053 = vpop.xlane.xlu0 %2052
    %2054 = vadd.xlane.f32.xlu0 %v2012
    %v2055 = vpop.xlane.xlu0 %2054
    %2056 = vadd.xlane.f32.xlu0 %v2013
    %v2057 = vpop.xlane.xlu0 %2056
    %2058 = vadd.xlane.f32.xlu0 %v2014
    %v2059 = vpop.xlane.xlu0 %2058
    %2060 = vadd.xlane.f32.xlu0 %v2015
    %v2061 = vpop.xlane.xlu0 %2060
    %2062 = vadd.xlane.f32.xlu0 %v2016
    %v2063 = vpop.xlane.xlu0 %2062
    %2064 = vadd.xlane.f32.xlu0 %v2017
    %v2065 = vpop.xlane.xlu0 %2064
    %2066 = vadd.xlane.f32.xlu0 %v2018
    %v2067 = vpop.xlane.xlu0 %2066
    %2068 = vadd.xlane.f32.xlu0 %v2019
    %v2069 = vpop.xlane.xlu0 %2068
    %2070 = vadd.xlane.f32.xlu0 %v2020
    %v2071 = vpop.xlane.xlu0 %2070
    %2072 = vadd.xlane.f32.xlu0 %v2021
    %v2073 = vpop.xlane.xlu0 %2072
    %2074 = vadd.xlane.f32.xlu0 %v2022
    %v2075 = vpop.xlane.xlu0 %2074
    %2076 = vadd.xlane.f32.xlu0 %v2023
    %v2077 = vpop.xlane.xlu0 %2076
    %2078 = vadd.xlane.f32.xlu0 %v2024
    %v2079 = vpop.xlane.xlu0 %2078
    %2080 = vadd.xlane.f32.xlu0 %v2025
    %v2081 = vpop.xlane.xlu0 %2080
    %2082 = vadd.xlane.f32.xlu0 %v2026
    %v2083 = vpop.xlane.xlu0 %2082
    %2084 = vadd.xlane.f32.xlu0 %v2027
    %v2085 = vpop.xlane.xlu0 %2084
    %2086 = vadd.xlane.f32.xlu0 %v2028
    %v2087 = vpop.xlane.xlu0 %2086
    %2088 = vadd.xlane.f32.xlu0 %v2029
    %v2089 = vpop.xlane.xlu0 %2088
    %2090 = vadd.xlane.f32.xlu0 %v2030
    %v2091 = vpop.xlane.xlu0 %2090
    %2092 = vadd.xlane.f32.xlu0 %v2031
    %v2093 = vpop.xlane.xlu0 %2092
    %2094 = vadd.xlane.f32.xlu0 %v2032
    %v2095 = vpop.xlane.xlu0 %2094
    %2096 = vadd.xlane.f32.xlu0 %v2033
    %v2097 = vpop.xlane.xlu0 %2096
    %v2099 = vlaneseq
    %v2100 = vshrl.u32 %v2099, 7
    %v2101 = vsub.s32 0, %v2100
    %v2102 = vrot.slane %v1995, %v2101
    %v2104 = vadd.f32 %v2035, %v2102
    %v2105 = vadd.f32 %v2037, %v2102
    %v2106 = vadd.f32 %v2039, %v2102
    %v2107 = vadd.f32 %v2041, %v2102
    %v2108 = vadd.f32 %v2043, %v2102
    %v2109 = vadd.f32 %v2045, %v2102
    %v2110 = vadd.f32 %v2047, %v2102
    %v2111 = vadd.f32 %v2049, %v2102
    %v2112 = vadd.f32 %v2051, %v2102
    %v2113 = vadd.f32 %v2053, %v2102
    %v2114 = vadd.f32 %v2055, %v2102
    %v2115 = vadd.f32 %v2057, %v2102
    %v2116 = vadd.f32 %v2059, %v2102
    %v2117 = vadd.f32 %v2061, %v2102
    %v2118 = vadd.f32 %v2063, %v2102
    %v2119 = vadd.f32 %v2065, %v2102
    %v2120 = vadd.f32 %v2067, %v2102
    %v2121 = vadd.f32 %v2069, %v2102
    %v2122 = vadd.f32 %v2071, %v2102
    %v2123 = vadd.f32 %v2073, %v2102
    %v2124 = vadd.f32 %v2075, %v2102
    %v2125 = vadd.f32 %v2077, %v2102
    %v2126 = vadd.f32 %v2079, %v2102
    %v2127 = vadd.f32 %v2081, %v2102
    %v2128 = vadd.f32 %v2083, %v2102
    %v2129 = vadd.f32 %v2085, %v2102
    %v2130 = vadd.f32 %v2087, %v2102
    %v2131 = vadd.f32 %v2089, %v2102
    %v2132 = vadd.f32 %v2091, %v2102
    %v2133 = vadd.f32 %v2093, %v2102
    %v2134 = vadd.f32 %v2095, %v2102
    %v2135 = vadd.f32 %v2097, %v2102
    %v2136 = vmax.f32 %v2104, 0.0
    %v2137 = vmax.f32 %v2105, 0.0
    %v2138 = vmax.f32 %v2106, 0.0
    %v2139 = vmax.f32 %v2107, 0.0
    %v2140 = vmax.f32 %v2108, 0.0
    %v2141 = vmax.f32 %v2109, 0.0
    %v2142 = vmax.f32 %v2110, 0.0
    %v2143 = vmax.f32 %v2111, 0.0
    %v2144 = vmax.f32 %v2112, 0.0
    %v2145 = vmax.f32 %v2113, 0.0
    %v2146 = vmax.f32 %v2114, 0.0
    %v2147 = vmax.f32 %v2115, 0.0
    %v2148 = vmax.f32 %v2116, 0.0
    %v2149 = vmax.f32 %v2117, 0.0
    %v2150 = vmax.f32 %v2118, 0.0
    %v2151 = vmax.f32 %v2119, 0.0
    %v2152 = vmax.f32 %v2120, 0.0
    %v2153 = vmax.f32 %v2121, 0.0
    %v2154 = vmax.f32 %v2122, 0.0
    %v2155 = vmax.f32 %v2123, 0.0
    %v2156 = vmax.f32 %v2124, 0.0
    %v2157 = vmax.f32 %v2125, 0.0
    %v2158 = vmax.f32 %v2126, 0.0
    %v2159 = vmax.f32 %v2127, 0.0
    %v2160 = vmax.f32 %v2128, 0.0
    %v2161 = vmax.f32 %v2129, 0.0
    %v2162 = vmax.f32 %v2130, 0.0
    %v2163 = vmax.f32 %v2131, 0.0
    %v2164 = vmax.f32 %v2132, 0.0
    %v2165 = vmax.f32 %v2133, 0.0
    %v2166 = vmax.f32 %v2134, 0.0
    %v2167 = vmax.f32 %v2135, 0.0
    %v2168 = vmul.f32 %v1962, %v2000
    %v2169 = vmul.f32 %v1963, %v2000
    %v2170 = vmul.f32 %v1964, %v2000
    %v2171 = vmul.f32 %v1965, %v2000
    %v2172 = vmul.f32 %v1966, %v2000
    %v2173 = vmul.f32 %v1967, %v2000
    %v2174 = vmul.f32 %v1968, %v2000
    %v2175 = vmul.f32 %v1969, %v2000
    %v2176 = vmul.f32 %v1970, %v2000
    %v2177 = vmul.f32 %v1971, %v2000
    %v2178 = vmul.f32 %v1972, %v2000
    %v2179 = vmul.f32 %v1973, %v2000
    %v2180 = vmul.f32 %v1974, %v2000
    %v2181 = vmul.f32 %v1975, %v2000
    %v2182 = vmul.f32 %v1976, %v2000
    %v2183 = vmul.f32 %v1977, %v2000
    %v2184 = vmul.f32 %v1978, %v2000
    %v2185 = vmul.f32 %v1979, %v2000
    %v2186 = vmul.f32 %v1980, %v2000
    %v2187 = vmul.f32 %v1981, %v2000
    %v2188 = vmul.f32 %v1982, %v2000
    %v2189 = vmul.f32 %v1983, %v2000
    %v2190 = vmul.f32 %v1984, %v2000
    %v2191 = vmul.f32 %v1985, %v2000
    %v2192 = vmul.f32 %v1986, %v2000
    %v2193 = vmul.f32 %v1987, %v2000
    %v2194 = vmul.f32 %v1988, %v2000
    %v2195 = vmul.f32 %v1989, %v2000
    %v2196 = vmul.f32 %v1990, %v2000
    %v2197 = vmul.f32 %v1991, %v2000
    %v2198 = vmul.f32 %v1992, %v2000
    %v2199 = vmul.f32 %v1993, %v2000
    %2200 = vadd.xlane.f32.xlu0 %v2168
    %v2201 = vpop.xlane.xlu0 %2200
    %2202 = vadd.xlane.f32.xlu0 %v2169
    %v2203 = vpop.xlane.xlu0 %2202
    %2204 = vadd.xlane.f32.xlu0 %v2170
    %v2205 = vpop.xlane.xlu0 %2204
    %2206 = vadd.xlane.f32.xlu0 %v2171
    %v2207 = vpop.xlane.xlu0 %2206
    %2208 = vadd.xlane.f32.xlu0 %v2172
    %v2209 = vpop.xlane.xlu0 %2208
    %2210 = vadd.xlane.f32.xlu0 %v2173
    %v2211 = vpop.xlane.xlu0 %2210
    %2212 = vadd.xlane.f32.xlu0 %v2174
    %v2213 = vpop.xlane.xlu0 %2212
    %2214 = vadd.xlane.f32.xlu0 %v2175
    %v2215 = vpop.xlane.xlu0 %2214
    %2216 = vadd.xlane.f32.xlu0 %v2176
    %v2217 = vpop.xlane.xlu0 %2216
    %2218 = vadd.xlane.f32.xlu0 %v2177
    %v2219 = vpop.xlane.xlu0 %2218
    %2220 = vadd.xlane.f32.xlu0 %v2178
    %v2221 = vpop.xlane.xlu0 %2220
    %2222 = vadd.xlane.f32.xlu0 %v2179
    %v2223 = vpop.xlane.xlu0 %2222
    %2224 = vadd.xlane.f32.xlu0 %v2180
    %v2225 = vpop.xlane.xlu0 %2224
    %2226 = vadd.xlane.f32.xlu0 %v2181
    %v2227 = vpop.xlane.xlu0 %2226
    %2228 = vadd.xlane.f32.xlu0 %v2182
    %v2229 = vpop.xlane.xlu0 %2228
    %2230 = vadd.xlane.f32.xlu0 %v2183
    %v2231 = vpop.xlane.xlu0 %2230
    %2232 = vadd.xlane.f32.xlu0 %v2184
    %v2233 = vpop.xlane.xlu0 %2232
    %2234 = vadd.xlane.f32.xlu0 %v2185
    %v2235 = vpop.xlane.xlu0 %2234
    %2236 = vadd.xlane.f32.xlu0 %v2186
    %v2237 = vpop.xlane.xlu0 %2236
    %2238 = vadd.xlane.f32.xlu0 %v2187
    %v2239 = vpop.xlane.xlu0 %2238
    %2240 = vadd.xlane.f32.xlu0 %v2188
    %v2241 = vpop.xlane.xlu0 %2240
    %2242 = vadd.xlane.f32.xlu0 %v2189
    %v2243 = vpop.xlane.xlu0 %2242
    %2244 = vadd.xlane.f32.xlu0 %v2190
    %v2245 = vpop.xlane.xlu0 %2244
    %2246 = vadd.xlane.f32.xlu0 %v2191
    %v2247 = vpop.xlane.xlu0 %2246
    %2248 = vadd.xlane.f32.xlu0 %v2192
    %v2249 = vpop.xlane.xlu0 %2248
    %2250 = vadd.xlane.f32.xlu0 %v2193
    %v2251 = vpop.xlane.xlu0 %2250
    %2252 = vadd.xlane.f32.xlu0 %v2194
    %v2253 = vpop.xlane.xlu0 %2252
    %2254 = vadd.xlane.f32.xlu0 %v2195
    %v2255 = vpop.xlane.xlu0 %2254
    %2256 = vadd.xlane.f32.xlu0 %v2196
    %v2257 = vpop.xlane.xlu0 %2256
    %2258 = vadd.xlane.f32.xlu0 %v2197
    %v2259 = vpop.xlane.xlu0 %2258
    %2260 = vadd.xlane.f32.xlu0 %v2198
    %v2261 = vpop.xlane.xlu0 %2260
    %2262 = vadd.xlane.f32.xlu0 %v2199
    %v2263 = vpop.xlane.xlu0 %2262
    %v2264 = vadd.f32 %v2201, %v2102
    %v2265 = vadd.f32 %v2203, %v2102
    %v2266 = vadd.f32 %v2205, %v2102
    %v2267 = vadd.f32 %v2207, %v2102
    %v2268 = vadd.f32 %v2209, %v2102
    %v2269 = vadd.f32 %v2211, %v2102
    %v2270 = vadd.f32 %v2213, %v2102
    %v2271 = vadd.f32 %v2215, %v2102
    %v2272 = vadd.f32 %v2217, %v2102
    %v2273 = vadd.f32 %v2219, %v2102
    %v2274 = vadd.f32 %v2221, %v2102
    %v2275 = vadd.f32 %v2223, %v2102
    %v2276 = vadd.f32 %v2225, %v2102
    %v2277 = vadd.f32 %v2227, %v2102
    %v2278 = vadd.f32 %v2229, %v2102
    %v2279 = vadd.f32 %v2231, %v2102
    %v2280 = vadd.f32 %v2233, %v2102
    %v2281 = vadd.f32 %v2235, %v2102
    %v2282 = vadd.f32 %v2237, %v2102
    %v2283 = vadd.f32 %v2239, %v2102
    %v2284 = vadd.f32 %v2241, %v2102
    %v2285 = vadd.f32 %v2243, %v2102
    %v2286 = vadd.f32 %v2245, %v2102
    %v2287 = vadd.f32 %v2247, %v2102
    %v2288 = vadd.f32 %v2249, %v2102
    %v2289 = vadd.f32 %v2251, %v2102
    %v2290 = vadd.f32 %v2253, %v2102
    %v2291 = vadd.f32 %v2255, %v2102
    %v2292 = vadd.f32 %v2257, %v2102
    %v2293 = vadd.f32 %v2259, %v2102
    %v2294 = vadd.f32 %v2261, %v2102
    %v2295 = vadd.f32 %v2263, %v2102
    %v2296 = vmax.f32 %v2264, 0.0
    %v2297 = vmax.f32 %v2265, 0.0
    %v2298 = vmax.f32 %v2266, 0.0
    %v2299 = vmax.f32 %v2267, 0.0
    %v2300 = vmax.f32 %v2268, 0.0
    %v2301 = vmax.f32 %v2269, 0.0
    %v2302 = vmax.f32 %v2270, 0.0
    %v2303 = vmax.f32 %v2271, 0.0
    %v2304 = vmax.f32 %v2272, 0.0
    %v2305 = vmax.f32 %v2273, 0.0
    %v2306 = vmax.f32 %v2274, 0.0
    %v2307 = vmax.f32 %v2275, 0.0
    %v2308 = vmax.f32 %v2276, 0.0
    %v2309 = vmax.f32 %v2277, 0.0
    %v2310 = vmax.f32 %v2278, 0.0
    %v2311 = vmax.f32 %v2279, 0.0
    %v2312 = vmax.f32 %v2280, 0.0
    %v2313 = vmax.f32 %v2281, 0.0
    %v2314 = vmax.f32 %v2282, 0.0
    %v2315 = vmax.f32 %v2283, 0.0
    %v2316 = vmax.f32 %v2284, 0.0
    %v2317 = vmax.f32 %v2285, 0.0
    %v2318 = vmax.f32 %v2286, 0.0
    %v2319 = vmax.f32 %v2287, 0.0
    %v2320 = vmax.f32 %v2288, 0.0
    %v2321 = vmax.f32 %v2289, 0.0
    %v2322 = vmax.f32 %v2290, 0.0
    %v2323 = vmax.f32 %v2291, 0.0
    %v2324 = vmax.f32 %v2292, 0.0
    %v2325 = vmax.f32 %v2293, 0.0
    %v2326 = vmax.f32 %v2294, 0.0
    %v2327 = vmax.f32 %v2295, 0.0
    %v2328 = vmax.f32 %v2136, %v2296
    %v2329 = vmax.f32 %v2137, %v2297
    %v2330 = vmax.f32 %v2138, %v2298
    %v2331 = vmax.f32 %v2139, %v2299
    %v2332 = vmax.f32 %v2140, %v2300
    %v2333 = vmax.f32 %v2141, %v2301
    %v2334 = vmax.f32 %v2142, %v2302
    %v2335 = vmax.f32 %v2143, %v2303
    %v2336 = vmax.f32 %v2144, %v2304
    %v2337 = vmax.f32 %v2145, %v2305
    %v2338 = vmax.f32 %v2146, %v2306
    %v2339 = vmax.f32 %v2147, %v2307
    %v2340 = vmax.f32 %v2148, %v2308
    %v2341 = vmax.f32 %v2149, %v2309
    %v2342 = vmax.f32 %v2150, %v2310
    %v2343 = vmax.f32 %v2151, %v2311
    %v2344 = vmax.f32 %v2152, %v2312
    %v2345 = vmax.f32 %v2153, %v2313
    %v2346 = vmax.f32 %v2154, %v2314
    %v2347 = vmax.f32 %v2155, %v2315
    %v2348 = vmax.f32 %v2156, %v2316
    %v2349 = vmax.f32 %v2157, %v2317
    %v2350 = vmax.f32 %v2158, %v2318
    %v2351 = vmax.f32 %v2159, %v2319
    %v2352 = vmax.f32 %v2160, %v2320
    %v2353 = vmax.f32 %v2161, %v2321
    %v2354 = vmax.f32 %v2162, %v2322
    %v2355 = vmax.f32 %v2163, %v2323
    %v2356 = vmax.f32 %v2164, %v2324
    %v2357 = vmax.f32 %v2165, %v2325
    %v2358 = vmax.f32 %v2166, %v2326
    %v2359 = vmax.f32 %v2167, %v2327
    %v2360 = vsub.f32 %v2136, %v2328
    %v2361 = vsub.f32 %v2137, %v2329
    %v2362 = vsub.f32 %v2138, %v2330
    %v2363 = vsub.f32 %v2139, %v2331
    %v2364 = vsub.f32 %v2140, %v2332
    %v2365 = vsub.f32 %v2141, %v2333
    %v2366 = vsub.f32 %v2142, %v2334
    %v2367 = vsub.f32 %v2143, %v2335
    %v2368 = vsub.f32 %v2144, %v2336
    %v2369 = vsub.f32 %v2145, %v2337
    %v2370 = vsub.f32 %v2146, %v2338
    %v2371 = vsub.f32 %v2147, %v2339
    %v2372 = vsub.f32 %v2148, %v2340
    %v2373 = vsub.f32 %v2149, %v2341
    %v2374 = vsub.f32 %v2150, %v2342
    %v2375 = vsub.f32 %v2151, %v2343
    %v2376 = vsub.f32 %v2152, %v2344
    %v2377 = vsub.f32 %v2153, %v2345
    %v2378 = vsub.f32 %v2154, %v2346
    %v2379 = vsub.f32 %v2155, %v2347
    %v2380 = vsub.f32 %v2156, %v2348
    %v2381 = vsub.f32 %v2157, %v2349
    %v2382 = vsub.f32 %v2158, %v2350
    %v2383 = vsub.f32 %v2159, %v2351
    %v2384 = vsub.f32 %v2160, %v2352
    %v2385 = vsub.f32 %v2161, %v2353
    %v2386 = vsub.f32 %v2162, %v2354
    %v2387 = vsub.f32 %v2163, %v2355
    %v2388 = vsub.f32 %v2164, %v2356
    %v2389 = vsub.f32 %v2165, %v2357
    %v2390 = vsub.f32 %v2166, %v2358
    %v2391 = vsub.f32 %v2167, %v2359
    %v2392 = vmul.f32 %v2360, 1.442695
    %v2393 = vpow.pop %v2392
    %v2394 = vmul.f32 %v2361, 1.442695
    %v2395 = vpow.pop %v2394
    %v2396 = vmul.f32 %v2362, 1.442695
    %v2397 = vpow.pop %v2396
    %v2398 = vmul.f32 %v2363, 1.442695
    %v2399 = vpow.pop %v2398
    %v2400 = vmul.f32 %v2364, 1.442695
    %v2401 = vpow.pop %v2400
    %v2402 = vmul.f32 %v2365, 1.442695
    %v2403 = vpow.pop %v2402
    %v2404 = vmul.f32 %v2366, 1.442695
    %v2405 = vpow.pop %v2404
    %v2406 = vmul.f32 %v2367, 1.442695
    %v2407 = vpow.pop %v2406
    %v2408 = vmul.f32 %v2368, 1.442695
    %v2409 = vpow.pop %v2408
    %v2410 = vmul.f32 %v2369, 1.442695
    %v2411 = vpow.pop %v2410
    %v2412 = vmul.f32 %v2370, 1.442695
    %v2413 = vpow.pop %v2412
    %v2414 = vmul.f32 %v2371, 1.442695
    %v2415 = vpow.pop %v2414
    %v2416 = vmul.f32 %v2372, 1.442695
    %v2417 = vpow.pop %v2416
    %v2418 = vmul.f32 %v2373, 1.442695
    %v2419 = vpow.pop %v2418
    %v2420 = vmul.f32 %v2374, 1.442695
    %v2421 = vpow.pop %v2420
    %v2422 = vmul.f32 %v2375, 1.442695
    %v2423 = vpow.pop %v2422
    %v2424 = vmul.f32 %v2376, 1.442695
    %v2425 = vpow.pop %v2424
    %v2426 = vmul.f32 %v2377, 1.442695
    %v2427 = vpow.pop %v2426
    %v2428 = vmul.f32 %v2378, 1.442695
    %v2429 = vpow.pop %v2428
    %v2430 = vmul.f32 %v2379, 1.442695
    %v2431 = vpow.pop %v2430
    %v2432 = vmul.f32 %v2380, 1.442695
    %v2433 = vpow.pop %v2432
    %v2434 = vmul.f32 %v2381, 1.442695
    %v2435 = vpow.pop %v2434
    %v2436 = vmul.f32 %v2382, 1.442695
    %v2437 = vpow.pop %v2436
    %v2438 = vmul.f32 %v2383, 1.442695
    %v2439 = vpow.pop %v2438
    %v2440 = vmul.f32 %v2384, 1.442695
    %v2441 = vpow.pop %v2440
    %v2442 = vmul.f32 %v2385, 1.442695
    %v2443 = vpow.pop %v2442
    %v2444 = vmul.f32 %v2386, 1.442695
    %v2445 = vpow.pop %v2444
    %v2446 = vmul.f32 %v2387, 1.442695
    %v2447 = vpow.pop %v2446
    %v2448 = vmul.f32 %v2388, 1.442695
    %v2449 = vpow.pop %v2448
    %v2450 = vmul.f32 %v2389, 1.442695
    %v2451 = vpow.pop %v2450
    %v2452 = vmul.f32 %v2390, 1.442695
    %v2453 = vpow.pop %v2452
    %v2454 = vmul.f32 %v2391, 1.442695
    %v2455 = vpow.pop %v2454
    %v2456 = vsub.f32 %v2296, %v2328
    %v2457 = vsub.f32 %v2297, %v2329
    %v2458 = vsub.f32 %v2298, %v2330
    %v2459 = vsub.f32 %v2299, %v2331
    %v2460 = vsub.f32 %v2300, %v2332
    %v2461 = vsub.f32 %v2301, %v2333
    %v2462 = vsub.f32 %v2302, %v2334
    %v2463 = vsub.f32 %v2303, %v2335
    %v2464 = vsub.f32 %v2304, %v2336
    %v2465 = vsub.f32 %v2305, %v2337
    %v2466 = vsub.f32 %v2306, %v2338
    %v2467 = vsub.f32 %v2307, %v2339
    %v2468 = vsub.f32 %v2308, %v2340
    %v2469 = vsub.f32 %v2309, %v2341
    %v2470 = vsub.f32 %v2310, %v2342
    %v2471 = vsub.f32 %v2311, %v2343
    %v2472 = vsub.f32 %v2312, %v2344
    %v2473 = vsub.f32 %v2313, %v2345
    %v2474 = vsub.f32 %v2314, %v2346
    %v2475 = vsub.f32 %v2315, %v2347
    %v2476 = vsub.f32 %v2316, %v2348
    %v2477 = vsub.f32 %v2317, %v2349
    %v2478 = vsub.f32 %v2318, %v2350
    %v2479 = vsub.f32 %v2319, %v2351
    %v2480 = vsub.f32 %v2320, %v2352
    %v2481 = vsub.f32 %v2321, %v2353
    %v2482 = vsub.f32 %v2322, %v2354
    %v2483 = vsub.f32 %v2323, %v2355
    %v2484 = vsub.f32 %v2324, %v2356
    %v2485 = vsub.f32 %v2325, %v2357
    %v2486 = vsub.f32 %v2326, %v2358
    %v2487 = vsub.f32 %v2327, %v2359
    %v2488 = vmul.f32 %v2456, 1.442695
    %v2489 = vpow.pop %v2488
    %v2490 = vmul.f32 %v2457, 1.442695
    %v2491 = vpow.pop %v2490
    %v2492 = vmul.f32 %v2458, 1.442695
    %v2493 = vpow.pop %v2492
    %v2494 = vmul.f32 %v2459, 1.442695
    %v2495 = vpow.pop %v2494
    %v2496 = vmul.f32 %v2460, 1.442695
    %v2497 = vpow.pop %v2496
    %v2498 = vmul.f32 %v2461, 1.442695
    %v2499 = vpow.pop %v2498
    %v2500 = vmul.f32 %v2462, 1.442695
    %v2501 = vpow.pop %v2500
    %v2502 = vmul.f32 %v2463, 1.442695
    %v2503 = vpow.pop %v2502
    %v2504 = vmul.f32 %v2464, 1.442695
    %v2505 = vpow.pop %v2504
    %v2506 = vmul.f32 %v2465, 1.442695
    %v2507 = vpow.pop %v2506
    %v2508 = vmul.f32 %v2466, 1.442695
    %v2509 = vpow.pop %v2508
    %v2510 = vmul.f32 %v2467, 1.442695
    %v2511 = vpow.pop %v2510
    %v2512 = vmul.f32 %v2468, 1.442695
    %v2513 = vpow.pop %v2512
    %v2514 = vmul.f32 %v2469, 1.442695
    %v2515 = vpow.pop %v2514
    %v2516 = vmul.f32 %v2470, 1.442695
    %v2517 = vpow.pop %v2516
    %v2518 = vmul.f32 %v2471, 1.442695
    %v2519 = vpow.pop %v2518
    %v2520 = vmul.f32 %v2472, 1.442695
    %v2521 = vpow.pop %v2520
    %v2522 = vmul.f32 %v2473, 1.442695
    %v2523 = vpow.pop %v2522
    %v2524 = vmul.f32 %v2474, 1.442695
    %v2525 = vpow.pop %v2524
    %v2526 = vmul.f32 %v2475, 1.442695
    %v2527 = vpow.pop %v2526
    %v2528 = vmul.f32 %v2476, 1.442695
    %v2529 = vpow.pop %v2528
    %v2530 = vmul.f32 %v2477, 1.442695
    %v2531 = vpow.pop %v2530
    %v2532 = vmul.f32 %v2478, 1.442695
    %v2533 = vpow.pop %v2532
    %v2534 = vmul.f32 %v2479, 1.442695
    %v2535 = vpow.pop %v2534
    %v2536 = vmul.f32 %v2480, 1.442695
    %v2537 = vpow.pop %v2536
    %v2538 = vmul.f32 %v2481, 1.442695
    %v2539 = vpow.pop %v2538
    %v2540 = vmul.f32 %v2482, 1.442695
    %v2541 = vpow.pop %v2540
    %v2542 = vmul.f32 %v2483, 1.442695
    %v2543 = vpow.pop %v2542
    %v2544 = vmul.f32 %v2484, 1.442695
    %v2545 = vpow.pop %v2544
    %v2546 = vmul.f32 %v2485, 1.442695
    %v2547 = vpow.pop %v2546
    %v2548 = vmul.f32 %v2486, 1.442695
    %v2549 = vpow.pop %v2548
    %v2550 = vmul.f32 %v2487, 1.442695
    %v2551 = vpow.pop %v2550
    %v2552 = vadd.f32 %v2393, %v2489
    %v2553 = vadd.f32 %v2395, %v2491
    %v2554 = vadd.f32 %v2397, %v2493
    %v2555 = vadd.f32 %v2399, %v2495
    %v2556 = vadd.f32 %v2401, %v2497
    %v2557 = vadd.f32 %v2403, %v2499
    %v2558 = vadd.f32 %v2405, %v2501
    %v2559 = vadd.f32 %v2407, %v2503
    %v2560 = vadd.f32 %v2409, %v2505
    %v2561 = vadd.f32 %v2411, %v2507
    %v2562 = vadd.f32 %v2413, %v2509
    %v2563 = vadd.f32 %v2415, %v2511
    %v2564 = vadd.f32 %v2417, %v2513
    %v2565 = vadd.f32 %v2419, %v2515
    %v2566 = vadd.f32 %v2421, %v2517
    %v2567 = vadd.f32 %v2423, %v2519
    %v2568 = vadd.f32 %v2425, %v2521
    %v2569 = vadd.f32 %v2427, %v2523
    %v2570 = vadd.f32 %v2429, %v2525
    %v2571 = vadd.f32 %v2431, %v2527
    %v2572 = vadd.f32 %v2433, %v2529
    %v2573 = vadd.f32 %v2435, %v2531
    %v2574 = vadd.f32 %v2437, %v2533
    %v2575 = vadd.f32 %v2439, %v2535
    %v2576 = vadd.f32 %v2441, %v2537
    %v2577 = vadd.f32 %v2443, %v2539
    %v2578 = vadd.f32 %v2445, %v2541
    %v2579 = vadd.f32 %v2447, %v2543
    %v2580 = vadd.f32 %v2449, %v2545
    %v2581 = vadd.f32 %v2451, %v2547
    %v2582 = vadd.f32 %v2453, %v2549
    %v2583 = vadd.f32 %v2455, %v2551
    %v2584 = vrcp.pop %v2552
    %v2585 = vrcp.pop %v2553
    %v2586 = vrcp.pop %v2554
    %v2587 = vrcp.pop %v2555
    %v2588 = vrcp.pop %v2556
    %v2589 = vrcp.pop %v2557
    %v2590 = vrcp.pop %v2558
    %v2591 = vrcp.pop %v2559
    %v2592 = vrcp.pop %v2560
    %v2593 = vrcp.pop %v2561
    %v2594 = vrcp.pop %v2562
    %v2595 = vrcp.pop %v2563
    %v2596 = vrcp.pop %v2564
    %v2597 = vrcp.pop %v2565
    %v2598 = vrcp.pop %v2566
    %v2599 = vrcp.pop %v2567
    %v2600 = vrcp.pop %v2568
    %v2601 = vrcp.pop %v2569
    %v2602 = vrcp.pop %v2570
    %v2603 = vrcp.pop %v2571
    %v2604 = vrcp.pop %v2572
    %v2605 = vrcp.pop %v2573
    %v2606 = vrcp.pop %v2574
    %v2607 = vrcp.pop %v2575
    %v2608 = vrcp.pop %v2576
    %v2609 = vrcp.pop %v2577
    %v2610 = vrcp.pop %v2578
    %v2611 = vrcp.pop %v2579
    %v2612 = vrcp.pop %v2580
    %v2613 = vrcp.pop %v2581
    %v2614 = vrcp.pop %v2582
    %v2615 = vrcp.pop %v2583
    %v2616 = vmul.f32 %v2393, %v2584
    %v2617 = vmul.f32 %v2395, %v2585
    %v2618 = vmul.f32 %v2397, %v2586
    %v2619 = vmul.f32 %v2399, %v2587
    %v2620 = vmul.f32 %v2401, %v2588
    %v2621 = vmul.f32 %v2403, %v2589
    %v2622 = vmul.f32 %v2405, %v2590
    %v2623 = vmul.f32 %v2407, %v2591
    %v2624 = vmul.f32 %v2409, %v2592
    %v2625 = vmul.f32 %v2411, %v2593
    %v2626 = vmul.f32 %v2413, %v2594
    %v2627 = vmul.f32 %v2415, %v2595
    %v2628 = vmul.f32 %v2417, %v2596
    %v2629 = vmul.f32 %v2419, %v2597
    %v2630 = vmul.f32 %v2421, %v2598
    %v2631 = vmul.f32 %v2423, %v2599
    %v2632 = vmul.f32 %v2425, %v2600
    %v2633 = vmul.f32 %v2427, %v2601
    %v2634 = vmul.f32 %v2429, %v2602
    %v2635 = vmul.f32 %v2431, %v2603
    %v2636 = vmul.f32 %v2433, %v2604
    %v2637 = vmul.f32 %v2435, %v2605
    %v2638 = vmul.f32 %v2437, %v2606
    %v2639 = vmul.f32 %v2439, %v2607
    %v2640 = vmul.f32 %v2441, %v2608
    %v2641 = vmul.f32 %v2443, %v2609
    %v2642 = vmul.f32 %v2445, %v2610
    %v2643 = vmul.f32 %v2447, %v2611
    %v2644 = vmul.f32 %v2449, %v2612
    %v2645 = vmul.f32 %v2451, %v2613
    %v2646 = vmul.f32 %v2453, %v2614
    %v2647 = vmul.f32 %v2455, %v2615
    %v2648 = vmul.f32 %v2489, %v2584
    %v2649 = vmul.f32 %v2491, %v2585
    %v2650 = vmul.f32 %v2493, %v2586
    %v2651 = vmul.f32 %v2495, %v2587
    %v2652 = vmul.f32 %v2497, %v2588
    %v2653 = vmul.f32 %v2499, %v2589
    %v2654 = vmul.f32 %v2501, %v2590
    %v2655 = vmul.f32 %v2503, %v2591
    %v2656 = vmul.f32 %v2505, %v2592
    %v2657 = vmul.f32 %v2507, %v2593
    %v2658 = vmul.f32 %v2509, %v2594
    %v2659 = vmul.f32 %v2511, %v2595
    %v2660 = vmul.f32 %v2513, %v2596
    %v2661 = vmul.f32 %v2515, %v2597
    %v2662 = vmul.f32 %v2517, %v2598
    %v2663 = vmul.f32 %v2519, %v2599
    %v2664 = vmul.f32 %v2521, %v2600
    %v2665 = vmul.f32 %v2523, %v2601
    %v2666 = vmul.f32 %v2525, %v2602
    %v2667 = vmul.f32 %v2527, %v2603
    %v2668 = vmul.f32 %v2529, %v2604
    %v2669 = vmul.f32 %v2531, %v2605
    %v2670 = vmul.f32 %v2533, %v2606
    %v2671 = vmul.f32 %v2535, %v2607
    %v2672 = vmul.f32 %v2537, %v2608
    %v2673 = vmul.f32 %v2539, %v2609
    %v2674 = vmul.f32 %v2541, %v2610
    %v2675 = vmul.f32 %v2543, %v2611
    %v2676 = vmul.f32 %v2545, %v2612
    %v2677 = vmul.f32 %v2547, %v2613
    %v2678 = vmul.f32 %v2549, %v2614
    %v2679 = vmul.f32 %v2551, %v2615
    %2681 = vset.pattern.permute.xlu0 0
    %2682 = vperm.xlu0 %2681, %v2616
    %v2683 = vpop.permute.xlu0 %2682
    %2686 = vset.pattern.permute.xlu0 0
    %2687 = vperm.xlu0 %2686, %v2617
    %v2688 = vpop.permute.xlu0 %2687
    %2691 = vset.pattern.permute.xlu0 0
    %2692 = vperm.xlu0 %2691, %v2618
    %v2693 = vpop.permute.xlu0 %2692
    %2696 = vset.pattern.permute.xlu0 0
    %2697 = vperm.xlu0 %2696, %v2619
    %v2698 = vpop.permute.xlu0 %2697
    %2701 = vset.pattern.permute.xlu0 0
    %2702 = vperm.xlu0 %2701, %v2620
    %v2703 = vpop.permute.xlu0 %2702
    %2706 = vset.pattern.permute.xlu0 0
    %2707 = vperm.xlu0 %2706, %v2621
    %v2708 = vpop.permute.xlu0 %2707
    %2711 = vset.pattern.permute.xlu0 0
    %2712 = vperm.xlu0 %2711, %v2622
    %v2713 = vpop.permute.xlu0 %2712
    %2716 = vset.pattern.permute.xlu0 0
    %2717 = vperm.xlu0 %2716, %v2623
    %v2718 = vpop.permute.xlu0 %2717
    %2721 = vset.pattern.permute.xlu0 0
    %2722 = vperm.xlu0 %2721, %v2624
    %v2723 = vpop.permute.xlu0 %2722
    %2726 = vset.pattern.permute.xlu0 0
    %2727 = vperm.xlu0 %2726, %v2625
    %v2728 = vpop.permute.xlu0 %2727
    %2731 = vset.pattern.permute.xlu0 0
    %2732 = vperm.xlu0 %2731, %v2626
    %v2733 = vpop.permute.xlu0 %2732
    %2736 = vset.pattern.permute.xlu0 0
    %2737 = vperm.xlu0 %2736, %v2627
    %v2738 = vpop.permute.xlu0 %2737
    %2741 = vset.pattern.permute.xlu0 0
    %2742 = vperm.xlu0 %2741, %v2628
    %v2743 = vpop.permute.xlu0 %2742
    %2746 = vset.pattern.permute.xlu0 0
    %2747 = vperm.xlu0 %2746, %v2629
    %v2748 = vpop.permute.xlu0 %2747
    %2751 = vset.pattern.permute.xlu0 0
    %2752 = vperm.xlu0 %2751, %v2630
    %v2753 = vpop.permute.xlu0 %2752
    %2756 = vset.pattern.permute.xlu0 0
    %2757 = vperm.xlu0 %2756, %v2631
    %v2758 = vpop.permute.xlu0 %2757
    %2761 = vset.pattern.permute.xlu0 0
    %2762 = vperm.xlu0 %2761, %v2632
    %v2763 = vpop.permute.xlu0 %2762
    %2766 = vset.pattern.permute.xlu0 0
    %2767 = vperm.xlu0 %2766, %v2633
    %v2768 = vpop.permute.xlu0 %2767
    %2771 = vset.pattern.permute.xlu0 0
    %2772 = vperm.xlu0 %2771, %v2634
    %v2773 = vpop.permute.xlu0 %2772
    %2776 = vset.pattern.permute.xlu0 0
    %2777 = vperm.xlu0 %2776, %v2635
    %v2778 = vpop.permute.xlu0 %2777
    %2781 = vset.pattern.permute.xlu0 0
    %2782 = vperm.xlu0 %2781, %v2636
    %v2783 = vpop.permute.xlu0 %2782
    %2786 = vset.pattern.permute.xlu0 0
    %2787 = vperm.xlu0 %2786, %v2637
    %v2788 = vpop.permute.xlu0 %2787
    %2791 = vset.pattern.permute.xlu0 0
    %2792 = vperm.xlu0 %2791, %v2638
    %v2793 = vpop.permute.xlu0 %2792
    %2796 = vset.pattern.permute.xlu0 0
    %2797 = vperm.xlu0 %2796, %v2639
    %v2798 = vpop.permute.xlu0 %2797
    %2801 = vset.pattern.permute.xlu0 0
    %2802 = vperm.xlu0 %2801, %v2640
    %v2803 = vpop.permute.xlu0 %2802
    %2806 = vset.pattern.permute.xlu0 0
    %2807 = vperm.xlu0 %2806, %v2641
    %v2808 = vpop.permute.xlu0 %2807
    %2811 = vset.pattern.permute.xlu0 0
    %2812 = vperm.xlu0 %2811, %v2642
    %v2813 = vpop.permute.xlu0 %2812
    %2816 = vset.pattern.permute.xlu0 0
    %2817 = vperm.xlu0 %2816, %v2643
    %v2818 = vpop.permute.xlu0 %2817
    %2821 = vset.pattern.permute.xlu0 0
    %2822 = vperm.xlu0 %2821, %v2644
    %v2823 = vpop.permute.xlu0 %2822
    %2826 = vset.pattern.permute.xlu0 0
    %2827 = vperm.xlu0 %2826, %v2645
    %v2828 = vpop.permute.xlu0 %2827
    %2831 = vset.pattern.permute.xlu0 0
    %2832 = vperm.xlu0 %2831, %v2646
    %v2833 = vpop.permute.xlu0 %2832
    %2836 = vset.pattern.permute.xlu0 0
    %2837 = vperm.xlu0 %2836, %v2647
    %v2838 = vpop.permute.xlu0 %2837
    %v2840 = vmul.f32 %v2683, %v708
    %v2841 = vmul.f32 %v2683, %v899
    %v2842 = vmul.f32 %v2688, %v712
    %v2843 = vmul.f32 %v2688, %v902
    %v2844 = vmul.f32 %v2693, %v718
    %v2845 = vmul.f32 %v2693, %v907
    %v2846 = vmul.f32 %v2698, %v722
    %v2847 = vmul.f32 %v2698, %v910
    %v2848 = vmul.f32 %v2703, %v728
    %v2849 = vmul.f32 %v2703, %v915
    %v2850 = vmul.f32 %v2708, %v732
    %v2851 = vmul.f32 %v2708, %v918
    %v2852 = vmul.f32 %v2713, %v738
    %v2853 = vmul.f32 %v2713, %v923
    %v2854 = vmul.f32 %v2718, %v742
    %v2855 = vmul.f32 %v2718, %v926
    %v2856 = vmul.f32 %v2723, %v748
    %v2857 = vmul.f32 %v2723, %v931
    %v2858 = vmul.f32 %v2728, %v752
    %v2859 = vmul.f32 %v2728, %v934
    %v2860 = vmul.f32 %v2733, %v758
    %v2861 = vmul.f32 %v2733, %v939
    %v2862 = vmul.f32 %v2738, %v762
    %v2863 = vmul.f32 %v2738, %v942
    %v2864 = vmul.f32 %v2743, %v768
    %v2865 = vmul.f32 %v2743, %v947
    %v2866 = vmul.f32 %v2748, %v772
    %v2867 = vmul.f32 %v2748, %v950
    %v2868 = vmul.f32 %v2753, %v778
    %v2869 = vmul.f32 %v2753, %v955
    %v2870 = vmul.f32 %v2758, %v782
    %v2871 = vmul.f32 %v2758, %v958
    %v2872 = vmul.f32 %v2763, %v788
    %v2873 = vmul.f32 %v2763, %v963
    %v2874 = vmul.f32 %v2768, %v792
    %v2875 = vmul.f32 %v2768, %v966
    %v2876 = vmul.f32 %v2773, %v798
    %v2877 = vmul.f32 %v2773, %v971
    %v2878 = vmul.f32 %v2778, %v802
    %v2879 = vmul.f32 %v2778, %v974
    %v2880 = vmul.f32 %v2783, %v808
    %v2881 = vmul.f32 %v2783, %v979
    %v2882 = vmul.f32 %v2788, %v812
    %v2883 = vmul.f32 %v2788, %v982
    %v2884 = vmul.f32 %v2793, %v818
    %v2885 = vmul.f32 %v2793, %v987
    %v2886 = vmul.f32 %v2798, %v822
    %v2887 = vmul.f32 %v2798, %v990
    %v2888 = vmul.f32 %v2803, %v828
    %v2889 = vmul.f32 %v2803, %v995
    %v2890 = vmul.f32 %v2808, %v832
    %v2891 = vmul.f32 %v2808, %v998
    %v2892 = vmul.f32 %v2813, %v838
    %v2893 = vmul.f32 %v2813, %v1003
    %v2894 = vmul.f32 %v2818, %v842
    %v2895 = vmul.f32 %v2818, %v1006
    %v2896 = vmul.f32 %v2823, %v848
    %v2897 = vmul.f32 %v2823, %v1011
    %v2898 = vmul.f32 %v2828, %v852
    %v2899 = vmul.f32 %v2828, %v1014
    %v2900 = vmul.f32 %v2833, %v858
    %v2901 = vmul.f32 %v2833, %v1019
    %v2902 = vmul.f32 %v2838, %v862
    %v2903 = vmul.f32 %v2838, %v1022
    %2905 = vset.pattern.permute.xlu0 0
    %2906 = vperm.xlu0 %2905, %v2648
    %v2907 = vpop.permute.xlu0 %2906
    %2910 = vset.pattern.permute.xlu0 0
    %2911 = vperm.xlu0 %2910, %v2649
    %v2912 = vpop.permute.xlu0 %2911
    %2915 = vset.pattern.permute.xlu0 0
    %2916 = vperm.xlu0 %2915, %v2650
    %v2917 = vpop.permute.xlu0 %2916
    %2920 = vset.pattern.permute.xlu0 0
    %2921 = vperm.xlu0 %2920, %v2651
    %v2922 = vpop.permute.xlu0 %2921
    %2925 = vset.pattern.permute.xlu0 0
    %2926 = vperm.xlu0 %2925, %v2652
    %v2927 = vpop.permute.xlu0 %2926
    %2930 = vset.pattern.permute.xlu0 0
    %2931 = vperm.xlu0 %2930, %v2653
    %v2932 = vpop.permute.xlu0 %2931
    %2935 = vset.pattern.permute.xlu0 0
    %2936 = vperm.xlu0 %2935, %v2654
    %v2937 = vpop.permute.xlu0 %2936
    %2940 = vset.pattern.permute.xlu0 0
    %2941 = vperm.xlu0 %2940, %v2655
    %v2942 = vpop.permute.xlu0 %2941
    %2945 = vset.pattern.permute.xlu0 0
    %2946 = vperm.xlu0 %2945, %v2656
    %v2947 = vpop.permute.xlu0 %2946
    %2950 = vset.pattern.permute.xlu0 0
    %2951 = vperm.xlu0 %2950, %v2657
    %v2952 = vpop.permute.xlu0 %2951
    %2955 = vset.pattern.permute.xlu0 0
    %2956 = vperm.xlu0 %2955, %v2658
    %v2957 = vpop.permute.xlu0 %2956
    %2960 = vset.pattern.permute.xlu0 0
    %2961 = vperm.xlu0 %2960, %v2659
    %v2962 = vpop.permute.xlu0 %2961
    %2965 = vset.pattern.permute.xlu0 0
    %2966 = vperm.xlu0 %2965, %v2660
    %v2967 = vpop.permute.xlu0 %2966
    %2970 = vset.pattern.permute.xlu0 0
    %2971 = vperm.xlu0 %2970, %v2661
    %v2972 = vpop.permute.xlu0 %2971
    %2975 = vset.pattern.permute.xlu0 0
    %2976 = vperm.xlu0 %2975, %v2662
    %v2977 = vpop.permute.xlu0 %2976
    %2980 = vset.pattern.permute.xlu0 0
    %2981 = vperm.xlu0 %2980, %v2663
    %v2982 = vpop.permute.xlu0 %2981
    %2985 = vset.pattern.permute.xlu0 0
    %2986 = vperm.xlu0 %2985, %v2664
    %v2987 = vpop.permute.xlu0 %2986
    %2990 = vset.pattern.permute.xlu0 0
    %2991 = vperm.xlu0 %2990, %v2665
    %v2992 = vpop.permute.xlu0 %2991
    %2995 = vset.pattern.permute.xlu0 0
    %2996 = vperm.xlu0 %2995, %v2666
    %v2997 = vpop.permute.xlu0 %2996
    %3000 = vset.pattern.permute.xlu0 0
    %3001 = vperm.xlu0 %3000, %v2667
    %v3002 = vpop.permute.xlu0 %3001
    %3005 = vset.pattern.permute.xlu0 0
    %3006 = vperm.xlu0 %3005, %v2668
    %v3007 = vpop.permute.xlu0 %3006
    %3010 = vset.pattern.permute.xlu0 0
    %3011 = vperm.xlu0 %3010, %v2669
    %v3012 = vpop.permute.xlu0 %3011
    %3015 = vset.pattern.permute.xlu0 0
    %3016 = vperm.xlu0 %3015, %v2670
    %v3017 = vpop.permute.xlu0 %3016
    %3020 = vset.pattern.permute.xlu0 0
    %3021 = vperm.xlu0 %3020, %v2671
    %v3022 = vpop.permute.xlu0 %3021
    %3025 = vset.pattern.permute.xlu0 0
    %3026 = vperm.xlu0 %3025, %v2672
    %v3027 = vpop.permute.xlu0 %3026
    %3030 = vset.pattern.permute.xlu0 0
    %3031 = vperm.xlu0 %3030, %v2673
    %v3032 = vpop.permute.xlu0 %3031
    %3035 = vset.pattern.permute.xlu0 0
    %3036 = vperm.xlu0 %3035, %v2674
    %v3037 = vpop.permute.xlu0 %3036
    %3040 = vset.pattern.permute.xlu0 0
    %3041 = vperm.xlu0 %3040, %v2675
    %v3042 = vpop.permute.xlu0 %3041
    %3045 = vset.pattern.permute.xlu0 0
    %3046 = vperm.xlu0 %3045, %v2676
    %v3047 = vpop.permute.xlu0 %3046
    %3050 = vset.pattern.permute.xlu0 0
    %3051 = vperm.xlu0 %3050, %v2677
    %v3052 = vpop.permute.xlu0 %3051
    %3055 = vset.pattern.permute.xlu0 0
    %3056 = vperm.xlu0 %3055, %v2678
    %v3057 = vpop.permute.xlu0 %3056
    %3060 = vset.pattern.permute.xlu0 0
    %3061 = vperm.xlu0 %3060, %v2679
    %v3062 = vpop.permute.xlu0 %3061
    %v3064 = vmul.f32 %v2907, %v1542
    %v3065 = vmul.f32 %v2907, %v1733
    %v3066 = vmul.f32 %v2912, %v1546
    %v3067 = vmul.f32 %v2912, %v1736
    %v3068 = vmul.f32 %v2917, %v1552
    %v3069 = vmul.f32 %v2917, %v1741
    %v3070 = vmul.f32 %v2922, %v1556
    %v3071 = vmul.f32 %v2922, %v1744
    %v3072 = vmul.f32 %v2927, %v1562
    %v3073 = vmul.f32 %v2927, %v1749
    %v3074 = vmul.f32 %v2932, %v1566
    %v3075 = vmul.f32 %v2932, %v1752
    %v3076 = vmul.f32 %v2937, %v1572
    %v3077 = vmul.f32 %v2937, %v1757
    %v3078 = vmul.f32 %v2942, %v1576
    %v3079 = vmul.f32 %v2942, %v1760
    %v3080 = vmul.f32 %v2947, %v1582
    %v3081 = vmul.f32 %v2947, %v1765
    %v3082 = vmul.f32 %v2952, %v1586
    %v3083 = vmul.f32 %v2952, %v1768
    %v3084 = vmul.f32 %v2957, %v1592
    %v3085 = vmul.f32 %v2957, %v1773
    %v3086 = vmul.f32 %v2962, %v1596
    %v3087 = vmul.f32 %v2962, %v1776
    %v3088 = vmul.f32 %v2967, %v1602
    %v3089 = vmul.f32 %v2967, %v1781
    %v3090 = vmul.f32 %v2972, %v1606
    %v3091 = vmul.f32 %v2972, %v1784
    %v3092 = vmul.f32 %v2977, %v1612
    %v3093 = vmul.f32 %v2977, %v1789
    %v3094 = vmul.f32 %v2982, %v1616
    %v3095 = vmul.f32 %v2982, %v1792
    %v3096 = vmul.f32 %v2987, %v1622
    %v3097 = vmul.f32 %v2987, %v1797
    %v3098 = vmul.f32 %v2992, %v1626
    %v3099 = vmul.f32 %v2992, %v1800
    %v3100 = vmul.f32 %v2997, %v1632
    %v3101 = vmul.f32 %v2997, %v1805
    %v3102 = vmul.f32 %v3002, %v1636
    %v3103 = vmul.f32 %v3002, %v1808
    %v3104 = vmul.f32 %v3007, %v1642
    %v3105 = vmul.f32 %v3007, %v1813
    %v3106 = vmul.f32 %v3012, %v1646
    %v3107 = vmul.f32 %v3012, %v1816
    %v3108 = vmul.f32 %v3017, %v1652
    %v3109 = vmul.f32 %v3017, %v1821
    %v3110 = vmul.f32 %v3022, %v1656
    %v3111 = vmul.f32 %v3022, %v1824
    %v3112 = vmul.f32 %v3027, %v1662
    %v3113 = vmul.f32 %v3027, %v1829
    %v3114 = vmul.f32 %v3032, %v1666
    %v3115 = vmul.f32 %v3032, %v1832
    %v3116 = vmul.f32 %v3037, %v1672
    %v3117 = vmul.f32 %v3037, %v1837
    %v3118 = vmul.f32 %v3042, %v1676
    %v3119 = vmul.f32 %v3042, %v1840
    %v3120 = vmul.f32 %v3047, %v1682
    %v3121 = vmul.f32 %v3047, %v1845
    %v3122 = vmul.f32 %v3052, %v1686
    %v3123 = vmul.f32 %v3052, %v1848
    %v3124 = vmul.f32 %v3057, %v1692
    %v3125 = vmul.f32 %v3057, %v1853
    %v3126 = vmul.f32 %v3062, %v1696
    %v3127 = vmul.f32 %v3062, %v1856
    %v3128 = vadd.f32 %v2840, %v3064
    %v3129 = vadd.f32 %v2841, %v3065
    %v3130 = vadd.f32 %v2842, %v3066
    %v3131 = vadd.f32 %v2843, %v3067
    %v3132 = vadd.f32 %v2844, %v3068
    %v3133 = vadd.f32 %v2845, %v3069
    %v3134 = vadd.f32 %v2846, %v3070
    %v3135 = vadd.f32 %v2847, %v3071
    %v3136 = vadd.f32 %v2848, %v3072
    %v3137 = vadd.f32 %v2849, %v3073
    %v3138 = vadd.f32 %v2850, %v3074
    %v3139 = vadd.f32 %v2851, %v3075
    %v3140 = vadd.f32 %v2852, %v3076
    %v3141 = vadd.f32 %v2853, %v3077
    %v3142 = vadd.f32 %v2854, %v3078
    %v3143 = vadd.f32 %v2855, %v3079
    %v3144 = vadd.f32 %v2856, %v3080
    %v3145 = vadd.f32 %v2857, %v3081
    %v3146 = vadd.f32 %v2858, %v3082
    %v3147 = vadd.f32 %v2859, %v3083
    %v3148 = vadd.f32 %v2860, %v3084
    %v3149 = vadd.f32 %v2861, %v3085
    %v3150 = vadd.f32 %v2862, %v3086
    %v3151 = vadd.f32 %v2863, %v3087
    %v3152 = vadd.f32 %v2864, %v3088
    %v3153 = vadd.f32 %v2865, %v3089
    %v3154 = vadd.f32 %v2866, %v3090
    %v3155 = vadd.f32 %v2867, %v3091
    %v3156 = vadd.f32 %v2868, %v3092
    %v3157 = vadd.f32 %v2869, %v3093
    %v3158 = vadd.f32 %v2870, %v3094
    %v3159 = vadd.f32 %v2871, %v3095
    %v3160 = vadd.f32 %v2872, %v3096
    %v3161 = vadd.f32 %v2873, %v3097
    %v3162 = vadd.f32 %v2874, %v3098
    %v3163 = vadd.f32 %v2875, %v3099
    %v3164 = vadd.f32 %v2876, %v3100
    %v3165 = vadd.f32 %v2877, %v3101
    %v3166 = vadd.f32 %v2878, %v3102
    %v3167 = vadd.f32 %v2879, %v3103
    %v3168 = vadd.f32 %v2880, %v3104
    %v3169 = vadd.f32 %v2881, %v3105
    %v3170 = vadd.f32 %v2882, %v3106
    %v3171 = vadd.f32 %v2883, %v3107
    %v3172 = vadd.f32 %v2884, %v3108
    %v3173 = vadd.f32 %v2885, %v3109
    %v3174 = vadd.f32 %v2886, %v3110
    %v3175 = vadd.f32 %v2887, %v3111
    %v3176 = vadd.f32 %v2888, %v3112
    %v3177 = vadd.f32 %v2889, %v3113
    %v3178 = vadd.f32 %v2890, %v3114
    %v3179 = vadd.f32 %v2891, %v3115
    %v3180 = vadd.f32 %v2892, %v3116
    %v3181 = vadd.f32 %v2893, %v3117
    %v3182 = vadd.f32 %v2894, %v3118
    %v3183 = vadd.f32 %v2895, %v3119
    %v3184 = vadd.f32 %v2896, %v3120
    %v3185 = vadd.f32 %v2897, %v3121
    %v3186 = vadd.f32 %v2898, %v3122
    %v3187 = vadd.f32 %v2899, %v3123
    %v3188 = vadd.f32 %v2900, %v3124
    %v3189 = vadd.f32 %v2901, %v3125
    %v3190 = vadd.f32 %v2902, %v3126
    %v3191 = vadd.f32 %v2903, %v3127
    %v3192 = vld [vmem:[%s7] sm:$0x3]
    %v3194 = vlaneseq
    %v3195 = vshrl.u32 %v3194, 7
    %v3196 = vsub.s32 0, %v3195
    %v3197 = vrot.slane %v3192, %v3196
    %v3198 = vlaneseq
    %v3199 = vshrl.u32 %v3198, 7
    %v3200 = vsub.s32 1, %v3199
    %v3201 = vrot.slane %v3192, %v3200
    %v3204 = vadd.f32 %v3128, %v3197
    %v3205 = vadd.f32 %v3129, %v3201
    %v3206 = vadd.f32 %v3130, %v3197
    %v3207 = vadd.f32 %v3131, %v3201
    %v3208 = vadd.f32 %v3132, %v3197
    %v3209 = vadd.f32 %v3133, %v3201
    %v3210 = vadd.f32 %v3134, %v3197
    %v3211 = vadd.f32 %v3135, %v3201
    %v3212 = vadd.f32 %v3136, %v3197
    %v3213 = vadd.f32 %v3137, %v3201
    %v3214 = vadd.f32 %v3138, %v3197
    %v3215 = vadd.f32 %v3139, %v3201
    %v3216 = vadd.f32 %v3140, %v3197
    %v3217 = vadd.f32 %v3141, %v3201
    %v3218 = vadd.f32 %v3142, %v3197
    %v3219 = vadd.f32 %v3143, %v3201
    %v3220 = vadd.f32 %v3144, %v3197
    %v3221 = vadd.f32 %v3145, %v3201
    %v3222 = vadd.f32 %v3146, %v3197
    %v3223 = vadd.f32 %v3147, %v3201
    %v3224 = vadd.f32 %v3148, %v3197
    %v3225 = vadd.f32 %v3149, %v3201
    %v3226 = vadd.f32 %v3150, %v3197
    %v3227 = vadd.f32 %v3151, %v3201
    %v3228 = vadd.f32 %v3152, %v3197
    %v3229 = vadd.f32 %v3153, %v3201
    %v3230 = vadd.f32 %v3154, %v3197
    %v3231 = vadd.f32 %v3155, %v3201
    %v3232 = vadd.f32 %v3156, %v3197
    %v3233 = vadd.f32 %v3157, %v3201
    %v3234 = vadd.f32 %v3158, %v3197
    %v3235 = vadd.f32 %v3159, %v3201
    %v3236 = vadd.f32 %v3160, %v3197
    %v3237 = vadd.f32 %v3161, %v3201
    %v3238 = vadd.f32 %v3162, %v3197
    %v3239 = vadd.f32 %v3163, %v3201
    %v3240 = vadd.f32 %v3164, %v3197
    %v3241 = vadd.f32 %v3165, %v3201
    %v3242 = vadd.f32 %v3166, %v3197
    %v3243 = vadd.f32 %v3167, %v3201
    %v3244 = vadd.f32 %v3168, %v3197
    %v3245 = vadd.f32 %v3169, %v3201
    %v3246 = vadd.f32 %v3170, %v3197
    %v3247 = vadd.f32 %v3171, %v3201
    %v3248 = vadd.f32 %v3172, %v3197
    %v3249 = vadd.f32 %v3173, %v3201
    %v3250 = vadd.f32 %v3174, %v3197
    %v3251 = vadd.f32 %v3175, %v3201
    %v3252 = vadd.f32 %v3176, %v3197
    %v3253 = vadd.f32 %v3177, %v3201
    %v3254 = vadd.f32 %v3178, %v3197
    %v3255 = vadd.f32 %v3179, %v3201
    %v3256 = vadd.f32 %v3180, %v3197
    %v3257 = vadd.f32 %v3181, %v3201
    %v3258 = vadd.f32 %v3182, %v3197
    %v3259 = vadd.f32 %v3183, %v3201
    %v3260 = vadd.f32 %v3184, %v3197
    %v3261 = vadd.f32 %v3185, %v3201
    %v3262 = vadd.f32 %v3186, %v3197
    %v3263 = vadd.f32 %v3187, %v3201
    %v3264 = vadd.f32 %v3188, %v3197
    %v3265 = vadd.f32 %v3189, %v3201
    %v3266 = vadd.f32 %v3190, %v3197
    %v3267 = vadd.f32 %v3191, %v3201
    %v3268 = vmax.f32 %v3204, 0.0
    %v3269 = vmax.f32 %v3205, 0.0
    %v3270 = vmax.f32 %v3206, 0.0
    %v3271 = vmax.f32 %v3207, 0.0
    %v3272 = vmax.f32 %v3208, 0.0
    %v3273 = vmax.f32 %v3209, 0.0
    %v3274 = vmax.f32 %v3210, 0.0
    %v3275 = vmax.f32 %v3211, 0.0
    %v3276 = vmax.f32 %v3212, 0.0
    %v3277 = vmax.f32 %v3213, 0.0
    %v3278 = vmax.f32 %v3214, 0.0
    %v3279 = vmax.f32 %v3215, 0.0
    %v3280 = vmax.f32 %v3216, 0.0
    %v3281 = vmax.f32 %v3217, 0.0
    %v3282 = vmax.f32 %v3218, 0.0
    %v3283 = vmax.f32 %v3219, 0.0
    %v3284 = vmax.f32 %v3220, 0.0
    %v3285 = vmax.f32 %v3221, 0.0
    %v3286 = vmax.f32 %v3222, 0.0
    %v3287 = vmax.f32 %v3223, 0.0
    %v3288 = vmax.f32 %v3224, 0.0
    %v3289 = vmax.f32 %v3225, 0.0
    %v3290 = vmax.f32 %v3226, 0.0
    %v3291 = vmax.f32 %v3227, 0.0
    %v3292 = vmax.f32 %v3228, 0.0
    %v3293 = vmax.f32 %v3229, 0.0
    %v3294 = vmax.f32 %v3230, 0.0
    %v3295 = vmax.f32 %v3231, 0.0
    %v3296 = vmax.f32 %v3232, 0.0
    %v3297 = vmax.f32 %v3233, 0.0
    %v3298 = vmax.f32 %v3234, 0.0
    %v3299 = vmax.f32 %v3235, 0.0
    %v3300 = vmax.f32 %v3236, 0.0
    %v3301 = vmax.f32 %v3237, 0.0
    %v3302 = vmax.f32 %v3238, 0.0
    %v3303 = vmax.f32 %v3239, 0.0
    %v3304 = vmax.f32 %v3240, 0.0
    %v3305 = vmax.f32 %v3241, 0.0
    %v3306 = vmax.f32 %v3242, 0.0
    %v3307 = vmax.f32 %v3243, 0.0
    %v3308 = vmax.f32 %v3244, 0.0
    %v3309 = vmax.f32 %v3245, 0.0
    %v3310 = vmax.f32 %v3246, 0.0
    %v3311 = vmax.f32 %v3247, 0.0
    %v3312 = vmax.f32 %v3248, 0.0
    %v3313 = vmax.f32 %v3249, 0.0
    %v3314 = vmax.f32 %v3250, 0.0
    %v3315 = vmax.f32 %v3251, 0.0
    %v3316 = vmax.f32 %v3252, 0.0
    %v3317 = vmax.f32 %v3253, 0.0
    %v3318 = vmax.f32 %v3254, 0.0
    %v3319 = vmax.f32 %v3255, 0.0
    %v3320 = vmax.f32 %v3256, 0.0
    %v3321 = vmax.f32 %v3257, 0.0
    %v3322 = vmax.f32 %v3258, 0.0
    %v3323 = vmax.f32 %v3259, 0.0
    %v3324 = vmax.f32 %v3260, 0.0
    %v3325 = vmax.f32 %v3261, 0.0
    %v3326 = vmax.f32 %v3262, 0.0
    %v3327 = vmax.f32 %v3263, 0.0
    %v3328 = vmax.f32 %v3264, 0.0
    %v3329 = vmax.f32 %v3265, 0.0
    %v3330 = vmax.f32 %v3266, 0.0
    %v3331 = vmax.f32 %v3267, 0.0
    %v3332 = vpack.c.bf16 %v3270, %v3268
    %v3333 = vpack.c.bf16 %v3271, %v3269
    %v3334 = vpack.c.bf16 %v3274, %v3272
    %v3335 = vpack.c.bf16 %v3275, %v3273
    %v3336 = vpack.c.bf16 %v3278, %v3276
    %v3337 = vpack.c.bf16 %v3279, %v3277
    %v3338 = vpack.c.bf16 %v3282, %v3280
    %v3339 = vpack.c.bf16 %v3283, %v3281
    %v3340 = vpack.c.bf16 %v3286, %v3284
    %v3341 = vpack.c.bf16 %v3287, %v3285
    %v3342 = vpack.c.bf16 %v3290, %v3288
    %v3343 = vpack.c.bf16 %v3291, %v3289
    %v3344 = vpack.c.bf16 %v3294, %v3292
    %v3345 = vpack.c.bf16 %v3295, %v3293
    %v3346 = vpack.c.bf16 %v3298, %v3296
    %v3347 = vpack.c.bf16 %v3299, %v3297
    %v3348 = vpack.c.bf16 %v3302, %v3300
    %v3349 = vpack.c.bf16 %v3303, %v3301
    %v3350 = vpack.c.bf16 %v3306, %v3304
    %v3351 = vpack.c.bf16 %v3307, %v3305
    %v3352 = vpack.c.bf16 %v3310, %v3308
    %v3353 = vpack.c.bf16 %v3311, %v3309
    %v3354 = vpack.c.bf16 %v3314, %v3312
    %v3355 = vpack.c.bf16 %v3315, %v3313
    %v3356 = vpack.c.bf16 %v3318, %v3316
    %v3357 = vpack.c.bf16 %v3319, %v3317
    %v3358 = vpack.c.bf16 %v3322, %v3320
    %v3359 = vpack.c.bf16 %v3323, %v3321
    %v3360 = vpack.c.bf16 %v3326, %v3324
    %v3361 = vpack.c.bf16 %v3327, %v3325
    %v3362 = vpack.c.bf16 %v3330, %v3328
    %v3363 = vpack.c.bf16 %v3331, %v3329
    %v3364 = vld [vmem:[#allocation11] sm:$0xf]
    %v3365 = vld [vmem:[#allocation11 + $0x4] sm:$0xf]
    %v3366 = vld [vmem:[#allocation11 + $0x8] sm:$0xf]
    %v3367 = vld [vmem:[#allocation11 + $0xc] sm:$0xf]
    %v3368 = vld [vmem:[#allocation11 + $0x10] sm:$0xf]
    %v3369 = vld [vmem:[#allocation11 + $0x14] sm:$0xf]
    %v3370 = vld [vmem:[#allocation11 + $0x18] sm:$0xf]
    %v3371 = vld [vmem:[#allocation11 + $0x1c] sm:$0xf]
    %v3372 = vld [vmem:[#allocation11 + $0x20] sm:$0xf]
    %v3373 = vld [vmem:[#allocation11 + $0x24] sm:$0xf]
    %v3374 = vld [vmem:[#allocation11 + $0x28] sm:$0xf]
    %v3375 = vld [vmem:[#allocation11 + $0x2c] sm:$0xf]
    %v3376 = vld [vmem:[#allocation11 + $0x30] sm:$0xf]
    %v3377 = vld [vmem:[#allocation11 + $0x34] sm:$0xf]
    %v3378 = vld [vmem:[#allocation11 + $0x38] sm:$0xf]
    %v3379 = vld [vmem:[#allocation11 + $0x3c] sm:$0xf]
    %v3380 = vld [vmem:[#allocation11 + $0x40] sm:$0xf]
    %v3381 = vld [vmem:[#allocation11 + $0x44] sm:$0xf]
    %v3382 = vld [vmem:[#allocation11 + $0x48] sm:$0xf]
    %v3383 = vld [vmem:[#allocation11 + $0x4c] sm:$0xf]
    %v3384 = vld [vmem:[#allocation11 + $0x50] sm:$0xf]
    %v3385 = vld [vmem:[#allocation11 + $0x54] sm:$0xf]
    %v3386 = vld [vmem:[#allocation11 + $0x58] sm:$0xf]
    %v3387 = vld [vmem:[#allocation11 + $0x5c] sm:$0xf]
    %v3388 = vld [vmem:[#allocation11 + $0x60] sm:$0xf]
    %v3389 = vld [vmem:[#allocation11 + $0x64] sm:$0xf]
    %v3390 = vld [vmem:[#allocation11 + $0x68] sm:$0xf]
    %v3391 = vld [vmem:[#allocation11 + $0x6c] sm:$0xf]
    %v3392 = vld [vmem:[#allocation11 + $0x70] sm:$0xf]
    %v3393 = vld [vmem:[#allocation11 + $0x74] sm:$0xf]
    %v3394 = vld [vmem:[#allocation11 + $0x78] sm:$0xf]
    %v3395 = vld [vmem:[#allocation11 + $0x7c] sm:$0xf]
    %v3396 = vld [vmem:[%s9] sm:$0x1]
    %v3398 = vlaneseq
    %v3399 = vshrl.u32 %v3398, 7
    %v3400 = vsub.s32 0, %v3399
    %v3401 = vrot.slane %v3396, %v3400
    %v3435 = vunpack.c.l.b16 %v3364
    %v3436 = vunpack.c.l.b16 %v3365
    %v3437 = vunpack.c.l.b16 %v3366
    %v3438 = vunpack.c.l.b16 %v3367
    %v3439 = vunpack.c.l.b16 %v3368
    %v3440 = vunpack.c.l.b16 %v3369
    %v3441 = vunpack.c.l.b16 %v3370
    %v3442 = vunpack.c.l.b16 %v3371
    %v3443 = vunpack.c.l.b16 %v3372
    %v3444 = vunpack.c.l.b16 %v3373
    %v3445 = vunpack.c.l.b16 %v3374
    %v3446 = vunpack.c.l.b16 %v3375
    %v3447 = vunpack.c.l.b16 %v3376
    %v3448 = vunpack.c.l.b16 %v3377
    %v3449 = vunpack.c.l.b16 %v3378
    %v3450 = vunpack.c.l.b16 %v3379
    %v3451 = vunpack.c.l.b16 %v3380
    %v3452 = vunpack.c.l.b16 %v3381
    %v3453 = vunpack.c.l.b16 %v3382
    %v3454 = vunpack.c.l.b16 %v3383
    %v3455 = vunpack.c.l.b16 %v3384
    %v3456 = vunpack.c.l.b16 %v3385
    %v3457 = vunpack.c.l.b16 %v3386
    %v3458 = vunpack.c.l.b16 %v3387
    %v3459 = vunpack.c.l.b16 %v3388
    %v3460 = vunpack.c.l.b16 %v3389
    %v3461 = vunpack.c.l.b16 %v3390
    %v3462 = vunpack.c.l.b16 %v3391
    %v3463 = vunpack.c.l.b16 %v3392
    %v3464 = vunpack.c.l.b16 %v3393
    %v3465 = vunpack.c.l.b16 %v3394
    %v3466 = vunpack.c.l.b16 %v3395
    %v3467 = vpack.c.b16 %v3436, %v3435
    %v3468 = vpack.c.b16 %v3438, %v3437
    %v3469 = vpack.c.b16 %v3440, %v3439
    %v3470 = vpack.c.b16 %v3442, %v3441
    %v3471 = vpack.c.b16 %v3444, %v3443
    %v3472 = vpack.c.b16 %v3446, %v3445
    %v3473 = vpack.c.b16 %v3448, %v3447
    %v3474 = vpack.c.b16 %v3450, %v3449
    %v3475 = vpack.c.b16 %v3452, %v3451
    %v3476 = vpack.c.b16 %v3454, %v3453
    %v3477 = vpack.c.b16 %v3456, %v3455
    %v3478 = vpack.c.b16 %v3458, %v3457
    %v3479 = vpack.c.b16 %v3460, %v3459
    %v3480 = vpack.c.b16 %v3462, %v3461
    %v3481 = vpack.c.b16 %v3464, %v3463
    %v3482 = vpack.c.b16 %v3466, %v3465
    %3499 = vmatprep.subr.bf16.mxu0 0
    %3500 = vmatpush1.bf16.msra.mxu0 %v3474
    %3501 = vmatprep.subr.bf16.mxu0 0
    %3502 = vmatpush1.bf16.msra.mxu0 %v3473
    %3503 = vmatprep.subr.bf16.mxu0 0
    %3504 = vmatpush1.bf16.msra.mxu0 %v3472
    %3505 = vmatprep.subr.bf16.mxu0 0
    %3506 = vmatpush1.bf16.msra.mxu0 %v3471
    %3507 = vmatprep.subr.bf16.mxu0 0
    %3508 = vmatpush1.bf16.msra.mxu0 %v3470
    %3509 = vmatprep.subr.bf16.mxu0 0
    %3510 = vmatpush1.bf16.msra.mxu0 %v3469
    %3511 = vmatprep.subr.bf16.mxu0 0
    %3512 = vmatpush1.bf16.msra.mxu0 %v3468
    %3513 = vmatprep.subr.bf16.mxu0 0
    %3514 = vmatpush1.bf16.msra.mxu0 %v3467
    %3515 = vmatprep.subr.bf16.mxu0 0
    %3516 = vmatpush2.bf16.msra.mxu0 %v3482
    %3517 = vmatprep.subr.bf16.mxu0 0
    %3518 = vmatpush2.bf16.msra.mxu0 %v3481
    %3519 = vmatprep.subr.bf16.mxu0 0
    %3520 = vmatpush2.bf16.msra.mxu0 %v3480
    %3521 = vmatprep.subr.bf16.mxu0 0
    %3522 = vmatpush2.bf16.msra.mxu0 %v3479
    %3523 = vmatprep.subr.bf16.mxu0 0
    %3524 = vmatpush2.bf16.msra.mxu0 %v3478
    %3525 = vmatprep.subr.bf16.mxu0 0
    %3526 = vmatpush2.bf16.msra.mxu0 %v3477
    %3527 = vmatprep.subr.bf16.mxu0 0
    %3528 = vmatpush2.bf16.msra.mxu0 %v3476
    %3529 = vmatprep.subr.bf16.mxu0 0
    %3530 = vmatpush2.bf16.msra.mxu0 %v3475
    %3531 = vmatprep.mubr.bf16.mxu0 %v3333
    %3532 = vmatmul.mubr.bf16.gmra.mxu0 %v3332
    %v3533 = vpop.f32.mrf.mxu0
    %v3534 = vadd.f32 %v3401, %v3533
    %v3535 = vpop.f32.mrf.mxu0
    %v3536 = vpop.f32.mrf.mxu0
    %v3537 = vadd.f32 %v3401, %v3536
    %v3538 = vpop.f32.mrf.mxu0
    %3539 = vmatprep.mubr.bf16.mxu0 %v3335
    %3540 = vmatmul.mubr.bf16.gmra.mxu0 %v3334
    %v3541 = vpop.f32.mrf.mxu0
    %v3542 = vadd.f32 %v3401, %v3541
    %v3543 = vpop.f32.mrf.mxu0
    %v3544 = vpop.f32.mrf.mxu0
    %v3545 = vadd.f32 %v3401, %v3544
    %v3546 = vpop.f32.mrf.mxu0
    %3547 = vmatprep.mubr.bf16.mxu0 %v3337
    %3548 = vmatmul.mubr.bf16.gmra.mxu0 %v3336
    %v3549 = vpop.f32.mrf.mxu0
    %v3550 = vadd.f32 %v3401, %v3549
    %v3551 = vpop.f32.mrf.mxu0
    %v3552 = vpop.f32.mrf.mxu0
    %v3553 = vadd.f32 %v3401, %v3552
    %v3554 = vpop.f32.mrf.mxu0
    %3555 = vmatprep.mubr.bf16.mxu0 %v3339
    %3556 = vmatmul.mubr.bf16.gmra.mxu0 %v3338
    %v3557 = vpop.f32.mrf.mxu0
    %v3558 = vadd.f32 %v3401, %v3557
    %v3559 = vpop.f32.mrf.mxu0
    %v3560 = vpop.f32.mrf.mxu0
    %v3561 = vadd.f32 %v3401, %v3560
    %v3562 = vpop.f32.mrf.mxu0
    %3563 = vmatprep.mubr.bf16.mxu0 %v3341
    %3564 = vmatmul.mubr.bf16.gmra.mxu0 %v3340
    %v3565 = vpop.f32.mrf.mxu0
    %v3566 = vadd.f32 %v3401, %v3565
    %v3567 = vpop.f32.mrf.mxu0
    %v3568 = vpop.f32.mrf.mxu0
    %v3569 = vadd.f32 %v3401, %v3568
    %v3570 = vpop.f32.mrf.mxu0
    %3571 = vmatprep.mubr.bf16.mxu0 %v3343
    %3572 = vmatmul.mubr.bf16.gmra.mxu0 %v3342
    %v3573 = vpop.f32.mrf.mxu0
    %v3574 = vadd.f32 %v3401, %v3573
    %v3575 = vpop.f32.mrf.mxu0
    %v3576 = vpop.f32.mrf.mxu0
    %v3577 = vadd.f32 %v3401, %v3576
    %v3578 = vpop.f32.mrf.mxu0
    %3579 = vmatprep.mubr.bf16.mxu0 %v3345
    %3580 = vmatmul.mubr.bf16.gmra.mxu0 %v3344
    %v3581 = vpop.f32.mrf.mxu0
    %v3582 = vadd.f32 %v3401, %v3581
    %v3583 = vpop.f32.mrf.mxu0
    %v3584 = vpop.f32.mrf.mxu0
    %v3585 = vadd.f32 %v3401, %v3584
    %v3586 = vpop.f32.mrf.mxu0
    %3587 = vmatprep.mubr.bf16.mxu0 %v3347
    %3588 = vmatmul.mubr.bf16.gmra.mxu0 %v3346
    %v3589 = vpop.f32.mrf.mxu0
    %v3590 = vadd.f32 %v3401, %v3589
    %v3591 = vpop.f32.mrf.mxu0
    %v3592 = vpop.f32.mrf.mxu0
    %v3593 = vadd.f32 %v3401, %v3592
    %v3594 = vpop.f32.mrf.mxu0
    %3595 = vmatprep.mubr.bf16.mxu0 %v3349
    %3596 = vmatmul.mubr.bf16.gmra.mxu0 %v3348
    %v3597 = vpop.f32.mrf.mxu0
    %v3598 = vadd.f32 %v3401, %v3597
    %v3599 = vpop.f32.mrf.mxu0
    %v3600 = vpop.f32.mrf.mxu0
    %v3601 = vadd.f32 %v3401, %v3600
    %v3602 = vpop.f32.mrf.mxu0
    %3603 = vmatprep.mubr.bf16.mxu0 %v3351
    %3604 = vmatmul.mubr.bf16.gmra.mxu0 %v3350
    %v3605 = vpop.f32.mrf.mxu0
    %v3606 = vadd.f32 %v3401, %v3605
    %v3607 = vpop.f32.mrf.mxu0
    %v3608 = vpop.f32.mrf.mxu0
    %v3609 = vadd.f32 %v3401, %v3608
    %v3610 = vpop.f32.mrf.mxu0
    %3611 = vmatprep.mubr.bf16.mxu0 %v3353
    %3612 = vmatmul.mubr.bf16.gmra.mxu0 %v3352
    %v3613 = vpop.f32.mrf.mxu0
    %v3614 = vadd.f32 %v3401, %v3613
    %v3615 = vpop.f32.mrf.mxu0
    %v3616 = vpop.f32.mrf.mxu0
    %v3617 = vadd.f32 %v3401, %v3616
    %v3618 = vpop.f32.mrf.mxu0
    %3619 = vmatprep.mubr.bf16.mxu0 %v3355
    %3620 = vmatmul.mubr.bf16.gmra.mxu0 %v3354
    %v3621 = vpop.f32.mrf.mxu0
    %v3622 = vadd.f32 %v3401, %v3621
    %v3623 = vpop.f32.mrf.mxu0
    %v3624 = vpop.f32.mrf.mxu0
    %v3625 = vadd.f32 %v3401, %v3624
    %v3626 = vpop.f32.mrf.mxu0
    %3627 = vmatprep.mubr.bf16.mxu0 %v3357
    %3628 = vmatmul.mubr.bf16.gmra.mxu0 %v3356
    %v3629 = vpop.f32.mrf.mxu0
    %v3630 = vadd.f32 %v3401, %v3629
    %v3631 = vpop.f32.mrf.mxu0
    %v3632 = vpop.f32.mrf.mxu0
    %v3633 = vadd.f32 %v3401, %v3632
    %v3634 = vpop.f32.mrf.mxu0
    %3635 = vmatprep.mubr.bf16.mxu0 %v3359
    %3636 = vmatmul.mubr.bf16.gmra.mxu0 %v3358
    %v3637 = vpop.f32.mrf.mxu0
    %v3638 = vadd.f32 %v3401, %v3637
    %v3639 = vpop.f32.mrf.mxu0
    %v3640 = vpop.f32.mrf.mxu0
    %v3641 = vadd.f32 %v3401, %v3640
    %v3642 = vpop.f32.mrf.mxu0
    %3643 = vmatprep.mubr.bf16.mxu0 %v3361
    %3644 = vmatmul.mubr.bf16.gmra.mxu0 %v3360
    %v3645 = vpop.f32.mrf.mxu0
    %v3646 = vadd.f32 %v3401, %v3645
    %v3647 = vpop.f32.mrf.mxu0
    %v3648 = vpop.f32.mrf.mxu0
    %v3649 = vadd.f32 %v3401, %v3648
    %v3650 = vpop.f32.mrf.mxu0
    %3651 = vmatprep.mubr.bf16.mxu0 %v3363
    %3652 = vmatmul.mubr.bf16.gmra.mxu0 %v3362
    %v3653 = vpop.f32.mrf.mxu0
    %v3654 = vadd.f32 %v3401, %v3653
    %v3655 = vpop.f32.mrf.mxu0
    %v3656 = vpop.f32.mrf.mxu0
    %v3657 = vadd.f32 %v3401, %v3656
    %v3658 = vpop.f32.mrf.mxu0
    %3659 = vdwg.mxu0
    %v3660 = vmax.f32 %v3534, 0.0
    %v3661 = vmax.f32 %v3537, 0.0
    %v3662 = vmax.f32 %v3542, 0.0
    %v3663 = vmax.f32 %v3545, 0.0
    %v3664 = vmax.f32 %v3550, 0.0
    %v3665 = vmax.f32 %v3553, 0.0
    %v3666 = vmax.f32 %v3558, 0.0
    %v3667 = vmax.f32 %v3561, 0.0
    %v3668 = vmax.f32 %v3566, 0.0
    %v3669 = vmax.f32 %v3569, 0.0
    %v3670 = vmax.f32 %v3574, 0.0
    %v3671 = vmax.f32 %v3577, 0.0
    %v3672 = vmax.f32 %v3582, 0.0
    %v3673 = vmax.f32 %v3585, 0.0
    %v3674 = vmax.f32 %v3590, 0.0
    %v3675 = vmax.f32 %v3593, 0.0
    %v3676 = vmax.f32 %v3598, 0.0
    %v3677 = vmax.f32 %v3601, 0.0
    %v3678 = vmax.f32 %v3606, 0.0
    %v3679 = vmax.f32 %v3609, 0.0
    %v3680 = vmax.f32 %v3614, 0.0
    %v3681 = vmax.f32 %v3617, 0.0
    %v3682 = vmax.f32 %v3622, 0.0
    %v3683 = vmax.f32 %v3625, 0.0
    %v3684 = vmax.f32 %v3630, 0.0
    %v3685 = vmax.f32 %v3633, 0.0
    %v3686 = vmax.f32 %v3638, 0.0
    %v3687 = vmax.f32 %v3641, 0.0
    %v3688 = vmax.f32 %v3646, 0.0
    %v3689 = vmax.f32 %v3649, 0.0
    %v3690 = vmax.f32 %v3654, 0.0
    %v3691 = vmax.f32 %v3657, 0.0
    %v3692 = vpack.c.bf16 %v3661, %v3660
    %v3693 = vpack.c.bf16 %v3663, %v3662
    %v3694 = vpack.c.bf16 %v3665, %v3664
    %v3695 = vpack.c.bf16 %v3667, %v3666
    %v3696 = vpack.c.bf16 %v3669, %v3668
    %v3697 = vpack.c.bf16 %v3671, %v3670
    %v3698 = vpack.c.bf16 %v3673, %v3672
    %v3699 = vpack.c.bf16 %v3675, %v3674
    %v3700 = vpack.c.bf16 %v3677, %v3676
    %v3701 = vpack.c.bf16 %v3679, %v3678
    %v3702 = vpack.c.bf16 %v3681, %v3680
    %v3703 = vpack.c.bf16 %v3683, %v3682
    %v3704 = vpack.c.bf16 %v3685, %v3684
    %v3705 = vpack.c.bf16 %v3687, %v3686
    %v3706 = vpack.c.bf16 %v3689, %v3688
    %v3707 = vpack.c.bf16 %v3691, %v3690
    %v3708 = vld [vmem:[#allocation12] sm:$0xf]
    %v3709 = vld [vmem:[#allocation12 + $0x4] sm:$0xf]
    %v3710 = vld [vmem:[#allocation12 + $0x8] sm:$0xf]
    %v3711 = vld [vmem:[#allocation12 + $0xc] sm:$0xf]
    %v3712 = vld [vmem:[#allocation12 + $0x10] sm:$0xf]
    %v3713 = vld [vmem:[#allocation12 + $0x14] sm:$0xf]
    %v3714 = vld [vmem:[#allocation12 + $0x18] sm:$0xf]
    %v3715 = vld [vmem:[#allocation12 + $0x1c] sm:$0xf]
    %v3716 = vld [vmem:[#allocation12 + $0x20] sm:$0xf]
    %v3717 = vld [vmem:[#allocation12 + $0x24] sm:$0xf]
    %v3718 = vld [vmem:[#allocation12 + $0x28] sm:$0xf]
    %v3719 = vld [vmem:[#allocation12 + $0x2c] sm:$0xf]
    %v3720 = vld [vmem:[#allocation12 + $0x30] sm:$0xf]
    %v3721 = vld [vmem:[#allocation12 + $0x34] sm:$0xf]
    %v3722 = vld [vmem:[#allocation12 + $0x38] sm:$0xf]
    %v3723 = vld [vmem:[#allocation12 + $0x3c] sm:$0xf]
    %v3724 = vld [vmem:[%s11] sm:$0x1]
    %v3726 = vlaneseq
    %v3727 = vshrl.u32 %v3726, 7
    %v3728 = vsub.s32 0, %v3727
    %v3729 = vrot.slane %v3724, %v3728
    %v3747 = vunpack.c.l.b16 %v3708
    %v3748 = vunpack.c.l.b16 %v3709
    %v3749 = vunpack.c.l.b16 %v3710
    %v3750 = vunpack.c.l.b16 %v3711
    %v3751 = vunpack.c.l.b16 %v3712
    %v3752 = vunpack.c.l.b16 %v3713
    %v3753 = vunpack.c.l.b16 %v3714
    %v3754 = vunpack.c.l.b16 %v3715
    %v3755 = vunpack.c.l.b16 %v3716
    %v3756 = vunpack.c.l.b16 %v3717
    %v3757 = vunpack.c.l.b16 %v3718
    %v3758 = vunpack.c.l.b16 %v3719
    %v3759 = vunpack.c.l.b16 %v3720
    %v3760 = vunpack.c.l.b16 %v3721
    %v3761 = vunpack.c.l.b16 %v3722
    %v3762 = vunpack.c.l.b16 %v3723
    %v3763 = vpack.c.b16 %v3748, %v3747
    %v3764 = vpack.c.b16 %v3750, %v3749
    %v3765 = vpack.c.b16 %v3752, %v3751
    %v3766 = vpack.c.b16 %v3754, %v3753
    %v3767 = vpack.c.b16 %v3756, %v3755
    %v3768 = vpack.c.b16 %v3758, %v3757
    %v3769 = vpack.c.b16 %v3760, %v3759
    %v3770 = vpack.c.b16 %v3762, %v3761
    %3779 = vmatprep.subr.bf16.mxu0 0
    %3780 = vmatpush1.bf16.msra.mxu0 %v3770
    %3781 = vmatprep.subr.bf16.mxu0 0
    %3782 = vmatpush1.bf16.msra.mxu0 %v3769
    %3783 = vmatprep.subr.bf16.mxu0 0
    %3784 = vmatpush1.bf16.msra.mxu0 %v3768
    %3785 = vmatprep.subr.bf16.mxu0 0
    %3786 = vmatpush1.bf16.msra.mxu0 %v3767
    %3787 = vmatprep.subr.bf16.mxu0 0
    %3788 = vmatpush1.bf16.msra.mxu0 %v3766
    %3789 = vmatprep.subr.bf16.mxu0 0
    %3790 = vmatpush1.bf16.msra.mxu0 %v3765
    %3791 = vmatprep.subr.bf16.mxu0 0
    %3792 = vmatpush1.bf16.msra.mxu0 %v3764
    %3793 = vmatprep.subr.bf16.mxu0 0
    %3794 = vmatpush1.bf16.msra.mxu0 %v3763
    %3795 = vmatprep.subr.bf16.mxu0 0
    %3796 = vmatpush2.bf16.msra.mxu0 0
    %3797 = vmatprep.subr.bf16.mxu0 0
    %3798 = vmatpush2.bf16.msra.mxu0 0
    %3799 = vmatprep.subr.bf16.mxu0 0
    %3800 = vmatpush2.bf16.msra.mxu0 0
    %3801 = vmatprep.subr.bf16.mxu0 0
    %3802 = vmatpush2.bf16.msra.mxu0 0
    %3803 = vmatprep.subr.bf16.mxu0 0
    %3804 = vmatpush2.bf16.msra.mxu0 0
    %3805 = vmatprep.subr.bf16.mxu0 0
    %3806 = vmatpush2.bf16.msra.mxu0 0
    %3807 = vmatprep.subr.bf16.mxu0 0
    %3808 = vmatpush2.bf16.msra.mxu0 0
    %3809 = vmatprep.subr.bf16.mxu0 0
    %3810 = vmatpush2.bf16.msra.mxu0 0
    %3811 = vmatprep.mubr.bf16.mxu0 0
    %3812 = vmatmul.mubr.bf16.gmra.mxu0 %v3692
    %v3813 = vpop.f32.mrf.mxu0
    %v3814 = vadd.f32 %v3729, %v3813
    %v3815 = vpop.f32.mrf.mxu0
    %v3816 = vpop.f32.mrf.mxu0
    %v3817 = vadd.f32 %v3729, %v3816
    %v3818 = vpop.f32.mrf.mxu0
    %3819 = vmatprep.mubr.bf16.mxu0 0
    %3820 = vmatmul.mubr.bf16.gmra.mxu0 %v3693
    %v3821 = vpop.f32.mrf.mxu0
    %v3822 = vadd.f32 %v3729, %v3821
    %v3823 = vpop.f32.mrf.mxu0
    %v3824 = vpop.f32.mrf.mxu0
    %v3825 = vadd.f32 %v3729, %v3824
    %v3826 = vpop.f32.mrf.mxu0
    %3827 = vmatprep.mubr.bf16.mxu0 0
    %3828 = vmatmul.mubr.bf16.gmra.mxu0 %v3694
    %v3829 = vpop.f32.mrf.mxu0
    %v3830 = vadd.f32 %v3729, %v3829
    %v3831 = vpop.f32.mrf.mxu0
    %v3832 = vpop.f32.mrf.mxu0
    %v3833 = vadd.f32 %v3729, %v3832
    %v3834 = vpop.f32.mrf.mxu0
    %3835 = vmatprep.mubr.bf16.mxu0 0
    %3836 = vmatmul.mubr.bf16.gmra.mxu0 %v3695
    %v3837 = vpop.f32.mrf.mxu0
    %v3838 = vadd.f32 %v3729, %v3837
    %v3839 = vpop.f32.mrf.mxu0
    %v3840 = vpop.f32.mrf.mxu0
    %v3841 = vadd.f32 %v3729, %v3840
    %v3842 = vpop.f32.mrf.mxu0
    %3843 = vmatprep.mubr.bf16.mxu0 0
    %3844 = vmatmul.mubr.bf16.gmra.mxu0 %v3696
    %v3845 = vpop.f32.mrf.mxu0
    %v3846 = vadd.f32 %v3729, %v3845
    %v3847 = vpop.f32.mrf.mxu0
    %v3848 = vpop.f32.mrf.mxu0
    %v3849 = vadd.f32 %v3729, %v3848
    %v3850 = vpop.f32.mrf.mxu0
    %3851 = vmatprep.mubr.bf16.mxu0 0
    %3852 = vmatmul.mubr.bf16.gmra.mxu0 %v3697
    %v3853 = vpop.f32.mrf.mxu0
    %v3854 = vadd.f32 %v3729, %v3853
    %v3855 = vpop.f32.mrf.mxu0
    %v3856 = vpop.f32.mrf.mxu0
    %v3857 = vadd.f32 %v3729, %v3856
    %v3858 = vpop.f32.mrf.mxu0
    %3859 = vmatprep.mubr.bf16.mxu0 0
    %3860 = vmatmul.mubr.bf16.gmra.mxu0 %v3698
    %v3861 = vpop.f32.mrf.mxu0
    %v3862 = vadd.f32 %v3729, %v3861
    %v3863 = vpop.f32.mrf.mxu0
    %v3864 = vpop.f32.mrf.mxu0
    %v3865 = vadd.f32 %v3729, %v3864
    %v3866 = vpop.f32.mrf.mxu0
    %3867 = vmatprep.mubr.bf16.mxu0 0
    %3868 = vmatmul.mubr.bf16.gmra.mxu0 %v3699
    %v3869 = vpop.f32.mrf.mxu0
    %v3870 = vadd.f32 %v3729, %v3869
    %v3871 = vpop.f32.mrf.mxu0
    %v3872 = vpop.f32.mrf.mxu0
    %v3873 = vadd.f32 %v3729, %v3872
    %v3874 = vpop.f32.mrf.mxu0
    %3875 = vmatprep.mubr.bf16.mxu0 0
    %3876 = vmatmul.mubr.bf16.gmra.mxu0 %v3700
    %v3877 = vpop.f32.mrf.mxu0
    %v3878 = vadd.f32 %v3729, %v3877
    %v3879 = vpop.f32.mrf.mxu0
    %v3880 = vpop.f32.mrf.mxu0
    %v3881 = vadd.f32 %v3729, %v3880
    %v3882 = vpop.f32.mrf.mxu0
    %3883 = vmatprep.mubr.bf16.mxu0 0
    %3884 = vmatmul.mubr.bf16.gmra.mxu0 %v3701
    %v3885 = vpop.f32.mrf.mxu0
    %v3886 = vadd.f32 %v3729, %v3885
    %v3887 = vpop.f32.mrf.mxu0
    %v3888 = vpop.f32.mrf.mxu0
    %v3889 = vadd.f32 %v3729, %v3888
    %v3890 = vpop.f32.mrf.mxu0
    %3891 = vmatprep.mubr.bf16.mxu0 0
    %3892 = vmatmul.mubr.bf16.gmra.mxu0 %v3702
    %v3893 = vpop.f32.mrf.mxu0
    %v3894 = vadd.f32 %v3729, %v3893
    %v3895 = vpop.f32.mrf.mxu0
    %v3896 = vpop.f32.mrf.mxu0
    %v3897 = vadd.f32 %v3729, %v3896
    %v3898 = vpop.f32.mrf.mxu0
    %3899 = vmatprep.mubr.bf16.mxu0 0
    %3900 = vmatmul.mubr.bf16.gmra.mxu0 %v3703
    %v3901 = vpop.f32.mrf.mxu0
    %v3902 = vadd.f32 %v3729, %v3901
    %v3903 = vpop.f32.mrf.mxu0
    %v3904 = vpop.f32.mrf.mxu0
    %v3905 = vadd.f32 %v3729, %v3904
    %v3906 = vpop.f32.mrf.mxu0
    %3907 = vmatprep.mubr.bf16.mxu0 0
    %3908 = vmatmul.mubr.bf16.gmra.mxu0 %v3704
    %v3909 = vpop.f32.mrf.mxu0
    %v3910 = vadd.f32 %v3729, %v3909
    %v3911 = vpop.f32.mrf.mxu0
    %v3912 = vpop.f32.mrf.mxu0
    %v3913 = vadd.f32 %v3729, %v3912
    %v3914 = vpop.f32.mrf.mxu0
    %3915 = vmatprep.mubr.bf16.mxu0 0
    %3916 = vmatmul.mubr.bf16.gmra.mxu0 %v3705
    %v3917 = vpop.f32.mrf.mxu0
    %v3918 = vadd.f32 %v3729, %v3917
    %v3919 = vpop.f32.mrf.mxu0
    %v3920 = vpop.f32.mrf.mxu0
    %v3921 = vadd.f32 %v3729, %v3920
    %v3922 = vpop.f32.mrf.mxu0
    %3923 = vmatprep.mubr.bf16.mxu0 0
    %3924 = vmatmul.mubr.bf16.gmra.mxu0 %v3706
    %v3925 = vpop.f32.mrf.mxu0
    %v3926 = vadd.f32 %v3729, %v3925
    %v3927 = vpop.f32.mrf.mxu0
    %v3928 = vpop.f32.mrf.mxu0
    %v3929 = vadd.f32 %v3729, %v3928
    %v3930 = vpop.f32.mrf.mxu0
    %3931 = vmatprep.mubr.bf16.mxu0 0
    %3932 = vmatmul.mubr.bf16.gmra.mxu0 %v3707
    %v3933 = vpop.f32.mrf.mxu0
    %v3934 = vadd.f32 %v3729, %v3933
    %v3935 = vpop.f32.mrf.mxu0
    %v3936 = vpop.f32.mrf.mxu0
    %v3937 = vadd.f32 %v3729, %v3936
    %v3938 = vpop.f32.mrf.mxu0
    %3939 = vdwg.mxu0
    %v3940 = vmax.f32 %v3814, 0.0
    %v3941 = vmax.f32 %v3817, 0.0
    %v3942 = vmax.f32 %v3822, 0.0
    %v3943 = vmax.f32 %v3825, 0.0
    %v3944 = vmax.f32 %v3830, 0.0
    %v3945 = vmax.f32 %v3833, 0.0
    %v3946 = vmax.f32 %v3838, 0.0
    %v3947 = vmax.f32 %v3841, 0.0
    %v3948 = vmax.f32 %v3846, 0.0
    %v3949 = vmax.f32 %v3849, 0.0
    %v3950 = vmax.f32 %v3854, 0.0
    %v3951 = vmax.f32 %v3857, 0.0
    %v3952 = vmax.f32 %v3862, 0.0
    %v3953 = vmax.f32 %v3865, 0.0
    %v3954 = vmax.f32 %v3870, 0.0
    %v3955 = vmax.f32 %v3873, 0.0
    %v3956 = vmax.f32 %v3878, 0.0
    %v3957 = vmax.f32 %v3881, 0.0
    %v3958 = vmax.f32 %v3886, 0.0
    %v3959 = vmax.f32 %v3889, 0.0
    %v3960 = vmax.f32 %v3894, 0.0
    %v3961 = vmax.f32 %v3897, 0.0
    %v3962 = vmax.f32 %v3902, 0.0
    %v3963 = vmax.f32 %v3905, 0.0
    %v3964 = vmax.f32 %v3910, 0.0
    %v3965 = vmax.f32 %v3913, 0.0
    %v3966 = vmax.f32 %v3918, 0.0
    %v3967 = vmax.f32 %v3921, 0.0
    %v3968 = vmax.f32 %v3926, 0.0
    %v3969 = vmax.f32 %v3929, 0.0
    %v3970 = vmax.f32 %v3934, 0.0
    %v3971 = vmax.f32 %v3937, 0.0
    %v3972 = vlaneseq
    %v3973 = vand.u32 %v3972, 127
    %vm3974 = vcmp.lt.s32.totalorder %v3973, 26
    %v3975 = vsel %vm3974, 1, 0
    %vm3976 = vcmp.eq.s32.totalorder %v3975, 1
    %v3977 = vsel %vm3976, %v3940, -1e+30
    %v3978 = vsel %vm3976, %v3941, -1e+30
    %v3979 = vsel %vm3976, %v3942, -1e+30
    %v3980 = vsel %vm3976, %v3943, -1e+30
    %v3981 = vsel %vm3976, %v3944, -1e+30
    %v3982 = vsel %vm3976, %v3945, -1e+30
    %v3983 = vsel %vm3976, %v3946, -1e+30
    %v3984 = vsel %vm3976, %v3947, -1e+30
    %v3985 = vsel %vm3976, %v3948, -1e+30
    %v3986 = vsel %vm3976, %v3949, -1e+30
    %v3987 = vsel %vm3976, %v3950, -1e+30
    %v3988 = vsel %vm3976, %v3951, -1e+30
    %v3989 = vsel %vm3976, %v3952, -1e+30
    %v3990 = vsel %vm3976, %v3953, -1e+30
    %v3991 = vsel %vm3976, %v3954, -1e+30
    %v3992 = vsel %vm3976, %v3955, -1e+30
    %v3993 = vsel %vm3976, %v3956, -1e+30
    %v3994 = vsel %vm3976, %v3957, -1e+30
    %v3995 = vsel %vm3976, %v3958, -1e+30
    %v3996 = vsel %vm3976, %v3959, -1e+30
    %v3997 = vsel %vm3976, %v3960, -1e+30
    %v3998 = vsel %vm3976, %v3961, -1e+30
    %v3999 = vsel %vm3976, %v3962, -1e+30
    %v4000 = vsel %vm3976, %v3963, -1e+30
    %v4001 = vsel %vm3976, %v3964, -1e+30
    %v4002 = vsel %vm3976, %v3965, -1e+30
    %v4003 = vsel %vm3976, %v3966, -1e+30
    %v4004 = vsel %vm3976, %v3967, -1e+30
    %v4005 = vsel %vm3976, %v3968, -1e+30
    %v4006 = vsel %vm3976, %v3969, -1e+30
    %v4007 = vsel %vm3976, %v3970, -1e+30
    %v4008 = vsel %vm3976, %v3971, -1e+30
    %4009 = vmax.xlane.f32.xlu0 %v3977
    %v4010 = vpop.xlane.xlu0 %4009
    %4011 = vmax.xlane.f32.xlu0 %v3978
    %v4012 = vpop.xlane.xlu0 %4011
    %4013 = vmax.xlane.f32.xlu0 %v3979
    %v4014 = vpop.xlane.xlu0 %4013
    %4015 = vmax.xlane.f32.xlu0 %v3980
    %v4016 = vpop.xlane.xlu0 %4015
    %4017 = vmax.xlane.f32.xlu0 %v3981
    %v4018 = vpop.xlane.xlu0 %4017
    %4019 = vmax.xlane.f32.xlu0 %v3982
    %v4020 = vpop.xlane.xlu0 %4019
    %4021 = vmax.xlane.f32.xlu0 %v3983
    %v4022 = vpop.xlane.xlu0 %4021
    %4023 = vmax.xlane.f32.xlu0 %v3984
    %v4024 = vpop.xlane.xlu0 %4023
    %4025 = vmax.xlane.f32.xlu0 %v3985
    %v4026 = vpop.xlane.xlu0 %4025
    %4027 = vmax.xlane.f32.xlu0 %v3986
    %v4028 = vpop.xlane.xlu0 %4027
    %4029 = vmax.xlane.f32.xlu0 %v3987
    %v4030 = vpop.xlane.xlu0 %4029
    %4031 = vmax.xlane.f32.xlu0 %v3988
    %v4032 = vpop.xlane.xlu0 %4031
    %4033 = vmax.xlane.f32.xlu0 %v3989
    %v4034 = vpop.xlane.xlu0 %4033
    %4035 = vmax.xlane.f32.xlu0 %v3990
    %v4036 = vpop.xlane.xlu0 %4035
    %4037 = vmax.xlane.f32.xlu0 %v3991
    %v4038 = vpop.xlane.xlu0 %4037
    %4039 = vmax.xlane.f32.xlu0 %v3992
    %v4040 = vpop.xlane.xlu0 %4039
    %4041 = vmax.xlane.f32.xlu0 %v3993
    %v4042 = vpop.xlane.xlu0 %4041
    %4043 = vmax.xlane.f32.xlu0 %v3994
    %v4044 = vpop.xlane.xlu0 %4043
    %4045 = vmax.xlane.f32.xlu0 %v3995
    %v4046 = vpop.xlane.xlu0 %4045
    %4047 = vmax.xlane.f32.xlu0 %v3996
    %v4048 = vpop.xlane.xlu0 %4047
    %4049 = vmax.xlane.f32.xlu0 %v3997
    %v4050 = vpop.xlane.xlu0 %4049
    %4051 = vmax.xlane.f32.xlu0 %v3998
    %v4052 = vpop.xlane.xlu0 %4051
    %4053 = vmax.xlane.f32.xlu0 %v3999
    %v4054 = vpop.xlane.xlu0 %4053
    %4055 = vmax.xlane.f32.xlu0 %v4000
    %v4056 = vpop.xlane.xlu0 %4055
    %4057 = vmax.xlane.f32.xlu0 %v4001
    %v4058 = vpop.xlane.xlu0 %4057
    %4059 = vmax.xlane.f32.xlu0 %v4002
    %v4060 = vpop.xlane.xlu0 %4059
    %4061 = vmax.xlane.f32.xlu0 %v4003
    %v4062 = vpop.xlane.xlu0 %4061
    %4063 = vmax.xlane.f32.xlu0 %v4004
    %v4064 = vpop.xlane.xlu0 %4063
    %4065 = vmax.xlane.f32.xlu0 %v4005
    %v4066 = vpop.xlane.xlu0 %4065
    %4067 = vmax.xlane.f32.xlu0 %v4006
    %v4068 = vpop.xlane.xlu0 %4067
    %4069 = vmax.xlane.f32.xlu0 %v4007
    %v4070 = vpop.xlane.xlu0 %4069
    %4071 = vmax.xlane.f32.xlu0 %v4008
    %v4072 = vpop.xlane.xlu0 %4071
    %v4073 = vsub.f32 %v3977, %v4010
    %v4074 = vsub.f32 %v3978, %v4012
    %v4075 = vsub.f32 %v3979, %v4014
    %v4076 = vsub.f32 %v3980, %v4016
    %v4077 = vsub.f32 %v3981, %v4018
    %v4078 = vsub.f32 %v3982, %v4020
    %v4079 = vsub.f32 %v3983, %v4022
    %v4080 = vsub.f32 %v3984, %v4024
    %v4081 = vsub.f32 %v3985, %v4026
    %v4082 = vsub.f32 %v3986, %v4028
    %v4083 = vsub.f32 %v3987, %v4030
    %v4084 = vsub.f32 %v3988, %v4032
    %v4085 = vsub.f32 %v3989, %v4034
    %v4086 = vsub.f32 %v3990, %v4036
    %v4087 = vsub.f32 %v3991, %v4038
    %v4088 = vsub.f32 %v3992, %v4040
    %v4089 = vsub.f32 %v3993, %v4042
    %v4090 = vsub.f32 %v3994, %v4044
    %v4091 = vsub.f32 %v3995, %v4046
    %v4092 = vsub.f32 %v3996, %v4048
    %v4093 = vsub.f32 %v3997, %v4050
    %v4094 = vsub.f32 %v3998, %v4052
    %v4095 = vsub.f32 %v3999, %v4054
    %v4096 = vsub.f32 %v4000, %v4056
    %v4097 = vsub.f32 %v4001, %v4058
    %v4098 = vsub.f32 %v4002, %v4060
    %v4099 = vsub.f32 %v4003, %v4062
    %v4100 = vsub.f32 %v4004, %v4064
    %v4101 = vsub.f32 %v4005, %v4066
    %v4102 = vsub.f32 %v4006, %v4068
    %v4103 = vsub.f32 %v4007, %v4070
    %v4104 = vsub.f32 %v4008, %v4072
    %v4105 = vmul.f32 %v4073, 1.442695
    %v4106 = vpow.pop %v4105
    %v4107 = vmul.f32 %v4074, 1.442695
    %v4108 = vpow.pop %v4107
    %v4109 = vmul.f32 %v4075, 1.442695
    %v4110 = vpow.pop %v4109
    %v4111 = vmul.f32 %v4076, 1.442695
    %v4112 = vpow.pop %v4111
    %v4113 = vmul.f32 %v4077, 1.442695
    %v4114 = vpow.pop %v4113
    %v4115 = vmul.f32 %v4078, 1.442695
    %v4116 = vpow.pop %v4115
    %v4117 = vmul.f32 %v4079, 1.442695
    %v4118 = vpow.pop %v4117
    %v4119 = vmul.f32 %v4080, 1.442695
    %v4120 = vpow.pop %v4119
    %v4121 = vmul.f32 %v4081, 1.442695
    %v4122 = vpow.pop %v4121
    %v4123 = vmul.f32 %v4082, 1.442695
    %v4124 = vpow.pop %v4123
    %v4125 = vmul.f32 %v4083, 1.442695
    %v4126 = vpow.pop %v4125
    %v4127 = vmul.f32 %v4084, 1.442695
    %v4128 = vpow.pop %v4127
    %v4129 = vmul.f32 %v4085, 1.442695
    %v4130 = vpow.pop %v4129
    %v4131 = vmul.f32 %v4086, 1.442695
    %v4132 = vpow.pop %v4131
    %v4133 = vmul.f32 %v4087, 1.442695
    %v4134 = vpow.pop %v4133
    %v4135 = vmul.f32 %v4088, 1.442695
    %v4136 = vpow.pop %v4135
    %v4137 = vmul.f32 %v4089, 1.442695
    %v4138 = vpow.pop %v4137
    %v4139 = vmul.f32 %v4090, 1.442695
    %v4140 = vpow.pop %v4139
    %v4141 = vmul.f32 %v4091, 1.442695
    %v4142 = vpow.pop %v4141
    %v4143 = vmul.f32 %v4092, 1.442695
    %v4144 = vpow.pop %v4143
    %v4145 = vmul.f32 %v4093, 1.442695
    %v4146 = vpow.pop %v4145
    %v4147 = vmul.f32 %v4094, 1.442695
    %v4148 = vpow.pop %v4147
    %v4149 = vmul.f32 %v4095, 1.442695
    %v4150 = vpow.pop %v4149
    %v4151 = vmul.f32 %v4096, 1.442695
    %v4152 = vpow.pop %v4151
    %v4153 = vmul.f32 %v4097, 1.442695
    %v4154 = vpow.pop %v4153
    %v4155 = vmul.f32 %v4098, 1.442695
    %v4156 = vpow.pop %v4155
    %v4157 = vmul.f32 %v4099, 1.442695
    %v4158 = vpow.pop %v4157
    %v4159 = vmul.f32 %v4100, 1.442695
    %v4160 = vpow.pop %v4159
    %v4161 = vmul.f32 %v4101, 1.442695
    %v4162 = vpow.pop %v4161
    %v4163 = vmul.f32 %v4102, 1.442695
    %v4164 = vpow.pop %v4163
    %v4165 = vmul.f32 %v4103, 1.442695
    %v4166 = vpow.pop %v4165
    %v4167 = vmul.f32 %v4104, 1.442695
    %v4168 = vpow.pop %v4167
    %4169 = vadd.xlane.f32.xlu0 %v4106
    %v4170 = vpop.xlane.xlu0 %4169
    %4171 = vadd.xlane.f32.xlu0 %v4108
    %v4172 = vpop.xlane.xlu0 %4171
    %4173 = vadd.xlane.f32.xlu0 %v4110
    %v4174 = vpop.xlane.xlu0 %4173
    %4175 = vadd.xlane.f32.xlu0 %v4112
    %v4176 = vpop.xlane.xlu0 %4175
    %4177 = vadd.xlane.f32.xlu0 %v4114
    %v4178 = vpop.xlane.xlu0 %4177
    %4179 = vadd.xlane.f32.xlu0 %v4116
    %v4180 = vpop.xlane.xlu0 %4179
    %4181 = vadd.xlane.f32.xlu0 %v4118
    %v4182 = vpop.xlane.xlu0 %4181
    %4183 = vadd.xlane.f32.xlu0 %v4120
    %v4184 = vpop.xlane.xlu0 %4183
    %4185 = vadd.xlane.f32.xlu0 %v4122
    %v4186 = vpop.xlane.xlu0 %4185
    %4187 = vadd.xlane.f32.xlu0 %v4124
    %v4188 = vpop.xlane.xlu0 %4187
    %4189 = vadd.xlane.f32.xlu0 %v4126
    %v4190 = vpop.xlane.xlu0 %4189
    %4191 = vadd.xlane.f32.xlu0 %v4128
    %v4192 = vpop.xlane.xlu0 %4191
    %4193 = vadd.xlane.f32.xlu0 %v4130
    %v4194 = vpop.xlane.xlu0 %4193
    %4195 = vadd.xlane.f32.xlu0 %v4132
    %v4196 = vpop.xlane.xlu0 %4195
    %4197 = vadd.xlane.f32.xlu0 %v4134
    %v4198 = vpop.xlane.xlu0 %4197
    %4199 = vadd.xlane.f32.xlu0 %v4136
    %v4200 = vpop.xlane.xlu0 %4199
    %4201 = vadd.xlane.f32.xlu0 %v4138
    %v4202 = vpop.xlane.xlu0 %4201
    %4203 = vadd.xlane.f32.xlu0 %v4140
    %v4204 = vpop.xlane.xlu0 %4203
    %4205 = vadd.xlane.f32.xlu0 %v4142
    %v4206 = vpop.xlane.xlu0 %4205
    %4207 = vadd.xlane.f32.xlu0 %v4144
    %v4208 = vpop.xlane.xlu0 %4207
    %4209 = vadd.xlane.f32.xlu0 %v4146
    %v4210 = vpop.xlane.xlu0 %4209
    %4211 = vadd.xlane.f32.xlu0 %v4148
    %v4212 = vpop.xlane.xlu0 %4211
    %4213 = vadd.xlane.f32.xlu0 %v4150
    %v4214 = vpop.xlane.xlu0 %4213
    %4215 = vadd.xlane.f32.xlu0 %v4152
    %v4216 = vpop.xlane.xlu0 %4215
    %4217 = vadd.xlane.f32.xlu0 %v4154
    %v4218 = vpop.xlane.xlu0 %4217
    %4219 = vadd.xlane.f32.xlu0 %v4156
    %v4220 = vpop.xlane.xlu0 %4219
    %4221 = vadd.xlane.f32.xlu0 %v4158
    %v4222 = vpop.xlane.xlu0 %4221
    %4223 = vadd.xlane.f32.xlu0 %v4160
    %v4224 = vpop.xlane.xlu0 %4223
    %4225 = vadd.xlane.f32.xlu0 %v4162
    %v4226 = vpop.xlane.xlu0 %4225
    %4227 = vadd.xlane.f32.xlu0 %v4164
    %v4228 = vpop.xlane.xlu0 %4227
    %4229 = vadd.xlane.f32.xlu0 %v4166
    %v4230 = vpop.xlane.xlu0 %4229
    %4231 = vadd.xlane.f32.xlu0 %v4168
    %v4232 = vpop.xlane.xlu0 %4231
    %v4233 = vrcp.pop %v4170
    %v4234 = vrcp.pop %v4172
    %v4235 = vrcp.pop %v4174
    %v4236 = vrcp.pop %v4176
    %v4237 = vrcp.pop %v4178
    %v4238 = vrcp.pop %v4180
    %v4239 = vrcp.pop %v4182
    %v4240 = vrcp.pop %v4184
    %v4241 = vrcp.pop %v4186
    %v4242 = vrcp.pop %v4188
    %v4243 = vrcp.pop %v4190
    %v4244 = vrcp.pop %v4192
    %v4245 = vrcp.pop %v4194
    %v4246 = vrcp.pop %v4196
    %v4247 = vrcp.pop %v4198
    %v4248 = vrcp.pop %v4200
    %v4249 = vrcp.pop %v4202
    %v4250 = vrcp.pop %v4204
    %v4251 = vrcp.pop %v4206
    %v4252 = vrcp.pop %v4208
    %v4253 = vrcp.pop %v4210
    %v4254 = vrcp.pop %v4212
    %v4255 = vrcp.pop %v4214
    %v4256 = vrcp.pop %v4216
    %v4257 = vrcp.pop %v4218
    %v4258 = vrcp.pop %v4220
    %v4259 = vrcp.pop %v4222
    %v4260 = vrcp.pop %v4224
    %v4261 = vrcp.pop %v4226
    %v4262 = vrcp.pop %v4228
    %v4263 = vrcp.pop %v4230
    %v4264 = vrcp.pop %v4232
    %v4265 = vmul.f32 %v4106, %v4233
    %v4266 = vmul.f32 %v4108, %v4234
    %v4267 = vmul.f32 %v4110, %v4235
    %v4268 = vmul.f32 %v4112, %v4236
    %v4269 = vmul.f32 %v4114, %v4237
    %v4270 = vmul.f32 %v4116, %v4238
    %v4271 = vmul.f32 %v4118, %v4239
    %v4272 = vmul.f32 %v4120, %v4240
    %v4273 = vmul.f32 %v4122, %v4241
    %v4274 = vmul.f32 %v4124, %v4242
    %v4275 = vmul.f32 %v4126, %v4243
    %v4276 = vmul.f32 %v4128, %v4244
    %v4277 = vmul.f32 %v4130, %v4245
    %v4278 = vmul.f32 %v4132, %v4246
    %v4279 = vmul.f32 %v4134, %v4247
    %v4280 = vmul.f32 %v4136, %v4248
    %v4281 = vmul.f32 %v4138, %v4249
    %v4282 = vmul.f32 %v4140, %v4250
    %v4283 = vmul.f32 %v4142, %v4251
    %v4284 = vmul.f32 %v4144, %v4252
    %v4285 = vmul.f32 %v4146, %v4253
    %v4286 = vmul.f32 %v4148, %v4254
    %v4287 = vmul.f32 %v4150, %v4255
    %v4288 = vmul.f32 %v4152, %v4256
    %v4289 = vmul.f32 %v4154, %v4257
    %v4290 = vmul.f32 %v4156, %v4258
    %v4291 = vmul.f32 %v4158, %v4259
    %v4292 = vmul.f32 %v4160, %v4260
    %v4293 = vmul.f32 %v4162, %v4261
    %v4294 = vmul.f32 %v4164, %v4262
    %v4295 = vmul.f32 %v4166, %v4263
    %v4296 = vmul.f32 %v4168, %v4264
    %4297 = vst [vmem:[#allocation14] sm:$0xff] %v4265
    %4298 = vst [vmem:[#allocation14 + $0x8] sm:$0xff] %v4266
    %4299 = vst [vmem:[#allocation14 + $0x10] sm:$0xff] %v4267
    %4300 = vst [vmem:[#allocation14 + $0x18] sm:$0xff] %v4268
    %4301 = vst [vmem:[#allocation14 + $0x20] sm:$0xff] %v4269
    %4302 = vst [vmem:[#allocation14 + $0x28] sm:$0xff] %v4270
    %4303 = vst [vmem:[#allocation14 + $0x30] sm:$0xff] %v4271
    %4304 = vst [vmem:[#allocation14 + $0x38] sm:$0xff] %v4272
    %4305 = vst [vmem:[#allocation14 + $0x40] sm:$0xff] %v4273
    %4306 = vst [vmem:[#allocation14 + $0x48] sm:$0xff] %v4274
    %4307 = vst [vmem:[#allocation14 + $0x50] sm:$0xff] %v4275
    %4308 = vst [vmem:[#allocation14 + $0x58] sm:$0xff] %v4276
    %4309 = vst [vmem:[#allocation14 + $0x60] sm:$0xff] %v4277
    %4310 = vst [vmem:[#allocation14 + $0x68] sm:$0xff] %v4278
    %4311 = vst [vmem:[#allocation14 + $0x70] sm:$0xff] %v4279
    %4312 = vst [vmem:[#allocation14 + $0x78] sm:$0xff] %v4280
    %4313 = vst [vmem:[#allocation14 + $0x80] sm:$0xff] %v4281
    %4314 = vst [vmem:[#allocation14 + $0x88] sm:$0xff] %v4282
    %4315 = vst [vmem:[#allocation14 + $0x90] sm:$0xff] %v4283
    %4316 = vst [vmem:[#allocation14 + $0x98] sm:$0xff] %v4284
    %4317 = vst [vmem:[#allocation14 + $0xa0] sm:$0xff] %v4285
    %4318 = vst [vmem:[#allocation14 + $0xa8] sm:$0xff] %v4286
    %4319 = vst [vmem:[#allocation14 + $0xb0] sm:$0xff] %v4287
    %4320 = vst [vmem:[#allocation14 + $0xb8] sm:$0xff] %v4288
    %4321 = vst [vmem:[#allocation14 + $0xc0] sm:$0xff] %v4289
    %4322 = vst [vmem:[#allocation14 + $0xc8] sm:$0xff] %v4290
    %4323 = vst [vmem:[#allocation14 + $0xd0] sm:$0xff] %v4291
    %4324 = vst [vmem:[#allocation14 + $0xd8] sm:$0xff] %v4292
    %4325 = vst [vmem:[#allocation14 + $0xe0] sm:$0xff] %v4293
    %4326 = vst [vmem:[#allocation14 + $0xe8] sm:$0xff] %v4294
    %4327 = vst [vmem:[#allocation14 + $0xf0] sm:$0xff] %v4295
    %4328 = vst [vmem:[#allocation14 + $0xf8] sm:$0xff] %v4296
    // Predicated region
    $region74: #{tpu_custom_call.1} parent=1 // pred_check
      _
    $region75: #{tpu_custom_call.1} parent=1 // pred_check_branch
      %4330 = sbr.rel (0) target = $region77
    $region76: #{tpu_custom_call.1} parent=1 // pred_region
      %s4332 = ssub.s32 4096, 4096
      %4333 = vsyncadd [#allocation5], %s4332
      %s4334 = sshll.u32 [#allocation14], 4
      %s4335 = int_to_ptr.vmem [resolvable:$true] %s4334
      %4340 = dma.vmem_to_hbm [thread:$0]  %s4335, 4096, %s12, [#allocation5], 128, 128, 8
    $region77: #{tpu_custom_call.1} parent=1 // pred_fallthru
      _
    // Predicated region
    $region78: #{tpu_custom_call.1} parent=1 // pred_check
      _
    $region79: #{tpu_custom_call.1} parent=1 // pred_check_branch
      %4342 = sbr.rel (0) target = $region81
    $region80: #{tpu_custom_call.1} parent=1 // pred_region
      %4343 = dma.done [#allocation5], 4096
    $region81: #{tpu_custom_call.1} parent=1 // pred_fallthru
      _
    %4344 = vsyncpa [#allocation4], 1
    %4345 = vsyncpa [#allocation7], 1
    %4346 = vsyncpa [#allocation10], 1
    %4347 = vsyncpa [#allocation13], 1
    %4348 = vsyncpa [#allocation5], 1

</llo_original>
